<compile_context>
chip_gen: v6e
topology: v6e:2x2x1
jax: 0.10.0
libtpu: 0.0.40
codegen_flags: <defaults>
</compile_context>

<pallas_src>
import functools
import math
from typing import NamedTuple

import jax
import jax.numpy as jnp
import numpy as np
from jax import lax
from jax.experimental import pallas as pl
from jax.experimental.pallas import tpu as pltpu


class TimeContext(NamedTuple):
    hop_length: int


# ---------------------------------------------------------------------------
# Windows (mirror torch.hann_window / hamming_window, periodic=True defaults).
# TODO(synk): `get_window_fn` is not shown in the original repo; 'hann',
#             'hamming', 'blackman' (periodic) are supported here.
# ---------------------------------------------------------------------------
def _window(name: str, n: int) -> jnp.ndarray:
    k = jnp.arange(n, dtype=jnp.float32)
    phase = 2.0 * jnp.pi * k / n
    if name == "hann":
        return 0.5 - 0.5 * jnp.cos(phase)
    if name == "hamming":
        return 0.54 - 0.46 * jnp.cos(phase)
    if name == "blackman":
        return 0.42 - 0.5 * jnp.cos(phase) + 0.08 * jnp.cos(2.0 * phase)
    raise ValueError(f"unsupported window: {name}")


def _round_up(x: int, n: int) -> int:
    return ((x + n - 1) // n) * n


def _choose_tiling(T: int, hop: int, K: int, n_frames: int):
    """Pick block size per TPU generation (VMEM-aware), all values static."""
    try:
        info = pltpu.get_tpu_info()
        vmem_cap = int(getattr(info, "vmem_capacity_bytes", 128 * 1024 * 1024))
    except Exception:  # pragma: no cover - conservative fallback
        vmem_cap = 128 * 1024 * 1024
    # v5e/v6e (128 MiB VMEM): bigger tiles; v7x (64 MiB): smaller.
    target_tb = 4096 if vmem_cap >= 100 * 1024 * 1024 else 2048

    Kh = _round_up(max(K - 1, 1), 128)            # halo tail, lane aligned
    q = 128 // math.gcd(hop, 128)                 # m multiple-of-q => tb % 128 == 0
    m_min = -(-Kh // hop)                         # tb >= Kh (halo layout)
    m_cap = -(-T // hop)                          # don't massively overshoot tiny inputs
    m = max(min(-(-target_tb // hop), m_cap), m_min, 1)
    m = _round_up(m, q)
    tb = m * hop                                  # output samples per grid step
    nb = -(-T // tb)
    nw = min(_round_up(m + 2, 8), n_frames)       # frames touched by one block
    return m, tb, nb, nw, Kh


# ---------------------------------------------------------------------------
# Pallas kernel: one (batch row, time block) per grid step.
#   frames_ref : (1, 1, nw, K)  frame window for this block
#   halo_ref   : (1, 1, tb+Kh)  signal halo for this block
#   out_ref    : (1, 1, tb)     filtered samples (lane-dense row)
#   xT_ref     : (K, tb) VMEM   shifted-signal (Hankel) scratch
# ---------------------------------------------------------------------------
def _ltv_fir_kernel(frames_ref, halo_ref, out_ref, xT_ref, *,
                    hop, n_frames, nw, tb, m, K):
    i = pl.program_id(1)

    # Frame-window start for this block (must match the wrapper's gather).
    f_start = jnp.clip(i * m - 1, 0, n_frames - nw)          # scalar int32

    # ---- blend weights W (nw, tb): F.interpolate linear, align_corners=False
    tq = lax.broadcasted_iota(jnp.int32, (1, tb), 1)          # block-local sample idx
    local = (tq.astype(jnp.float32) + 0.5) / float(hop) - 0.5  # exact f32 divide
    f_rel = jnp.floor(local)
    lam1 = local - f_rel
    f0 = i * m + f_rel.astype(jnp.int32)                      # absolute frame index
    clamp_lo = f0 < 0                                         # only first half-hop
    f0 = jnp.where(clamp_lo, 0, f0)
    lam1 = jnp.where(clamp_lo, 0.0, lam1)
    f0 = jnp.minimum(f0, n_frames - 1)                        # padded tail only
    f1 = jnp.minimum(f0 + 1, n_frames - 1)
    lam0 = 1.0 - lam1
    r0 = f0 - f_start                                         # window-relative
    r1 = f1 - f_start
    rows = lax.broadcasted_iota(jnp.int32, (nw, tb), 0)
    w = (jnp.where(rows == r0, lam0, 0.0)
         + jnp.where(rows == r1, lam1, 0.0))                  # (nw, tb)

    # ---- Hankel of the signal halo in VMEM: row k = halo[k : k + tb] --------
    # Static unrolled loop; each row is a lane-shifted copy of the halo.
    for k in range(K):
        xT_ref[k:k + 1, :] = halo_ref[0, :, k:k + tb]         # (1, tb)

    # ---- MXU: per-frame correlations over the whole block -------------------
    c = jnp.dot(frames_ref[0, 0], xT_ref[...],                # (nw, K) @ (K, tb)
                precision=lax.Precision.HIGHEST,
                preferred_element_type=jnp.float32)           # (nw, tb)

    # ---- sparse 2-term blend + sublane reduce -> lane-dense (1, tb) ---------
    out_ref[0, :, :] = jnp.sum(w * c, axis=0, keepdims=True)


# ---------------------------------------------------------------------------
# Wrapper
# ---------------------------------------------------------------------------
def ltv_zero_phase_fir_filter_precise(ex, log_mag, hop_length, *, window="hann"):
    assert ex.ndim == 2
    assert log_mag.ndim == 3
    B, t_ex = ex.shape
    b2, n_frames, n_bins = log_mag.shape
    assert b2 == B
    K = 2 * (n_bins - 1)
    hop = int(hop_length)

    # --- frame-rate glue (cheap, O(B*F*K)): zero-phase FIR kernels -----------
    mag = jnp.exp(log_mag).astype(jnp.complex64)
    fir = jnp.fft.fftshift(jnp.fft.irfft(mag, axis=-1), axes=-1)      # (B, F, K)
    frames = (fir * _window(window, K)[None, None, :]).astype(jnp.float32)

    T = min(t_ex, n_frames * hop)
    x = ex[:, :T].astype(jnp.float32)

    m, tb, nb, nw, Kh = _choose_tiling(T, hop, K, n_frames)
    Lb = tb + Kh

    # --- per-block frame windows (B, nb, nw, K); frame-rate data, ~nw/m dup --
    f_starts = jnp.clip(jnp.arange(nb, dtype=jnp.int32) * m - 1, 0, n_frames - nw)
    win_idx = f_starts[:, None] + jnp.arange(nw, dtype=jnp.int32)[None, :]
    frames_win = jnp.take(frames, win_idx, axis=1)                    # (B, nb, nw, K)

    # --- per-block signal halos (B, nb, tb+Kh): ~(tb+Kh)/tb duplication only -
    pad_left = (K - 1) // 2
    pad_right = K - 1 - pad_left
    x_pad = jnp.pad(x, ((0, 0), (pad_left, pad_right)))               # (B, T+K-1)
    L_ext = (nb + 1) * tb
    x_ext = jnp.pad(x_pad, ((0, 0), (0, L_ext - (T + K - 1))))
    b0 = x_ext[:, :nb * tb].reshape(B, nb, tb)
    b1 = x_ext[:, tb:(nb + 1) * tb].reshape(B, nb, tb)
    x_halo = jnp.concatenate([b0, b1[:, :, :Kh]], axis=-1)            # (B, nb, Lb)

    kernel = functools.partial(_ltv_fir_kernel, hop=hop, n_frames=n_frames,
                               nw=nw, tb=tb, m=m, K=K)

    # VMEM working-set estimate (double buffers + scratch + temporaries).
    vmem_est = 4 * (2 * nw * K + 2 * Lb + 2 * tb + K * tb + 4 * nw * tb + 8 * tb)
    vmem_limit = int(min(max(2 * vmem_est, 24 * 1024 * 1024), 48 * 1024 * 1024))

    out = pl.pallas_call(
        kernel,
        out_shape=jax.ShapeDtypeStruct((B, nb, tb), jnp.float32),
        grid=(B, nb),
        in_specs=[
            # frame window for this (batch, time-block)
            pl.BlockSpec((1, 1, nw, K), lambda b, i: (b, i, 0, 0)),
            # signal halo for this (batch, time-block)
            pl.BlockSpec((1, 1, Lb), lambda b, i: (b, i, 0)),
        ],
        out_specs=pl.BlockSpec((1, 1, tb), lambda b, i: (b, i, 0)),
        scratch_shapes=[pltpu.VMEM((K, tb), jnp.float32)],
        compiler_params=pltpu.CompilerParams(
            dimension_semantics=("parallel", "parallel"),
            vmem_limit_bytes=vmem_limit,
        ),
    )(frames_win, x_halo)

    return out.reshape(B, nb * tb)[:, :T]


class LTVZeroPhaseFIRFilterPrecise:
    """JAX/Pallas port of the PyTorch module's forward pass."""

    def __init__(self, window: str = "hann"):
        self.window = window

    def __call__(self, ex, log_mag, ctx: TimeContext):
        return ltv_zero_phase_fir_filter_precise(
            ex, log_mag, ctx.hop_length, window=self.window)


# ---------------------------------------------------------------------------
# Pure-JAX reference (mirrors the torch ops) for verification only.
# ---------------------------------------------------------------------------
def _ref_forward(ex, log_mag, hop_length, window="hann"):
    B, t_ex = ex.shape
    _, n_frames, n_bins = log_mag.shape
    K = 2 * (n_bins - 1)
    hop = int(hop_length)

    mag = jnp.exp(log_mag).astype(jnp.complex64)
    fir = jnp.fft.fftshift(jnp.fft.irfft(mag, axis=-1), axes=-1)
    frames = (fir * _window(window, K)[None, None, :]).astype(jnp.float32)

    T = min(t_ex, n_frames * hop)
    x = ex[:, :T].astype(jnp.float32)

    # F.interpolate(mode='linear', align_corners=False) along the frame axis
    t = jnp.arange(T, dtype=jnp.float32)
    src = jnp.maximum((t + 0.5) / hop - 0.5, 0.0)
    f0 = jnp.minimum(jnp.floor(src).astype(jnp.int32), n_frames - 1)
    f1 = jnp.minimum(f0 + 1, n_frames - 1)
    lam1 = (src - f0.astype(jnp.float32))[None, :, None]
    up = (1.0 - lam1) * frames[:, f0, :] + lam1 * frames[:, f1, :]    # (B, T, K)

    pad_left = (K - 1) // 2
    pad_right = K - 1 - pad_left
    x_pad = jnp.pad(x, ((0, 0), (pad_left, pad_right)))
    idx = jnp.arange(T)[:, None] + jnp.arange(K)[None, :]
    x_unf = jnp.take(x_pad, idx, axis=1)                              # (B, T, K)
    return jnp.einsum("btk,btk->bt", x_unf, up)


if __name__ == "__main__":
    key = jax.random.PRNGKey(0)
    k1, k2 = jax.random.split(key)

    B = 2
    hop_length = 16
    n_frames = 24
    n_fft = 128
    n_bins = n_fft // 2 + 1
    t_ex = 400                      # truncated to n_frames * hop = 384 inside

    ex = jax.random.normal(k1, (B, t_ex), jnp.float32)
    log_mag = 0.5 * jax.random.normal(k2, (B, n_frames, n_bins), jnp.float32)

    filt = LTVZeroPhaseFIRFilterPrecise(window="hann")
    y = filt(ex, log_mag, TimeContext(hop_length=hop_length))
    y = jax.block_until_ready(y)

    y_ref = _ref_forward(ex, log_mag, hop_length, window="hann")
    T_expected = min(t_ex, n_frames * hop_length)
    assert y.shape == (B, T_expected) and y.dtype == jnp.float32
    np.testing.assert_allclose(np.asarray(y), np.asarray(y_ref), rtol=1e-4, atol=1e-4)

    print("KERNEL_OK")
</pallas_src>

<mosaic_0001>
module attributes {stable_mosaic.version = 11 : i64} {
  func.func @_ltv_fir_kernel(%arg0: i32, %arg1: i32, %arg2: memref<1x1x24x128xf32, #tpu.memory_space<vmem>>, %arg3: memref<1x1x512xf32, #tpu.memory_space<vmem>>, %arg4: memref<1x1x384xf32, #tpu.memory_space<vmem>>, %arg5: memref<128x384xf32, #tpu.memory_space<vmem>>) attributes {dimension_semantics = [#tpu.dimension_semantics<parallel>, #tpu.dimension_semantics<parallel>], iteration_bounds = array<i64: 2, 1>, scalar_prefetch = 0 : i64, scratch_operands = 1 : i64, tpu.core_type = #tpu.core_type<tc>, window_params = [{transform_indices = @transform_0, window_bounds = array<i64: 1, 1, 24, 128>}, {transform_indices = @transform_1, window_bounds = array<i64: 1, 1, 512>}, {transform_indices = @transform_2, window_bounds = array<i64: 1, 1, 384>}]} {
    %c24_i32 = arith.constant 24 : i32
    %0 = arith.muli %arg1, %c24_i32 : i32
    %c1_i32 = arith.constant 1 : i32
    %1 = arith.subi %0, %c1_i32 : i32
    %c0_i32 = arith.constant 0 : i32
    %c0_i32_0 = arith.constant 0 : i32
    %2 = arith.maxsi %c0_i32, %1 : i32
    %3 = arith.minsi %c0_i32_0, %2 : i32
    %4 = tpu.iota {dimensions = array<i32: 1>} : vector<1x384xi32>
    %5 = arith.sitofp %4 : vector<1x384xi32> to vector<1x384xf32>
    %cst = arith.constant 5.000000e-01 : f32
    %6 = vector.broadcast %cst : f32 to vector<1x384xf32>
    %7 = arith.addf %5, %6 : vector<1x384xf32>
    %cst_1 = arith.constant 1.600000e+01 : f32
    %8 = vector.broadcast %cst_1 : f32 to vector<1x384xf32>
    %9 = arith.divf %7, %8 : vector<1x384xf32>
    %cst_2 = arith.constant 5.000000e-01 : f32
    %10 = vector.broadcast %cst_2 : f32 to vector<1x384xf32>
    %11 = arith.subf %9, %10 : vector<1x384xf32>
    %12 = math.floor %11 : vector<1x384xf32>
    %13 = arith.subf %11, %12 : vector<1x384xf32>
    %c24_i32_3 = arith.constant 24 : i32
    %14 = arith.muli %arg1, %c24_i32_3 : i32
    %15 = arith.fptosi %12 : vector<1x384xf32> to vector<1x384xi32>
    %16 = vector.broadcast %14 : i32 to vector<1x384xi32>
    %17 = arith.addi %16, %15 : vector<1x384xi32>
    %c0_i32_4 = arith.constant 0 : i32
    %18 = vector.broadcast %c0_i32_4 : i32 to vector<1x384xi32>
    %19 = arith.cmpi slt, %17, %18 : vector<1x384xi32>
    %c0_i32_5 = arith.constant 0 : i32
    %20 = vector.broadcast %c0_i32_5 : i32 to vector<1x384xi32>
    %21 = arith.select %19, %20, %17 : vector<1x384xi1>, vector<1x384xi32>
    %cst_6 = arith.constant 0.000000e+00 : f32
    %22 = vector.broadcast %cst_6 : f32 to vector<1x384xf32>
    %23 = arith.select %19, %22, %13 : vector<1x384xi1>, vector<1x384xf32>
    %c23_i32 = arith.constant 23 : i32
    %24 = vector.broadcast %c23_i32 : i32 to vector<1x384xi32>
    %25 = arith.minsi %21, %24 : vector<1x384xi32>
    %c1_i32_7 = arith.constant 1 : i32
    %26 = vector.broadcast %c1_i32_7 : i32 to vector<1x384xi32>
    %27 = arith.addi %25, %26 : vector<1x384xi32>
    %c23_i32_8 = arith.constant 23 : i32
    %28 = vector.broadcast %c23_i32_8 : i32 to vector<1x384xi32>
    %29 = arith.minsi %27, %28 : vector<1x384xi32>
    %cst_9 = arith.constant 1.000000e+00 : f32
    %30 = vector.broadcast %cst_9 : f32 to vector<1x384xf32>
    %31 = arith.subf %30, %23 : vector<1x384xf32>
    %32 = vector.broadcast %3 : i32 to vector<1x384xi32>
    %33 = arith.subi %25, %32 : vector<1x384xi32>
    %34 = vector.broadcast %3 : i32 to vector<1x384xi32>
    %35 = arith.subi %29, %34 : vector<1x384xi32>
    %36 = tpu.iota {dimensions = array<i32: 0>} : vector<24x384xi32>
    %37 = vector.broadcast %33 : vector<1x384xi32> to vector<24x384xi32>
    %38 = arith.cmpi eq, %36, %37 : vector<24x384xi32>
    %cst_10 = arith.constant 0.000000e+00 : f32
    %39 = vector.shape_cast %31 : vector<1x384xf32> to vector<1x384xf32>
    %40 = vector.broadcast %39 : vector<1x384xf32> to vector<24x384xf32>
    %41 = vector.broadcast %cst_10 : f32 to vector<24x384xf32>
    %42 = arith.select %38, %40, %41 : vector<24x384xi1>, vector<24x384xf32>
    %43 = vector.broadcast %35 : vector<1x384xi32> to vector<24x384xi32>
    %44 = arith.cmpi eq, %36, %43 : vector<24x384xi32>
    %cst_11 = arith.constant 0.000000e+00 : f32
    %45 = vector.shape_cast %23 : vector<1x384xf32> to vector<1x384xf32>
    %46 = vector.broadcast %45 : vector<1x384xf32> to vector<24x384xf32>
    %47 = vector.broadcast %cst_11 : f32 to vector<24x384xf32>
    %48 = arith.select %44, %46, %47 : vector<24x384xi1>, vector<24x384xf32>
    %49 = arith.addf %42, %48 : vector<24x384xf32>
    %c0 = arith.constant 0 : index
    %c0_12 = arith.constant 0 : index
    %c0_13 = arith.constant 0 : index
    %50 = vector.load %arg3[%c0, %c0_12, %c0_13] : memref<1x1x512xf32, #tpu.memory_space<vmem>>, vector<1x1x384xf32>
    %51 = vector.shape_cast %50 : vector<1x1x384xf32> to vector<1x384xf32>
    %c0_14 = arith.constant 0 : index
    %c0_15 = arith.constant 0 : index
    %52 = vector.load %arg5[%c0_14, %c0_15] : memref<128x384xf32, #tpu.memory_space<vmem>>, vector<1x384xf32>
    tpu.vector_store %arg5[%c0_14, %c0_15], %51 {strides = array<i32>} : memref<128x384xf32, #tpu.memory_space<vmem>>, vector<1x384xf32>,
    %c0_16 = arith.constant 0 : index
    %c0_17 = arith.constant 0 : index
    %c1 = arith.constant 1 : index
    %53 = vector.load %arg3[%c0_16, %c0_17, %c1] : memref<1x1x512xf32, #tpu.memory_space<vmem>>, vector<1x1x384xf32>
    %54 = vector.shape_cast %53 : vector<1x1x384xf32> to vector<1x384xf32>
    %c1_18 = arith.constant 1 : index
    %c0_19 = arith.constant 0 : index
    %55 = vector.load %arg5[%c1_18, %c0_19] : memref<128x384xf32, #tpu.memory_space<vmem>>, vector<1x384xf32>
    tpu.vector_store %arg5[%c1_18, %c0_19], %54 {strides = array<i32>} : memref<128x384xf32, #tpu.memory_space<vmem>>, vector<1x384xf32>,
    %c0_20 = arith.constant 0 : index
    %c0_21 = arith.constant 0 : index
    %c2 = arith.constant 2 : index
    %56 = vector.load %arg3[%c0_20, %c0_21, %c2] : memref<1x1x512xf32, #tpu.memory_space<vmem>>, vector<1x1x384xf32>
    %57 = vector.shape_cast %56 : vector<1x1x384xf32> to vector<1x384xf32>
    %c2_22 = arith.constant 2 : index
    %c0_23 = arith.constant 0 : index
    %58 = vector.load %arg5[%c2_22, %c0_23] : memref<128x384xf32, #tpu.memory_space<vmem>>, vector<1x384xf32>
    tpu.vector_store %arg5[%c2_22, %c0_23], %57 {strides = array<i32>} : memref<128x384xf32, #tpu.memory_space<vmem>>, vector<1x384xf32>,
    %c0_24 = arith.constant 0 : index
    %c0_25 = arith.constant 0 : index
    %c3 = arith.constant 3 : index
    %59 = vector.load %arg3[%c0_24, %c0_25, %c3] : memref<1x1x512xf32, #tpu.memory_space<vmem>>, vector<1x1x384xf32>
    %60 = vector.shape_cast %59 : vector<1x1x384xf32> to vector<1x384xf32>
    %c3_26 = arith.constant 3 : index
    %c0_27 = arith.constant 0 : index
    %61 = vector.load %arg5[%c3_26, %c0_27] : memref<128x384xf32, #tpu.memory_space<vmem>>, vector<1x384xf32>
    tpu.vector_store %arg5[%c3_26, %c0_27], %60 {strides = array<i32>} : memref<128x384xf32, #tpu.memory_space<vmem>>, vector<1x384xf32>,
    %c0_28 = arith.constant 0 : index
    %c0_29 = arith.constant 0 : index
    %c4 = arith.constant 4 : index
    %62 = vector.load %arg3[%c0_28, %c0_29, %c4] : memref<1x1x512xf32, #tpu.memory_space<vmem>>, vector<1x1x384xf32>
    %63 = vector.shape_cast %62 : vector<1x1x384xf32> to vector<1x384xf32>
    %c4_30 = arith.constant 4 : index
    %c0_31 = arith.constant 0 : index
    %64 = vector.load %arg5[%c4_30, %c0_31] : memref<128x384xf32, #tpu.memory_space<vmem>>, vector<1x384xf32>
    tpu.vector_store %arg5[%c4_30, %c0_31], %63 {strides = array<i32>} : memref<128x384xf32, #tpu.memory_space<vmem>>, vector<1x384xf32>,
    %c0_32 = arith.constant 0 : index
    %c0_33 = arith.constant 0 : index
    %c5 = arith.constant 5 : index
    %65 = vector.load %arg3[%c0_32, %c0_33, %c5] : memref<1x1x512xf32, #tpu.memory_space<vmem>>, vector<1x1x384xf32>
    %66 = vector.shape_cast %65 : vector<1x1x384xf32> to vector<1x384xf32>
    %c5_34 = arith.constant 5 : index
    %c0_35 = arith.constant 0 : index
    %67 = vector.load %arg5[%c5_34, %c0_35] : memref<128x384xf32, #tpu.memory_space<vmem>>, vector<1x384xf32>
    tpu.vector_store %arg5[%c5_34, %c0_35], %66 {strides = array<i32>} : memref<128x384xf32, #tpu.memory_space<vmem>>, vector<1x384xf32>,
    %c0_36 = arith.constant 0 : index
    %c0_37 = arith.constant 0 : index
    %c6 = arith.constant 6 : index
    %68 = vector.load %arg3[%c0_36, %c0_37, %c6] : memref<1x1x512xf32, #tpu.memory_space<vmem>>, vector<1x1x384xf32>
    %69 = vector.shape_cast %68 : vector<1x1x384xf32> to vector<1x384xf32>
    %c6_38 = arith.constant 6 : index
    %c0_39 = arith.constant 0 : index
    %70 = vector.load %arg5[%c6_38, %c0_39] : memref<128x384xf32, #tpu.memory_space<vmem>>, vector<1x384xf32>
    tpu.vector_store %arg5[%c6_38, %c0_39], %69 {strides = array<i32>} : memref<128x384xf32, #tpu.memory_space<vmem>>, vector<1x384xf32>,
    %c0_40 = arith.constant 0 : index
    %c0_41 = arith.constant 0 : index
    %c7 = arith.constant 7 : index
    %71 = vector.load %arg3[%c0_40, %c0_41, %c7] : memref<1x1x512xf32, #tpu.memory_space<vmem>>, vector<1x1x384xf32>
    %72 = vector.shape_cast %71 : vector<1x1x384xf32> to vector<1x384xf32>
    %c7_42 = arith.constant 7 : index
    %c0_43 = arith.constant 0 : index
    %73 = vector.load %arg5[%c7_42, %c0_43] : memref<128x384xf32, #tpu.memory_space<vmem>>, vector<1x384xf32>
    tpu.vector_store %arg5[%c7_42, %c0_43], %72 {strides = array<i32>} : memref<128x384xf32, #tpu.memory_space<vmem>>, vector<1x384xf32>,
    %c0_44 = arith.constant 0 : index
    %c0_45 = arith.constant 0 : index
    %c8 = arith.constant 8 : index
    %74 = vector.load %arg3[%c0_44, %c0_45, %c8] : memref<1x1x512xf32, #tpu.memory_space<vmem>>, vector<1x1x384xf32>
    %75 = vector.shape_cast %74 : vector<1x1x384xf32> to vector<1x384xf32>
    %c8_46 = arith.constant 8 : index
    %c0_47 = arith.constant 0 : index
    %76 = vector.load %arg5[%c8_46, %c0_47] : memref<128x384xf32, #tpu.memory_space<vmem>>, vector<1x384xf32>
    tpu.vector_store %arg5[%c8_46, %c0_47], %75 {strides = array<i32>} : memref<128x384xf32, #tpu.memory_space<vmem>>, vector<1x384xf32>,
    %c0_48 = arith.constant 0 : index
    %c0_49 = arith.constant 0 : index
    %c9 = arith.constant 9 : index
    %77 = vector.load %arg3[%c0_48, %c0_49, %c9] : memref<1x1x512xf32, #tpu.memory_space<vmem>>, vector<1x1x384xf32>
    %78 = vector.shape_cast %77 : vector<1x1x384xf32> to vector<1x384xf32>
    %c9_50 = arith.constant 9 : index
    %c0_51 = arith.constant 0 : index
    %79 = vector.load %arg5[%c9_50, %c0_51] : memref<128x384xf32, #tpu.memory_space<vmem>>, vector<1x384xf32>
    tpu.vector_store %arg5[%c9_50, %c0_51], %78 {strides = array<i32>} : memref<128x384xf32, #tpu.memory_space<vmem>>, vector<1x384xf32>,
    %c0_52 = arith.constant 0 : index
    %c0_53 = arith.constant 0 : index
    %c10 = arith.constant 10 : index
    %80 = vector.load %arg3[%c0_52, %c0_53, %c10] : memref<1x1x512xf32, #tpu.memory_space<vmem>>, vector<1x1x384xf32>
    %81 = vector.shape_cast %80 : vector<1x1x384xf32> to vector<1x384xf32>
    %c10_54 = arith.constant 10 : index
    %c0_55 = arith.constant 0 : index
    %82 = vector.load %arg5[%c10_54, %c0_55] : memref<128x384xf32, #tpu.memory_space<vmem>>, vector<1x384xf32>
    tpu.vector_store %arg5[%c10_54, %c0_55], %81 {strides = array<i32>} : memref<128x384xf32, #tpu.memory_space<vmem>>, vector<1x384xf32>,
    %c0_56 = arith.constant 0 : index
    %c0_57 = arith.constant 0 : index
    %c11 = arith.constant 11 : index
    %83 = vector.load %arg3[%c0_56, %c0_57, %c11] : memref<1x1x512xf32, #tpu.memory_space<vmem>>, vector<1x1x384xf32>
    %84 = vector.shape_cast %83 : vector<1x1x384xf32> to vector<1x384xf32>
    %c11_58 = arith.constant 11 : index
    %c0_59 = arith.constant 0 : index
    %85 = vector.load %arg5[%c11_58, %c0_59] : memref<128x384xf32, #tpu.memory_space<vmem>>, vector<1x384xf32>
    tpu.vector_store %arg5[%c11_58, %c0_59], %84 {strides = array<i32>} : memref<128x384xf32, #tpu.memory_space<vmem>>, vector<1x384xf32>,
    %c0_60 = arith.constant 0 : index
    %c0_61 = arith.constant 0 : index
    %c12 = arith.constant 12 : index
    %86 = vector.load %arg3[%c0_60, %c0_61, %c12] : memref<1x1x512xf32, #tpu.memory_space<vmem>>, vector<1x1x384xf32>
    %87 = vector.shape_cast %86 : vector<1x1x384xf32> to vector<1x384xf32>
    %c12_62 = arith.constant 12 : index
    %c0_63 = arith.constant 0 : index
    %88 = vector.load %arg5[%c12_62, %c0_63] : memref<128x384xf32, #tpu.memory_space<vmem>>, vector<1x384xf32>
    tpu.vector_store %arg5[%c12_62, %c0_63], %87 {strides = array<i32>} : memref<128x384xf32, #tpu.memory_space<vmem>>, vector<1x384xf32>,
    %c0_64 = arith.constant 0 : index
    %c0_65 = arith.constant 0 : index
    %c13 = arith.constant 13 : index
    %89 = vector.load %arg3[%c0_64, %c0_65, %c13] : memref<1x1x512xf32, #tpu.memory_space<vmem>>, vector<1x1x384xf32>
    %90 = vector.shape_cast %89 : vector<1x1x384xf32> to vector<1x384xf32>
    %c13_66 = arith.constant 13 : index
    %c0_67 = arith.constant 0 : index
    %91 = vector.load %arg5[%c13_66, %c0_67] : memref<128x384xf32, #tpu.memory_space<vmem>>, vector<1x384xf32>
    tpu.vector_store %arg5[%c13_66, %c0_67], %90 {strides = array<i32>} : memref<128x384xf32, #tpu.memory_space<vmem>>, vector<1x384xf32>,
    %c0_68 = arith.constant 0 : index
    %c0_69 = arith.constant 0 : index
    %c14 = arith.constant 14 : index
    %92 = vector.load %arg3[%c0_68, %c0_69, %c14] : memref<1x1x512xf32, #tpu.memory_space<vmem>>, vector<1x1x384xf32>
    %93 = vector.shape_cast %92 : vector<1x1x384xf32> to vector<1x384xf32>
    %c14_70 = arith.constant 14 : index
    %c0_71 = arith.constant 0 : index
    %94 = vector.load %arg5[%c14_70, %c0_71] : memref<128x384xf32, #tpu.memory_space<vmem>>, vector<1x384xf32>
    tpu.vector_store %arg5[%c14_70, %c0_71], %93 {strides = array<i32>} : memref<128x384xf32, #tpu.memory_space<vmem>>, vector<1x384xf32>,
    %c0_72 = arith.constant 0 : index
    %c0_73 = arith.constant 0 : index
    %c15 = arith.constant 15 : index
    %95 = vector.load %arg3[%c0_72, %c0_73, %c15] : memref<1x1x512xf32, #tpu.memory_space<vmem>>, vector<1x1x384xf32>
    %96 = vector.shape_cast %95 : vector<1x1x384xf32> to vector<1x384xf32>
    %c15_74 = arith.constant 15 : index
    %c0_75 = arith.constant 0 : index
    %97 = vector.load %arg5[%c15_74, %c0_75] : memref<128x384xf32, #tpu.memory_space<vmem>>, vector<1x384xf32>
    tpu.vector_store %arg5[%c15_74, %c0_75], %96 {strides = array<i32>} : memref<128x384xf32, #tpu.memory_space<vmem>>, vector<1x384xf32>,
    %c0_76 = arith.constant 0 : index
    %c0_77 = arith.constant 0 : index
    %c16 = arith.constant 16 : index
    %98 = vector.load %arg3[%c0_76, %c0_77, %c16] : memref<1x1x512xf32, #tpu.memory_space<vmem>>, vector<1x1x384xf32>
    %99 = vector.shape_cast %98 : vector<1x1x384xf32> to vector<1x384xf32>
    %c16_78 = arith.constant 16 : index
    %c0_79 = arith.constant 0 : index
    %100 = vector.load %arg5[%c16_78, %c0_79] : memref<128x384xf32, #tpu.memory_space<vmem>>, vector<1x384xf32>
    tpu.vector_store %arg5[%c16_78, %c0_79], %99 {strides = array<i32>} : memref<128x384xf32, #tpu.memory_space<vmem>>, vector<1x384xf32>,
    %c0_80 = arith.constant 0 : index
    %c0_81 = arith.constant 0 : index
    %c17 = arith.constant 17 : index
    %101 = vector.load %arg3[%c0_80, %c0_81, %c17] : memref<1x1x512xf32, #tpu.memory_space<vmem>>, vector<1x1x384xf32>
    %102 = vector.shape_cast %101 : vector<1x1x384xf32> to vector<1x384xf32>
    %c17_82 = arith.constant 17 : index
    %c0_83 = arith.constant 0 : index
    %103 = vector.load %arg5[%c17_82, %c0_83] : memref<128x384xf32, #tpu.memory_space<vmem>>, vector<1x384xf32>
    tpu.vector_store %arg5[%c17_82, %c0_83], %102 {strides = array<i32>} : memref<128x384xf32, #tpu.memory_space<vmem>>, vector<1x384xf32>,
    %c0_84 = arith.constant 0 : index
    %c0_85 = arith.constant 0 : index
    %c18 = arith.constant 18 : index
    %104 = vector.load %arg3[%c0_84, %c0_85, %c18] : memref<1x1x512xf32, #tpu.memory_space<vmem>>, vector<1x1x384xf32>
    %105 = vector.shape_cast %104 : vector<1x1x384xf32> to vector<1x384xf32>
    %c18_86 = arith.constant 18 : index
    %c0_87 = arith.constant 0 : index
    %106 = vector.load %arg5[%c18_86, %c0_87] : memref<128x384xf32, #tpu.memory_space<vmem>>, vector<1x384xf32>
    tpu.vector_store %arg5[%c18_86, %c0_87], %105 {strides = array<i32>} : memref<128x384xf32, #tpu.memory_space<vmem>>, vector<1x384xf32>,
    %c0_88 = arith.constant 0 : index
    %c0_89 = arith.constant 0 : index
    %c19 = arith.constant 19 : index
    %107 = vector.load %arg3[%c0_88, %c0_89, %c19] : memref<1x1x512xf32, #tpu.memory_space<vmem>>, vector<1x1x384xf32>
    %108 = vector.shape_cast %107 : vector<1x1x384xf32> to vector<1x384xf32>
    %c19_90 = arith.constant 19 : index
    %c0_91 = arith.constant 0 : index
    %109 = vector.load %arg5[%c19_90, %c0_91] : memref<128x384xf32, #tpu.memory_space<vmem>>, vector<1x384xf32>
    tpu.vector_store %arg5[%c19_90, %c0_91], %108 {strides = array<i32>} : memref<128x384xf32, #tpu.memory_space<vmem>>, vector<1x384xf32>,
    %c0_92 = arith.constant 0 : index
    %c0_93 = arith.constant 0 : index
    %c20 = arith.constant 20 : index
    %110 = vector.load %arg3[%c0_92, %c0_93, %c20] : memref<1x1x512xf32, #tpu.memory_space<vmem>>, vector<1x1x384xf32>
    %111 = vector.shape_cast %110 : vector<1x1x384xf32> to vector<1x384xf32>
    %c20_94 = arith.constant 20 : index
    %c0_95 = arith.constant 0 : index
    %112 = vector.load %arg5[%c20_94, %c0_95] : memref<128x384xf32, #tpu.memory_space<vmem>>, vector<1x384xf32>
    tpu.vector_store %arg5[%c20_94, %c0_95], %111 {strides = array<i32>} : memref<128x384xf32, #tpu.memory_space<vmem>>, vector<1x384xf32>,
    %c0_96 = arith.constant 0 : index
    %c0_97 = arith.constant 0 : index
    %c21 = arith.constant 21 : index
    %113 = vector.load %arg3[%c0_96, %c0_97, %c21] : memref<1x1x512xf32, #tpu.memory_space<vmem>>, vector<1x1x384xf32>
    %114 = vector.shape_cast %113 : vector<1x1x384xf32> to vector<1x384xf32>
    %c21_98 = arith.constant 21 : index
    %c0_99 = arith.constant 0 : index
    %115 = vector.load %arg5[%c21_98, %c0_99] : memref<128x384xf32, #tpu.memory_space<vmem>>, vector<1x384xf32>
    tpu.vector_store %arg5[%c21_98, %c0_99], %114 {strides = array<i32>} : memref<128x384xf32, #tpu.memory_space<vmem>>, vector<1x384xf32>,
    %c0_100 = arith.constant 0 : index
    %c0_101 = arith.constant 0 : index
    %c22 = arith.constant 22 : index
    %116 = vector.load %arg3[%c0_100, %c0_101, %c22] : memref<1x1x512xf32, #tpu.memory_space<vmem>>, vector<1x1x384xf32>
    %117 = vector.shape_cast %116 : vector<1x1x384xf32> to vector<1x384xf32>
    %c22_102 = arith.constant 22 : index
    %c0_103 = arith.constant 0 : index
    %118 = vector.load %arg5[%c22_102, %c0_103] : memref<128x384xf32, #tpu.memory_space<vmem>>, vector<1x384xf32>
    tpu.vector_store %arg5[%c22_102, %c0_103], %117 {strides = array<i32>} : memref<128x384xf32, #tpu.memory_space<vmem>>, vector<1x384xf32>,
    %c0_104 = arith.constant 0 : index
    %c0_105 = arith.constant 0 : index
    %c23 = arith.constant 23 : index
    %119 = vector.load %arg3[%c0_104, %c0_105, %c23] : memref<1x1x512xf32, #tpu.memory_space<vmem>>, vector<1x1x384xf32>
    %120 = vector.shape_cast %119 : vector<1x1x384xf32> to vector<1x384xf32>
    %c23_106 = arith.constant 23 : index
    %c0_107 = arith.constant 0 : index
    %121 = vector.load %arg5[%c23_106, %c0_107] : memref<128x384xf32, #tpu.memory_space<vmem>>, vector<1x384xf32>
    tpu.vector_store %arg5[%c23_106, %c0_107], %120 {strides = array<i32>} : memref<128x384xf32, #tpu.memory_space<vmem>>, vector<1x384xf32>,
    %c0_108 = arith.constant 0 : index
    %c0_109 = arith.constant 0 : index
    %c24 = arith.constant 24 : index
    %122 = vector.load %arg3[%c0_108, %c0_109, %c24] : memref<1x1x512xf32, #tpu.memory_space<vmem>>, vector<1x1x384xf32>
    %123 = vector.shape_cast %122 : vector<1x1x384xf32> to vector<1x384xf32>
    %c24_110 = arith.constant 24 : index
    %c0_111 = arith.constant 0 : index
    %124 = vector.load %arg5[%c24_110, %c0_111] : memref<128x384xf32, #tpu.memory_space<vmem>>, vector<1x384xf32>
    tpu.vector_store %arg5[%c24_110, %c0_111], %123 {strides = array<i32>} : memref<128x384xf32, #tpu.memory_space<vmem>>, vector<1x384xf32>,
    %c0_112 = arith.constant 0 : index
    %c0_113 = arith.constant 0 : index
    %c25 = arith.constant 25 : index
    %125 = vector.load %arg3[%c0_112, %c0_113, %c25] : memref<1x1x512xf32, #tpu.memory_space<vmem>>, vector<1x1x384xf32>
    %126 = vector.shape_cast %125 : vector<1x1x384xf32> to vector<1x384xf32>
    %c25_114 = arith.constant 25 : index
    %c0_115 = arith.constant 0 : index
    %127 = vector.load %arg5[%c25_114, %c0_115] : memref<128x384xf32, #tpu.memory_space<vmem>>, vector<1x384xf32>
    tpu.vector_store %arg5[%c25_114, %c0_115], %126 {strides = array<i32>} : memref<128x384xf32, #tpu.memory_space<vmem>>, vector<1x384xf32>,
    %c0_116 = arith.constant 0 : index
    %c0_117 = arith.constant 0 : index
    %c26 = arith.constant 26 : index
    %128 = vector.load %arg3[%c0_116, %c0_117, %c26] : memref<1x1x512xf32, #tpu.memory_space<vmem>>, vector<1x1x384xf32>
    %129 = vector.shape_cast %128 : vector<1x1x384xf32> to vector<1x384xf32>
    %c26_118 = arith.constant 26 : index
    %c0_119 = arith.constant 0 : index
    %130 = vector.load %arg5[%c26_118, %c0_119] : memref<128x384xf32, #tpu.memory_space<vmem>>, vector<1x384xf32>
    tpu.vector_store %arg5[%c26_118, %c0_119], %129 {strides = array<i32>} : memref<128x384xf32, #tpu.memory_space<vmem>>, vector<1x384xf32>,
    %c0_120 = arith.constant 0 : index
    %c0_121 = arith.constant 0 : index
    %c27 = arith.constant 27 : index
    %131 = vector.load %arg3[%c0_120, %c0_121, %c27] : memref<1x1x512xf32, #tpu.memory_space<vmem>>, vector<1x1x384xf32>
    %132 = vector.shape_cast %131 : vector<1x1x384xf32> to vector<1x384xf32>
    %c27_122 = arith.constant 27 : index
    %c0_123 = arith.constant 0 : index
    %133 = vector.load %arg5[%c27_122, %c0_123] : memref<128x384xf32, #tpu.memory_space<vmem>>, vector<1x384xf32>
    tpu.vector_store %arg5[%c27_122, %c0_123], %132 {strides = array<i32>} : memref<128x384xf32, #tpu.memory_space<vmem>>, vector<1x384xf32>,
    %c0_124 = arith.constant 0 : index
    %c0_125 = arith.constant 0 : index
    %c28 = arith.constant 28 : index
    %134 = vector.load %arg3[%c0_124, %c0_125, %c28] : memref<1x1x512xf32, #tpu.memory_space<vmem>>, vector<1x1x384xf32>
    %135 = vector.shape_cast %134 : vector<1x1x384xf32> to vector<1x384xf32>
    %c28_126 = arith.constant 28 : index
    %c0_127 = arith.constant 0 : index
    %136 = vector.load %arg5[%c28_126, %c0_127] : memref<128x384xf32, #tpu.memory_space<vmem>>, vector<1x384xf32>
    tpu.vector_store %arg5[%c28_126, %c0_127], %135 {strides = array<i32>} : memref<128x384xf32, #tpu.memory_space<vmem>>, vector<1x384xf32>,
    %c0_128 = arith.constant 0 : index
    %c0_129 = arith.constant 0 : index
    %c29 = arith.constant 29 : index
    %137 = vector.load %arg3[%c0_128, %c0_129, %c29] : memref<1x1x512xf32, #tpu.memory_space<vmem>>, vector<1x1x384xf32>
    %138 = vector.shape_cast %137 : vector<1x1x384xf32> to vector<1x384xf32>
    %c29_130 = arith.constant 29 : index
    %c0_131 = arith.constant 0 : index
    %139 = vector.load %arg5[%c29_130, %c0_131] : memref<128x384xf32, #tpu.memory_space<vmem>>, vector<1x384xf32>
    tpu.vector_store %arg5[%c29_130, %c0_131], %138 {strides = array<i32>} : memref<128x384xf32, #tpu.memory_space<vmem>>, vector<1x384xf32>,
    %c0_132 = arith.constant 0 : index
    %c0_133 = arith.constant 0 : index
    %c30 = arith.constant 30 : index
    %140 = vector.load %arg3[%c0_132, %c0_133, %c30] : memref<1x1x512xf32, #tpu.memory_space<vmem>>, vector<1x1x384xf32>
    %141 = vector.shape_cast %140 : vector<1x1x384xf32> to vector<1x384xf32>
    %c30_134 = arith.constant 30 : index
    %c0_135 = arith.constant 0 : index
    %142 = vector.load %arg5[%c30_134, %c0_135] : memref<128x384xf32, #tpu.memory_space<vmem>>, vector<1x384xf32>
    tpu.vector_store %arg5[%c30_134, %c0_135], %141 {strides = array<i32>} : memref<128x384xf32, #tpu.memory_space<vmem>>, vector<1x384xf32>,
    %c0_136 = arith.constant 0 : index
    %c0_137 = arith.constant 0 : index
    %c31 = arith.constant 31 : index
    %143 = vector.load %arg3[%c0_136, %c0_137, %c31] : memref<1x1x512xf32, #tpu.memory_space<vmem>>, vector<1x1x384xf32>
    %144 = vector.shape_cast %143 : vector<1x1x384xf32> to vector<1x384xf32>
    %c31_138 = arith.constant 31 : index
    %c0_139 = arith.constant 0 : index
    %145 = vector.load %arg5[%c31_138, %c0_139] : memref<128x384xf32, #tpu.memory_space<vmem>>, vector<1x384xf32>
    tpu.vector_store %arg5[%c31_138, %c0_139], %144 {strides = array<i32>} : memref<128x384xf32, #tpu.memory_space<vmem>>, vector<1x384xf32>,
    %c0_140 = arith.constant 0 : index
    %c0_141 = arith.constant 0 : index
    %c32 = arith.constant 32 : index
    %146 = vector.load %arg3[%c0_140, %c0_141, %c32] : memref<1x1x512xf32, #tpu.memory_space<vmem>>, vector<1x1x384xf32>
    %147 = vector.shape_cast %146 : vector<1x1x384xf32> to vector<1x384xf32>
    %c32_142 = arith.constant 32 : index
    %c0_143 = arith.constant 0 : index
    %148 = vector.load %arg5[%c32_142, %c0_143] : memref<128x384xf32, #tpu.memory_space<vmem>>, vector<1x384xf32>
    tpu.vector_store %arg5[%c32_142, %c0_143], %147 {strides = array<i32>} : memref<128x384xf32, #tpu.memory_space<vmem>>, vector<1x384xf32>,
    %c0_144 = arith.constant 0 : index
    %c0_145 = arith.constant 0 : index
    %c33 = arith.constant 33 : index
    %149 = vector.load %arg3[%c0_144, %c0_145, %c33] : memref<1x1x512xf32, #tpu.memory_space<vmem>>, vector<1x1x384xf32>
    %150 = vector.shape_cast %149 : vector<1x1x384xf32> to vector<1x384xf32>
    %c33_146 = arith.constant 33 : index
    %c0_147 = arith.constant 0 : index
    %151 = vector.load %arg5[%c33_146, %c0_147] : memref<128x384xf32, #tpu.memory_space<vmem>>, vector<1x384xf32>
    tpu.vector_store %arg5[%c33_146, %c0_147], %150 {strides = array<i32>} : memref<128x384xf32, #tpu.memory_space<vmem>>, vector<1x384xf32>,
    %c0_148 = arith.constant 0 : index
    %c0_149 = arith.constant 0 : index
    %c34 = arith.constant 34 : index
    %152 = vector.load %arg3[%c0_148, %c0_149, %c34] : memref<1x1x512xf32, #tpu.memory_space<vmem>>, vector<1x1x384xf32>
    %153 = vector.shape_cast %152 : vector<1x1x384xf32> to vector<1x384xf32>
    %c34_150 = arith.constant 34 : index
    %c0_151 = arith.constant 0 : index
    %154 = vector.load %arg5[%c34_150, %c0_151] : memref<128x384xf32, #tpu.memory_space<vmem>>, vector<1x384xf32>
    tpu.vector_store %arg5[%c34_150, %c0_151], %153 {strides = array<i32>} : memref<128x384xf32, #tpu.memory_space<vmem>>, vector<1x384xf32>,
    %c0_152 = arith.constant 0 : index
    %c0_153 = arith.constant 0 : index
    %c35 = arith.constant 35 : index
    %155 = vector.load %arg3[%c0_152, %c0_153, %c35] : memref<1x1x512xf32, #tpu.memory_space<vmem>>, vector<1x1x384xf32>
    %156 = vector.shape_cast %155 : vector<1x1x384xf32> to vector<1x384xf32>
    %c35_154 = arith.constant 35 : index
    %c0_155 = arith.constant 0 : index
    %157 = vector.load %arg5[%c35_154, %c0_155] : memref<128x384xf32, #tpu.memory_space<vmem>>, vector<1x384xf32>
    tpu.vector_store %arg5[%c35_154, %c0_155], %156 {strides = array<i32>} : memref<128x384xf32, #tpu.memory_space<vmem>>, vector<1x384xf32>,
    %c0_156 = arith.constant 0 : index
    %c0_157 = arith.constant 0 : index
    %c36 = arith.constant 36 : index
    %158 = vector.load %arg3[%c0_156, %c0_157, %c36] : memref<1x1x512xf32, #tpu.memory_space<vmem>>, vector<1x1x384xf32>
    %159 = vector.shape_cast %158 : vector<1x1x384xf32> to vector<1x384xf32>
    %c36_158 = arith.constant 36 : index
    %c0_159 = arith.constant 0 : index
    %160 = vector.load %arg5[%c36_158, %c0_159] : memref<128x384xf32, #tpu.memory_space<vmem>>, vector<1x384xf32>
    tpu.vector_store %arg5[%c36_158, %c0_159], %159 {strides = array<i32>} : memref<128x384xf32, #tpu.memory_space<vmem>>, vector<1x384xf32>,
    %c0_160 = arith.constant 0 : index
    %c0_161 = arith.constant 0 : index
    %c37 = arith.constant 37 : index
    %161 = vector.load %arg3[%c0_160, %c0_161, %c37] : memref<1x1x512xf32, #tpu.memory_space<vmem>>, vector<1x1x384xf32>
    %162 = vector.shape_cast %161 : vector<1x1x384xf32> to vector<1x384xf32>
    %c37_162 = arith.constant 37 : index
    %c0_163 = arith.constant 0 : index
    %163 = vector.load %arg5[%c37_162, %c0_163] : memref<128x384xf32, #tpu.memory_space<vmem>>, vector<1x384xf32>
    tpu.vector_store %arg5[%c37_162, %c0_163], %162 {strides = array<i32>} : memref<128x384xf32, #tpu.memory_space<vmem>>, vector<1x384xf32>,
    %c0_164 = arith.constant 0 : index
    %c0_165 = arith.constant 0 : index
    %c38 = arith.constant 38 : index
    %164 = vector.load %arg3[%c0_164, %c0_165, %c38] : memref<1x1x512xf32, #tpu.memory_space<vmem>>, vector<1x1x384xf32>
    %165 = vector.shape_cast %164 : vector<1x1x384xf32> to vector<1x384xf32>
    %c38_166 = arith.constant 38 : index
    %c0_167 = arith.constant 0 : index
    %166 = vector.load %arg5[%c38_166, %c0_167] : memref<128x384xf32, #tpu.memory_space<vmem>>, vector<1x384xf32>
    tpu.vector_store %arg5[%c38_166, %c0_167], %165 {strides = array<i32>} : memref<128x384xf32, #tpu.memory_space<vmem>>, vector<1x384xf32>,
    %c0_168 = arith.constant 0 : index
    %c0_169 = arith.constant 0 : index
    %c39 = arith.constant 39 : index
    %167 = vector.load %arg3[%c0_168, %c0_169, %c39] : memref<1x1x512xf32, #tpu.memory_space<vmem>>, vector<1x1x384xf32>
    %168 = vector.shape_cast %167 : vector<1x1x384xf32> to vector<1x384xf32>
    %c39_170 = arith.constant 39 : index
    %c0_171 = arith.constant 0 : index
    %169 = vector.load %arg5[%c39_170, %c0_171] : memref<128x384xf32, #tpu.memory_space<vmem>>, vector<1x384xf32>
    tpu.vector_store %arg5[%c39_170, %c0_171], %168 {strides = array<i32>} : memref<128x384xf32, #tpu.memory_space<vmem>>, vector<1x384xf32>,
    %c0_172 = arith.constant 0 : index
    %c0_173 = arith.constant 0 : index
    %c40 = arith.constant 40 : index
    %170 = vector.load %arg3[%c0_172, %c0_173, %c40] : memref<1x1x512xf32, #tpu.memory_space<vmem>>, vector<1x1x384xf32>
    %171 = vector.shape_cast %170 : vector<1x1x384xf32> to vector<1x384xf32>
    %c40_174 = arith.constant 40 : index
    %c0_175 = arith.constant 0 : index
    %172 = vector.load %arg5[%c40_174, %c0_175] : memref<128x384xf32, #tpu.memory_space<vmem>>, vector<1x384xf32>
    tpu.vector_store %arg5[%c40_174, %c0_175], %171 {strides = array<i32>} : memref<128x384xf32, #tpu.memory_space<vmem>>, vector<1x384xf32>,
    %c0_176 = arith.constant 0 : index
    %c0_177 = arith.constant 0 : index
    %c41 = arith.constant 41 : index
    %173 = vector.load %arg3[%c0_176, %c0_177, %c41] : memref<1x1x512xf32, #tpu.memory_space<vmem>>, vector<1x1x384xf32>
    %174 = vector.shape_cast %173 : vector<1x1x384xf32> to vector<1x384xf32>
    %c41_178 = arith.constant 41 : index
    %c0_179 = arith.constant 0 : index
    %175 = vector.load %arg5[%c41_178, %c0_179] : memref<128x384xf32, #tpu.memory_space<vmem>>, vector<1x384xf32>
    tpu.vector_store %arg5[%c41_178, %c0_179], %174 {strides = array<i32>} : memref<128x384xf32, #tpu.memory_space<vmem>>, vector<1x384xf32>,
    %c0_180 = arith.constant 0 : index
    %c0_181 = arith.constant 0 : index
    %c42 = arith.constant 42 : index
    %176 = vector.load %arg3[%c0_180, %c0_181, %c42] : memref<1x1x512xf32, #tpu.memory_space<vmem>>, vector<1x1x384xf32>
    %177 = vector.shape_cast %176 : vector<1x1x384xf32> to vector<1x384xf32>
    %c42_182 = arith.constant 42 : index
    %c0_183 = arith.constant 0 : index
    %178 = vector.load %arg5[%c42_182, %c0_183] : memref<128x384xf32, #tpu.memory_space<vmem>>, vector<1x384xf32>
    tpu.vector_store %arg5[%c42_182, %c0_183], %177 {strides = array<i32>} : memref<128x384xf32, #tpu.memory_space<vmem>>, vector<1x384xf32>,
    %c0_184 = arith.constant 0 : index
    %c0_185 = arith.constant 0 : index
    %c43 = arith.constant 43 : index
    %179 = vector.load %arg3[%c0_184, %c0_185, %c43] : memref<1x1x512xf32, #tpu.memory_space<vmem>>, vector<1x1x384xf32>
    %180 = vector.shape_cast %179 : vector<1x1x384xf32> to vector<1x384xf32>
    %c43_186 = arith.constant 43 : index
    %c0_187 = arith.constant 0 : index
    %181 = vector.load %arg5[%c43_186, %c0_187] : memref<128x384xf32, #tpu.memory_space<vmem>>, vector<1x384xf32>
    tpu.vector_store %arg5[%c43_186, %c0_187], %180 {strides = array<i32>} : memref<128x384xf32, #tpu.memory_space<vmem>>, vector<1x384xf32>,
    %c0_188 = arith.constant 0 : index
    %c0_189 = arith.constant 0 : index
    %c44 = arith.constant 44 : index
    %182 = vector.load %arg3[%c0_188, %c0_189, %c44] : memref<1x1x512xf32, #tpu.memory_space<vmem>>, vector<1x1x384xf32>
    %183 = vector.shape_cast %182 : vector<1x1x384xf32> to vector<1x384xf32>
    %c44_190 = arith.constant 44 : index
    %c0_191 = arith.constant 0 : index
    %184 = vector.load %arg5[%c44_190, %c0_191] : memref<128x384xf32, #tpu.memory_space<vmem>>, vector<1x384xf32>
    tpu.vector_store %arg5[%c44_190, %c0_191], %183 {strides = array<i32>} : memref<128x384xf32, #tpu.memory_space<vmem>>, vector<1x384xf32>,
    %c0_192 = arith.constant 0 : index
    %c0_193 = arith.constant 0 : index
    %c45 = arith.constant 45 : index
    %185 = vector.load %arg3[%c0_192, %c0_193, %c45] : memref<1x1x512xf32, #tpu.memory_space<vmem>>, vector<1x1x384xf32>
    %186 = vector.shape_cast %185 : vector<1x1x384xf32> to vector<1x384xf32>
    %c45_194 = arith.constant 45 : index
    %c0_195 = arith.constant 0 : index
    %187 = vector.load %arg5[%c45_194, %c0_195] : memref<128x384xf32, #tpu.memory_space<vmem>>, vector<1x384xf32>
    tpu.vector_store %arg5[%c45_194, %c0_195], %186 {strides = array<i32>} : memref<128x384xf32, #tpu.memory_space<vmem>>, vector<1x384xf32>,
    %c0_196 = arith.constant 0 : index
    %c0_197 = arith.constant 0 : index
    %c46 = arith.constant 46 : index
    %188 = vector.load %arg3[%c0_196, %c0_197, %c46] : memref<1x1x512xf32, #tpu.memory_space<vmem>>, vector<1x1x384xf32>
    %189 = vector.shape_cast %188 : vector<1x1x384xf32> to vector<1x384xf32>
    %c46_198 = arith.constant 46 : index
    %c0_199 = arith.constant 0 : index
    %190 = vector.load %arg5[%c46_198, %c0_199] : memref<128x384xf32, #tpu.memory_space<vmem>>, vector<1x384xf32>
    tpu.vector_store %arg5[%c46_198, %c0_199], %189 {strides = array<i32>} : memref<128x384xf32, #tpu.memory_space<vmem>>, vector<1x384xf32>,
    %c0_200 = arith.constant 0 : index
    %c0_201 = arith.constant 0 : index
    %c47 = arith.constant 47 : index
    %191 = vector.load %arg3[%c0_200, %c0_201, %c47] : memref<1x1x512xf32, #tpu.memory_space<vmem>>, vector<1x1x384xf32>
    %192 = vector.shape_cast %191 : vector<1x1x384xf32> to vector<1x384xf32>
    %c47_202 = arith.constant 47 : index
    %c0_203 = arith.constant 0 : index
    %193 = vector.load %arg5[%c47_202, %c0_203] : memref<128x384xf32, #tpu.memory_space<vmem>>, vector<1x384xf32>
    tpu.vector_store %arg5[%c47_202, %c0_203], %192 {strides = array<i32>} : memref<128x384xf32, #tpu.memory_space<vmem>>, vector<1x384xf32>,
    %c0_204 = arith.constant 0 : index
    %c0_205 = arith.constant 0 : index
    %c48 = arith.constant 48 : index
    %194 = vector.load %arg3[%c0_204, %c0_205, %c48] : memref<1x1x512xf32, #tpu.memory_space<vmem>>, vector<1x1x384xf32>
    %195 = vector.shape_cast %194 : vector<1x1x384xf32> to vector<1x384xf32>
    %c48_206 = arith.constant 48 : index
    %c0_207 = arith.constant 0 : index
    %196 = vector.load %arg5[%c48_206, %c0_207] : memref<128x384xf32, #tpu.memory_space<vmem>>, vector<1x384xf32>
    tpu.vector_store %arg5[%c48_206, %c0_207], %195 {strides = array<i32>} : memref<128x384xf32, #tpu.memory_space<vmem>>, vector<1x384xf32>,
    %c0_208 = arith.constant 0 : index
    %c0_209 = arith.constant 0 : index
    %c49 = arith.constant 49 : index
    %197 = vector.load %arg3[%c0_208, %c0_209, %c49] : memref<1x1x512xf32, #tpu.memory_space<vmem>>, vector<1x1x384xf32>
    %198 = vector.shape_cast %197 : vector<1x1x384xf32> to vector<1x384xf32>
    %c49_210 = arith.constant 49 : index
    %c0_211 = arith.constant 0 : index
    %199 = vector.load %arg5[%c49_210, %c0_211] : memref<128x384xf32, #tpu.memory_space<vmem>>, vector<1x384xf32>
    tpu.vector_store %arg5[%c49_210, %c0_211], %198 {strides = array<i32>} : memref<128x384xf32, #tpu.memory_space<vmem>>, vector<1x384xf32>,
    %c0_212 = arith.constant 0 : index
    %c0_213 = arith.constant 0 : index
    %c50 = arith.constant 50 : index
    %200 = vector.load %arg3[%c0_212, %c0_213, %c50] : memref<1x1x512xf32, #tpu.memory_space<vmem>>, vector<1x1x384xf32>
    %201 = vector.shape_cast %200 : vector<1x1x384xf32> to vector<1x384xf32>
    %c50_214 = arith.constant 50 : index
    %c0_215 = arith.constant 0 : index
    %202 = vector.load %arg5[%c50_214, %c0_215] : memref<128x384xf32, #tpu.memory_space<vmem>>, vector<1x384xf32>
    tpu.vector_store %arg5[%c50_214, %c0_215], %201 {strides = array<i32>} : memref<128x384xf32, #tpu.memory_space<vmem>>, vector<1x384xf32>,
    %c0_216 = arith.constant 0 : index
    %c0_217 = arith.constant 0 : index
    %c51 = arith.constant 51 : index
    %203 = vector.load %arg3[%c0_216, %c0_217, %c51] : memref<1x1x512xf32, #tpu.memory_space<vmem>>, vector<1x1x384xf32>
    %204 = vector.shape_cast %203 : vector<1x1x384xf32> to vector<1x384xf32>
    %c51_218 = arith.constant 51 : index
    %c0_219 = arith.constant 0 : index
    %205 = vector.load %arg5[%c51_218, %c0_219] : memref<128x384xf32, #tpu.memory_space<vmem>>, vector<1x384xf32>
    tpu.vector_store %arg5[%c51_218, %c0_219], %204 {strides = array<i32>} : memref<128x384xf32, #tpu.memory_space<vmem>>, vector<1x384xf32>,
    %c0_220 = arith.constant 0 : index
    %c0_221 = arith.constant 0 : index
    %c52 = arith.constant 52 : index
    %206 = vector.load %arg3[%c0_220, %c0_221, %c52] : memref<1x1x512xf32, #tpu.memory_space<vmem>>, vector<1x1x384xf32>
    %207 = vector.shape_cast %206 : vector<1x1x384xf32> to vector<1x384xf32>
    %c52_222 = arith.constant 52 : index
    %c0_223 = arith.constant 0 : index
    %208 = vector.load %arg5[%c52_222, %c0_223] : memref<128x384xf32, #tpu.memory_space<vmem>>, vector<1x384xf32>
    tpu.vector_store %arg5[%c52_222, %c0_223], %207 {strides = array<i32>} : memref<128x384xf32, #tpu.memory_space<vmem>>, vector<1x384xf32>,
    %c0_224 = arith.constant 0 : index
    %c0_225 = arith.constant 0 : index
    %c53 = arith.constant 53 : index
    %209 = vector.load %arg3[%c0_224, %c0_225, %c53] : memref<1x1x512xf32, #tpu.memory_space<vmem>>, vector<1x1x384xf32>
    %210 = vector.shape_cast %209 : vector<1x1x384xf32> to vector<1x384xf32>
    %c53_226 = arith.constant 53 : index
    %c0_227 = arith.constant 0 : index
    %211 = vector.load %arg5[%c53_226, %c0_227] : memref<128x384xf32, #tpu.memory_space<vmem>>, vector<1x384xf32>
    tpu.vector_store %arg5[%c53_226, %c0_227], %210 {strides = array<i32>} : memref<128x384xf32, #tpu.memory_space<vmem>>, vector<1x384xf32>,
    %c0_228 = arith.constant 0 : index
    %c0_229 = arith.constant 0 : index
    %c54 = arith.constant 54 : index
    %212 = vector.load %arg3[%c0_228, %c0_229, %c54] : memref<1x1x512xf32, #tpu.memory_space<vmem>>, vector<1x1x384xf32>
    %213 = vector.shape_cast %212 : vector<1x1x384xf32> to vector<1x384xf32>
    %c54_230 = arith.constant 54 : index
    %c0_231 = arith.constant 0 : index
    %214 = vector.load %arg5[%c54_230, %c0_231] : memref<128x384xf32, #tpu.memory_space<vmem>>, vector<1x384xf32>
    tpu.vector_store %arg5[%c54_230, %c0_231], %213 {strides = array<i32>} : memref<128x384xf32, #tpu.memory_space<vmem>>, vector<1x384xf32>,
    %c0_232 = arith.constant 0 : index
    %c0_233 = arith.constant 0 : index
    %c55 = arith.constant 55 : index
    %215 = vector.load %arg3[%c0_232, %c0_233, %c55] : memref<1x1x512xf32, #tpu.memory_space<vmem>>, vector<1x1x384xf32>
    %216 = vector.shape_cast %215 : vector<1x1x384xf32> to vector<1x384xf32>
    %c55_234 = arith.constant 55 : index
    %c0_235 = arith.constant 0 : index
    %217 = vector.load %arg5[%c55_234, %c0_235] : memref<128x384xf32, #tpu.memory_space<vmem>>, vector<1x384xf32>
    tpu.vector_store %arg5[%c55_234, %c0_235], %216 {strides = array<i32>} : memref<128x384xf32, #tpu.memory_space<vmem>>, vector<1x384xf32>,
    %c0_236 = arith.constant 0 : index
    %c0_237 = arith.constant 0 : index
    %c56 = arith.constant 56 : index
    %218 = vector.load %arg3[%c0_236, %c0_237, %c56] : memref<1x1x512xf32, #tpu.memory_space<vmem>>, vector<1x1x384xf32>
    %219 = vector.shape_cast %218 : vector<1x1x384xf32> to vector<1x384xf32>
    %c56_238 = arith.constant 56 : index
    %c0_239 = arith.constant 0 : index
    %220 = vector.load %arg5[%c56_238, %c0_239] : memref<128x384xf32, #tpu.memory_space<vmem>>, vector<1x384xf32>
    tpu.vector_store %arg5[%c56_238, %c0_239], %219 {strides = array<i32>} : memref<128x384xf32, #tpu.memory_space<vmem>>, vector<1x384xf32>,
    %c0_240 = arith.constant 0 : index
    %c0_241 = arith.constant 0 : index
    %c57 = arith.constant 57 : index
    %221 = vector.load %arg3[%c0_240, %c0_241, %c57] : memref<1x1x512xf32, #tpu.memory_space<vmem>>, vector<1x1x384xf32>
    %222 = vector.shape_cast %221 : vector<1x1x384xf32> to vector<1x384xf32>
    %c57_242 = arith.constant 57 : index
    %c0_243 = arith.constant 0 : index
    %223 = vector.load %arg5[%c57_242, %c0_243] : memref<128x384xf32, #tpu.memory_space<vmem>>, vector<1x384xf32>
    tpu.vector_store %arg5[%c57_242, %c0_243], %222 {strides = array<i32>} : memref<128x384xf32, #tpu.memory_space<vmem>>, vector<1x384xf32>,
    %c0_244 = arith.constant 0 : index
    %c0_245 = arith.constant 0 : index
    %c58 = arith.constant 58 : index
    %224 = vector.load %arg3[%c0_244, %c0_245, %c58] : memref<1x1x512xf32, #tpu.memory_space<vmem>>, vector<1x1x384xf32>
    %225 = vector.shape_cast %224 : vector<1x1x384xf32> to vector<1x384xf32>
    %c58_246 = arith.constant 58 : index
    %c0_247 = arith.constant 0 : index
    %226 = vector.load %arg5[%c58_246, %c0_247] : memref<128x384xf32, #tpu.memory_space<vmem>>, vector<1x384xf32>
    tpu.vector_store %arg5[%c58_246, %c0_247], %225 {strides = array<i32>} : memref<128x384xf32, #tpu.memory_space<vmem>>, vector<1x384xf32>,
    %c0_248 = arith.constant 0 : index
    %c0_249 = arith.constant 0 : index
    %c59 = arith.constant 59 : index
    %227 = vector.load %arg3[%c0_248, %c0_249, %c59] : memref<1x1x512xf32, #tpu.memory_space<vmem>>, vector<1x1x384xf32>
    %228 = vector.shape_cast %227 : vector<1x1x384xf32> to vector<1x384xf32>
    %c59_250 = arith.constant 59 : index
    %c0_251 = arith.constant 0 : index
    %229 = vector.load %arg5[%c59_250, %c0_251] : memref<128x384xf32, #tpu.memory_space<vmem>>, vector<1x384xf32>
    tpu.vector_store %arg5[%c59_250, %c0_251], %228 {strides = array<i32>} : memref<128x384xf32, #tpu.memory_space<vmem>>, vector<1x384xf32>,
    %c0_252 = arith.constant 0 : index
    %c0_253 = arith.constant 0 : index
    %c60 = arith.constant 60 : index
    %230 = vector.load %arg3[%c0_252, %c0_253, %c60] : memref<1x1x512xf32, #tpu.memory_space<vmem>>, vector<1x1x384xf32>
    %231 = vector.shape_cast %230 : vector<1x1x384xf32> to vector<1x384xf32>
    %c60_254 = arith.constant 60 : index
    %c0_255 = arith.constant 0 : index
    %232 = vector.load %arg5[%c60_254, %c0_255] : memref<128x384xf32, #tpu.memory_space<vmem>>, vector<1x384xf32>
    tpu.vector_store %arg5[%c60_254, %c0_255], %231 {strides = array<i32>} : memref<128x384xf32, #tpu.memory_space<vmem>>, vector<1x384xf32>,
    %c0_256 = arith.constant 0 : index
    %c0_257 = arith.constant 0 : index
    %c61 = arith.constant 61 : index
    %233 = vector.load %arg3[%c0_256, %c0_257, %c61] : memref<1x1x512xf32, #tpu.memory_space<vmem>>, vector<1x1x384xf32>
    %234 = vector.shape_cast %233 : vector<1x1x384xf32> to vector<1x384xf32>
    %c61_258 = arith.constant 61 : index
    %c0_259 = arith.constant 0 : index
    %235 = vector.load %arg5[%c61_258, %c0_259] : memref<128x384xf32, #tpu.memory_space<vmem>>, vector<1x384xf32>
    tpu.vector_store %arg5[%c61_258, %c0_259], %234 {strides = array<i32>} : memref<128x384xf32, #tpu.memory_space<vmem>>, vector<1x384xf32>,
    %c0_260 = arith.constant 0 : index
    %c0_261 = arith.constant 0 : index
    %c62 = arith.constant 62 : index
    %236 = vector.load %arg3[%c0_260, %c0_261, %c62] : memref<1x1x512xf32, #tpu.memory_space<vmem>>, vector<1x1x384xf32>
    %237 = vector.shape_cast %236 : vector<1x1x384xf32> to vector<1x384xf32>
    %c62_262 = arith.constant 62 : index
    %c0_263 = arith.constant 0 : index
    %238 = vector.load %arg5[%c62_262, %c0_263] : memref<128x384xf32, #tpu.memory_space<vmem>>, vector<1x384xf32>
    tpu.vector_store %arg5[%c62_262, %c0_263], %237 {strides = array<i32>} : memref<128x384xf32, #tpu.memory_space<vmem>>, vector<1x384xf32>,
    %c0_264 = arith.constant 0 : index
    %c0_265 = arith.constant 0 : index
    %c63 = arith.constant 63 : index
    %239 = vector.load %arg3[%c0_264, %c0_265, %c63] : memref<1x1x512xf32, #tpu.memory_space<vmem>>, vector<1x1x384xf32>
    %240 = vector.shape_cast %239 : vector<1x1x384xf32> to vector<1x384xf32>
    %c63_266 = arith.constant 63 : index
    %c0_267 = arith.constant 0 : index
    %241 = vector.load %arg5[%c63_266, %c0_267] : memref<128x384xf32, #tpu.memory_space<vmem>>, vector<1x384xf32>
    tpu.vector_store %arg5[%c63_266, %c0_267], %240 {strides = array<i32>} : memref<128x384xf32, #tpu.memory_space<vmem>>, vector<1x384xf32>,
    %c0_268 = arith.constant 0 : index
    %c0_269 = arith.constant 0 : index
    %c64 = arith.constant 64 : index
    %242 = vector.load %arg3[%c0_268, %c0_269, %c64] : memref<1x1x512xf32, #tpu.memory_space<vmem>>, vector<1x1x384xf32>
    %243 = vector.shape_cast %242 : vector<1x1x384xf32> to vector<1x384xf32>
    %c64_270 = arith.constant 64 : index
    %c0_271 = arith.constant 0 : index
    %244 = vector.load %arg5[%c64_270, %c0_271] : memref<128x384xf32, #tpu.memory_space<vmem>>, vector<1x384xf32>
    tpu.vector_store %arg5[%c64_270, %c0_271], %243 {strides = array<i32>} : memref<128x384xf32, #tpu.memory_space<vmem>>, vector<1x384xf32>,
    %c0_272 = arith.constant 0 : index
    %c0_273 = arith.constant 0 : index
    %c65 = arith.constant 65 : index
    %245 = vector.load %arg3[%c0_272, %c0_273, %c65] : memref<1x1x512xf32, #tpu.memory_space<vmem>>, vector<1x1x384xf32>
    %246 = vector.shape_cast %245 : vector<1x1x384xf32> to vector<1x384xf32>
    %c65_274 = arith.constant 65 : index
    %c0_275 = arith.constant 0 : index
    %247 = vector.load %arg5[%c65_274, %c0_275] : memref<128x384xf32, #tpu.memory_space<vmem>>, vector<1x384xf32>
    tpu.vector_store %arg5[%c65_274, %c0_275], %246 {strides = array<i32>} : memref<128x384xf32, #tpu.memory_space<vmem>>, vector<1x384xf32>,
    %c0_276 = arith.constant 0 : index
    %c0_277 = arith.constant 0 : index
    %c66 = arith.constant 66 : index
    %248 = vector.load %arg3[%c0_276, %c0_277, %c66] : memref<1x1x512xf32, #tpu.memory_space<vmem>>, vector<1x1x384xf32>
    %249 = vector.shape_cast %248 : vector<1x1x384xf32> to vector<1x384xf32>
    %c66_278 = arith.constant 66 : index
    %c0_279 = arith.constant 0 : index
    %250 = vector.load %arg5[%c66_278, %c0_279] : memref<128x384xf32, #tpu.memory_space<vmem>>, vector<1x384xf32>
    tpu.vector_store %arg5[%c66_278, %c0_279], %249 {strides = array<i32>} : memref<128x384xf32, #tpu.memory_space<vmem>>, vector<1x384xf32>,
    %c0_280 = arith.constant 0 : index
    %c0_281 = arith.constant 0 : index
    %c67 = arith.constant 67 : index
    %251 = vector.load %arg3[%c0_280, %c0_281, %c67] : memref<1x1x512xf32, #tpu.memory_space<vmem>>, vector<1x1x384xf32>
    %252 = vector.shape_cast %251 : vector<1x1x384xf32> to vector<1x384xf32>
    %c67_282 = arith.constant 67 : index
    %c0_283 = arith.constant 0 : index
    %253 = vector.load %arg5[%c67_282, %c0_283] : memref<128x384xf32, #tpu.memory_space<vmem>>, vector<1x384xf32>
    tpu.vector_store %arg5[%c67_282, %c0_283], %252 {strides = array<i32>} : memref<128x384xf32, #tpu.memory_space<vmem>>, vector<1x384xf32>,
    %c0_284 = arith.constant 0 : index
    %c0_285 = arith.constant 0 : index
    %c68 = arith.constant 68 : index
    %254 = vector.load %arg3[%c0_284, %c0_285, %c68] : memref<1x1x512xf32, #tpu.memory_space<vmem>>, vector<1x1x384xf32>
    %255 = vector.shape_cast %254 : vector<1x1x384xf32> to vector<1x384xf32>
    %c68_286 = arith.constant 68 : index
    %c0_287 = arith.constant 0 : index
    %256 = vector.load %arg5[%c68_286, %c0_287] : memref<128x384xf32, #tpu.memory_space<vmem>>, vector<1x384xf32>
    tpu.vector_store %arg5[%c68_286, %c0_287], %255 {strides = array<i32>} : memref<128x384xf32, #tpu.memory_space<vmem>>, vector<1x384xf32>,
    %c0_288 = arith.constant 0 : index
    %c0_289 = arith.constant 0 : index
    %c69 = arith.constant 69 : index
    %257 = vector.load %arg3[%c0_288, %c0_289, %c69] : memref<1x1x512xf32, #tpu.memory_space<vmem>>, vector<1x1x384xf32>
    %258 = vector.shape_cast %257 : vector<1x1x384xf32> to vector<1x384xf32>
    %c69_290 = arith.constant 69 : index
    %c0_291 = arith.constant 0 : index
    %259 = vector.load %arg5[%c69_290, %c0_291] : memref<128x384xf32, #tpu.memory_space<vmem>>, vector<1x384xf32>
    tpu.vector_store %arg5[%c69_290, %c0_291], %258 {strides = array<i32>} : memref<128x384xf32, #tpu.memory_space<vmem>>, vector<1x384xf32>,
    %c0_292 = arith.constant 0 : index
    %c0_293 = arith.constant 0 : index
    %c70 = arith.constant 70 : index
    %260 = vector.load %arg3[%c0_292, %c0_293, %c70] : memref<1x1x512xf32, #tpu.memory_space<vmem>>, vector<1x1x384xf32>
    %261 = vector.shape_cast %260 : vector<1x1x384xf32> to vector<1x384xf32>
    %c70_294 = arith.constant 70 : index
    %c0_295 = arith.constant 0 : index
    %262 = vector.load %arg5[%c70_294, %c0_295] : memref<128x384xf32, #tpu.memory_space<vmem>>, vector<1x384xf32>
    tpu.vector_store %arg5[%c70_294, %c0_295], %261 {strides = array<i32>} : memref<128x384xf32, #tpu.memory_space<vmem>>, vector<1x384xf32>,
    %c0_296 = arith.constant 0 : index
    %c0_297 = arith.constant 0 : index
    %c71 = arith.constant 71 : index
    %263 = vector.load %arg3[%c0_296, %c0_297, %c71] : memref<1x1x512xf32, #tpu.memory_space<vmem>>, vector<1x1x384xf32>
    %264 = vector.shape_cast %263 : vector<1x1x384xf32> to vector<1x384xf32>
    %c71_298 = arith.constant 71 : index
    %c0_299 = arith.constant 0 : index
    %265 = vector.load %arg5[%c71_298, %c0_299] : memref<128x384xf32, #tpu.memory_space<vmem>>, vector<1x384xf32>
    tpu.vector_store %arg5[%c71_298, %c0_299], %264 {strides = array<i32>} : memref<128x384xf32, #tpu.memory_space<vmem>>, vector<1x384xf32>,
    %c0_300 = arith.constant 0 : index
    %c0_301 = arith.constant 0 : index
    %c72 = arith.constant 72 : index
    %266 = vector.load %arg3[%c0_300, %c0_301, %c72] : memref<1x1x512xf32, #tpu.memory_space<vmem>>, vector<1x1x384xf32>
    %267 = vector.shape_cast %266 : vector<1x1x384xf32> to vector<1x384xf32>
    %c72_302 = arith.constant 72 : index
    %c0_303 = arith.constant 0 : index
    %268 = vector.load %arg5[%c72_302, %c0_303] : memref<128x384xf32, #tpu.memory_space<vmem>>, vector<1x384xf32>
    tpu.vector_store %arg5[%c72_302, %c0_303], %267 {strides = array<i32>} : memref<128x384xf32, #tpu.memory_space<vmem>>, vector<1x384xf32>,
    %c0_304 = arith.constant 0 : index
    %c0_305 = arith.constant 0 : index
    %c73 = arith.constant 73 : index
    %269 = vector.load %arg3[%c0_304, %c0_305, %c73] : memref<1x1x512xf32, #tpu.memory_space<vmem>>, vector<1x1x384xf32>
    %270 = vector.shape_cast %269 : vector<1x1x384xf32> to vector<1x384xf32>
    %c73_306 = arith.constant 73 : index
    %c0_307 = arith.constant 0 : index
    %271 = vector.load %arg5[%c73_306, %c0_307] : memref<128x384xf32, #tpu.memory_space<vmem>>, vector<1x384xf32>
    tpu.vector_store %arg5[%c73_306, %c0_307], %270 {strides = array<i32>} : memref<128x384xf32, #tpu.memory_space<vmem>>, vector<1x384xf32>,
    %c0_308 = arith.constant 0 : index
    %c0_309 = arith.constant 0 : index
    %c74 = arith.constant 74 : index
    %272 = vector.load %arg3[%c0_308, %c0_309, %c74] : memref<1x1x512xf32, #tpu.memory_space<vmem>>, vector<1x1x384xf32>
    %273 = vector.shape_cast %272 : vector<1x1x384xf32> to vector<1x384xf32>
    %c74_310 = arith.constant 74 : index
    %c0_311 = arith.constant 0 : index
    %274 = vector.load %arg5[%c74_310, %c0_311] : memref<128x384xf32, #tpu.memory_space<vmem>>, vector<1x384xf32>
    tpu.vector_store %arg5[%c74_310, %c0_311], %273 {strides = array<i32>} : memref<128x384xf32, #tpu.memory_space<vmem>>, vector<1x384xf32>,
    %c0_312 = arith.constant 0 : index
    %c0_313 = arith.constant 0 : index
    %c75 = arith.constant 75 : index
    %275 = vector.load %arg3[%c0_312, %c0_313, %c75] : memref<1x1x512xf32, #tpu.memory_space<vmem>>, vector<1x1x384xf32>
    %276 = vector.shape_cast %275 : vector<1x1x384xf32> to vector<1x384xf32>
    %c75_314 = arith.constant 75 : index
    %c0_315 = arith.constant 0 : index
    %277 = vector.load %arg5[%c75_314, %c0_315] : memref<128x384xf32, #tpu.memory_space<vmem>>, vector<1x384xf32>
    tpu.vector_store %arg5[%c75_314, %c0_315], %276 {strides = array<i32>} : memref<128x384xf32, #tpu.memory_space<vmem>>, vector<1x384xf32>,
    %c0_316 = arith.constant 0 : index
    %c0_317 = arith.constant 0 : index
    %c76 = arith.constant 76 : index
    %278 = vector.load %arg3[%c0_316, %c0_317, %c76] : memref<1x1x512xf32, #tpu.memory_space<vmem>>, vector<1x1x384xf32>
    %279 = vector.shape_cast %278 : vector<1x1x384xf32> to vector<1x384xf32>
    %c76_318 = arith.constant 76 : index
    %c0_319 = arith.constant 0 : index
    %280 = vector.load %arg5[%c76_318, %c0_319] : memref<128x384xf32, #tpu.memory_space<vmem>>, vector<1x384xf32>
    tpu.vector_store %arg5[%c76_318, %c0_319], %279 {strides = array<i32>} : memref<128x384xf32, #tpu.memory_space<vmem>>, vector<1x384xf32>,
    %c0_320 = arith.constant 0 : index
    %c0_321 = arith.constant 0 : index
    %c77 = arith.constant 77 : index
    %281 = vector.load %arg3[%c0_320, %c0_321, %c77] : memref<1x1x512xf32, #tpu.memory_space<vmem>>, vector<1x1x384xf32>
    %282 = vector.shape_cast %281 : vector<1x1x384xf32> to vector<1x384xf32>
    %c77_322 = arith.constant 77 : index
    %c0_323 = arith.constant 0 : index
    %283 = vector.load %arg5[%c77_322, %c0_323] : memref<128x384xf32, #tpu.memory_space<vmem>>, vector<1x384xf32>
    tpu.vector_store %arg5[%c77_322, %c0_323], %282 {strides = array<i32>} : memref<128x384xf32, #tpu.memory_space<vmem>>, vector<1x384xf32>,
    %c0_324 = arith.constant 0 : index
    %c0_325 = arith.constant 0 : index
    %c78 = arith.constant 78 : index
    %284 = vector.load %arg3[%c0_324, %c0_325, %c78] : memref<1x1x512xf32, #tpu.memory_space<vmem>>, vector<1x1x384xf32>
    %285 = vector.shape_cast %284 : vector<1x1x384xf32> to vector<1x384xf32>
    %c78_326 = arith.constant 78 : index
    %c0_327 = arith.constant 0 : index
    %286 = vector.load %arg5[%c78_326, %c0_327] : memref<128x384xf32, #tpu.memory_space<vmem>>, vector<1x384xf32>
    tpu.vector_store %arg5[%c78_326, %c0_327], %285 {strides = array<i32>} : memref<128x384xf32, #tpu.memory_space<vmem>>, vector<1x384xf32>,
    %c0_328 = arith.constant 0 : index
    %c0_329 = arith.constant 0 : index
    %c79 = arith.constant 79 : index
    %287 = vector.load %arg3[%c0_328, %c0_329, %c79] : memref<1x1x512xf32, #tpu.memory_space<vmem>>, vector<1x1x384xf32>
    %288 = vector.shape_cast %287 : vector<1x1x384xf32> to vector<1x384xf32>
    %c79_330 = arith.constant 79 : index
    %c0_331 = arith.constant 0 : index
    %289 = vector.load %arg5[%c79_330, %c0_331] : memref<128x384xf32, #tpu.memory_space<vmem>>, vector<1x384xf32>
    tpu.vector_store %arg5[%c79_330, %c0_331], %288 {strides = array<i32>} : memref<128x384xf32, #tpu.memory_space<vmem>>, vector<1x384xf32>,
    %c0_332 = arith.constant 0 : index
    %c0_333 = arith.constant 0 : index
    %c80 = arith.constant 80 : index
    %290 = vector.load %arg3[%c0_332, %c0_333, %c80] : memref<1x1x512xf32, #tpu.memory_space<vmem>>, vector<1x1x384xf32>
    %291 = vector.shape_cast %290 : vector<1x1x384xf32> to vector<1x384xf32>
    %c80_334 = arith.constant 80 : index
    %c0_335 = arith.constant 0 : index
    %292 = vector.load %arg5[%c80_334, %c0_335] : memref<128x384xf32, #tpu.memory_space<vmem>>, vector<1x384xf32>
    tpu.vector_store %arg5[%c80_334, %c0_335], %291 {strides = array<i32>} : memref<128x384xf32, #tpu.memory_space<vmem>>, vector<1x384xf32>,
    %c0_336 = arith.constant 0 : index
    %c0_337 = arith.constant 0 : index
    %c81 = arith.constant 81 : index
    %293 = vector.load %arg3[%c0_336, %c0_337, %c81] : memref<1x1x512xf32, #tpu.memory_space<vmem>>, vector<1x1x384xf32>
    %294 = vector.shape_cast %293 : vector<1x1x384xf32> to vector<1x384xf32>
    %c81_338 = arith.constant 81 : index
    %c0_339 = arith.constant 0 : index
    %295 = vector.load %arg5[%c81_338, %c0_339] : memref<128x384xf32, #tpu.memory_space<vmem>>, vector<1x384xf32>
    tpu.vector_store %arg5[%c81_338, %c0_339], %294 {strides = array<i32>} : memref<128x384xf32, #tpu.memory_space<vmem>>, vector<1x384xf32>,
    %c0_340 = arith.constant 0 : index
    %c0_341 = arith.constant 0 : index
    %c82 = arith.constant 82 : index
    %296 = vector.load %arg3[%c0_340, %c0_341, %c82] : memref<1x1x512xf32, #tpu.memory_space<vmem>>, vector<1x1x384xf32>
    %297 = vector.shape_cast %296 : vector<1x1x384xf32> to vector<1x384xf32>
    %c82_342 = arith.constant 82 : index
    %c0_343 = arith.constant 0 : index
    %298 = vector.load %arg5[%c82_342, %c0_343] : memref<128x384xf32, #tpu.memory_space<vmem>>, vector<1x384xf32>
    tpu.vector_store %arg5[%c82_342, %c0_343], %297 {strides = array<i32>} : memref<128x384xf32, #tpu.memory_space<vmem>>, vector<1x384xf32>,
    %c0_344 = arith.constant 0 : index
    %c0_345 = arith.constant 0 : index
    %c83 = arith.constant 83 : index
    %299 = vector.load %arg3[%c0_344, %c0_345, %c83] : memref<1x1x512xf32, #tpu.memory_space<vmem>>, vector<1x1x384xf32>
    %300 = vector.shape_cast %299 : vector<1x1x384xf32> to vector<1x384xf32>
    %c83_346 = arith.constant 83 : index
    %c0_347 = arith.constant 0 : index
    %301 = vector.load %arg5[%c83_346, %c0_347] : memref<128x384xf32, #tpu.memory_space<vmem>>, vector<1x384xf32>
    tpu.vector_store %arg5[%c83_346, %c0_347], %300 {strides = array<i32>} : memref<128x384xf32, #tpu.memory_space<vmem>>, vector<1x384xf32>,
    %c0_348 = arith.constant 0 : index
    %c0_349 = arith.constant 0 : index
    %c84 = arith.constant 84 : index
    %302 = vector.load %arg3[%c0_348, %c0_349, %c84] : memref<1x1x512xf32, #tpu.memory_space<vmem>>, vector<1x1x384xf32>
    %303 = vector.shape_cast %302 : vector<1x1x384xf32> to vector<1x384xf32>
    %c84_350 = arith.constant 84 : index
    %c0_351 = arith.constant 0 : index
    %304 = vector.load %arg5[%c84_350, %c0_351] : memref<128x384xf32, #tpu.memory_space<vmem>>, vector<1x384xf32>
    tpu.vector_store %arg5[%c84_350, %c0_351], %303 {strides = array<i32>} : memref<128x384xf32, #tpu.memory_space<vmem>>, vector<1x384xf32>,
    %c0_352 = arith.constant 0 : index
    %c0_353 = arith.constant 0 : index
    %c85 = arith.constant 85 : index
    %305 = vector.load %arg3[%c0_352, %c0_353, %c85] : memref<1x1x512xf32, #tpu.memory_space<vmem>>, vector<1x1x384xf32>
    %306 = vector.shape_cast %305 : vector<1x1x384xf32> to vector<1x384xf32>
    %c85_354 = arith.constant 85 : index
    %c0_355 = arith.constant 0 : index
    %307 = vector.load %arg5[%c85_354, %c0_355] : memref<128x384xf32, #tpu.memory_space<vmem>>, vector<1x384xf32>
    tpu.vector_store %arg5[%c85_354, %c0_355], %306 {strides = array<i32>} : memref<128x384xf32, #tpu.memory_space<vmem>>, vector<1x384xf32>,
    %c0_356 = arith.constant 0 : index
    %c0_357 = arith.constant 0 : index
    %c86 = arith.constant 86 : index
    %308 = vector.load %arg3[%c0_356, %c0_357, %c86] : memref<1x1x512xf32, #tpu.memory_space<vmem>>, vector<1x1x384xf32>
    %309 = vector.shape_cast %308 : vector<1x1x384xf32> to vector<1x384xf32>
    %c86_358 = arith.constant 86 : index
    %c0_359 = arith.constant 0 : index
    %310 = vector.load %arg5[%c86_358, %c0_359] : memref<128x384xf32, #tpu.memory_space<vmem>>, vector<1x384xf32>
    tpu.vector_store %arg5[%c86_358, %c0_359], %309 {strides = array<i32>} : memref<128x384xf32, #tpu.memory_space<vmem>>, vector<1x384xf32>,
    %c0_360 = arith.constant 0 : index
    %c0_361 = arith.constant 0 : index
    %c87 = arith.constant 87 : index
    %311 = vector.load %arg3[%c0_360, %c0_361, %c87] : memref<1x1x512xf32, #tpu.memory_space<vmem>>, vector<1x1x384xf32>
    %312 = vector.shape_cast %311 : vector<1x1x384xf32> to vector<1x384xf32>
    %c87_362 = arith.constant 87 : index
    %c0_363 = arith.constant 0 : index
    %313 = vector.load %arg5[%c87_362, %c0_363] : memref<128x384xf32, #tpu.memory_space<vmem>>, vector<1x384xf32>
    tpu.vector_store %arg5[%c87_362, %c0_363], %312 {strides = array<i32>} : memref<128x384xf32, #tpu.memory_space<vmem>>, vector<1x384xf32>,
    %c0_364 = arith.constant 0 : index
    %c0_365 = arith.constant 0 : index
    %c88 = arith.constant 88 : index
    %314 = vector.load %arg3[%c0_364, %c0_365, %c88] : memref<1x1x512xf32, #tpu.memory_space<vmem>>, vector<1x1x384xf32>
    %315 = vector.shape_cast %314 : vector<1x1x384xf32> to vector<1x384xf32>
    %c88_366 = arith.constant 88 : index
    %c0_367 = arith.constant 0 : index
    %316 = vector.load %arg5[%c88_366, %c0_367] : memref<128x384xf32, #tpu.memory_space<vmem>>, vector<1x384xf32>
    tpu.vector_store %arg5[%c88_366, %c0_367], %315 {strides = array<i32>} : memref<128x384xf32, #tpu.memory_space<vmem>>, vector<1x384xf32>,
    %c0_368 = arith.constant 0 : index
    %c0_369 = arith.constant 0 : index
    %c89 = arith.constant 89 : index
    %317 = vector.load %arg3[%c0_368, %c0_369, %c89] : memref<1x1x512xf32, #tpu.memory_space<vmem>>, vector<1x1x384xf32>
    %318 = vector.shape_cast %317 : vector<1x1x384xf32> to vector<1x384xf32>
    %c89_370 = arith.constant 89 : index
    %c0_371 = arith.constant 0 : index
    %319 = vector.load %arg5[%c89_370, %c0_371] : memref<128x384xf32, #tpu.memory_space<vmem>>, vector<1x384xf32>
    tpu.vector_store %arg5[%c89_370, %c0_371], %318 {strides = array<i32>} : memref<128x384xf32, #tpu.memory_space<vmem>>, vector<1x384xf32>,
    %c0_372 = arith.constant 0 : index
    %c0_373 = arith.constant 0 : index
    %c90 = arith.constant 90 : index
    %320 = vector.load %arg3[%c0_372, %c0_373, %c90] : memref<1x1x512xf32, #tpu.memory_space<vmem>>, vector<1x1x384xf32>
    %321 = vector.shape_cast %320 : vector<1x1x384xf32> to vector<1x384xf32>
    %c90_374 = arith.constant 90 : index
    %c0_375 = arith.constant 0 : index
    %322 = vector.load %arg5[%c90_374, %c0_375] : memref<128x384xf32, #tpu.memory_space<vmem>>, vector<1x384xf32>
    tpu.vector_store %arg5[%c90_374, %c0_375], %321 {strides = array<i32>} : memref<128x384xf32, #tpu.memory_space<vmem>>, vector<1x384xf32>,
    %c0_376 = arith.constant 0 : index
    %c0_377 = arith.constant 0 : index
    %c91 = arith.constant 91 : index
    %323 = vector.load %arg3[%c0_376, %c0_377, %c91] : memref<1x1x512xf32, #tpu.memory_space<vmem>>, vector<1x1x384xf32>
    %324 = vector.shape_cast %323 : vector<1x1x384xf32> to vector<1x384xf32>
    %c91_378 = arith.constant 91 : index
    %c0_379 = arith.constant 0 : index
    %325 = vector.load %arg5[%c91_378, %c0_379] : memref<128x384xf32, #tpu.memory_space<vmem>>, vector<1x384xf32>
    tpu.vector_store %arg5[%c91_378, %c0_379], %324 {strides = array<i32>} : memref<128x384xf32, #tpu.memory_space<vmem>>, vector<1x384xf32>,
    %c0_380 = arith.constant 0 : index
    %c0_381 = arith.constant 0 : index
    %c92 = arith.constant 92 : index
    %326 = vector.load %arg3[%c0_380, %c0_381, %c92] : memref<1x1x512xf32, #tpu.memory_space<vmem>>, vector<1x1x384xf32>
    %327 = vector.shape_cast %326 : vector<1x1x384xf32> to vector<1x384xf32>
    %c92_382 = arith.constant 92 : index
    %c0_383 = arith.constant 0 : index
    %328 = vector.load %arg5[%c92_382, %c0_383] : memref<128x384xf32, #tpu.memory_space<vmem>>, vector<1x384xf32>
    tpu.vector_store %arg5[%c92_382, %c0_383], %327 {strides = array<i32>} : memref<128x384xf32, #tpu.memory_space<vmem>>, vector<1x384xf32>,
    %c0_384 = arith.constant 0 : index
    %c0_385 = arith.constant 0 : index
    %c93 = arith.constant 93 : index
    %329 = vector.load %arg3[%c0_384, %c0_385, %c93] : memref<1x1x512xf32, #tpu.memory_space<vmem>>, vector<1x1x384xf32>
    %330 = vector.shape_cast %329 : vector<1x1x384xf32> to vector<1x384xf32>
    %c93_386 = arith.constant 93 : index
    %c0_387 = arith.constant 0 : index
    %331 = vector.load %arg5[%c93_386, %c0_387] : memref<128x384xf32, #tpu.memory_space<vmem>>, vector<1x384xf32>
    tpu.vector_store %arg5[%c93_386, %c0_387], %330 {strides = array<i32>} : memref<128x384xf32, #tpu.memory_space<vmem>>, vector<1x384xf32>,
    %c0_388 = arith.constant 0 : index
    %c0_389 = arith.constant 0 : index
    %c94 = arith.constant 94 : index
    %332 = vector.load %arg3[%c0_388, %c0_389, %c94] : memref<1x1x512xf32, #tpu.memory_space<vmem>>, vector<1x1x384xf32>
    %333 = vector.shape_cast %332 : vector<1x1x384xf32> to vector<1x384xf32>
    %c94_390 = arith.constant 94 : index
    %c0_391 = arith.constant 0 : index
    %334 = vector.load %arg5[%c94_390, %c0_391] : memref<128x384xf32, #tpu.memory_space<vmem>>, vector<1x384xf32>
    tpu.vector_store %arg5[%c94_390, %c0_391], %333 {strides = array<i32>} : memref<128x384xf32, #tpu.memory_space<vmem>>, vector<1x384xf32>,
    %c0_392 = arith.constant 0 : index
    %c0_393 = arith.constant 0 : index
    %c95 = arith.constant 95 : index
    %335 = vector.load %arg3[%c0_392, %c0_393, %c95] : memref<1x1x512xf32, #tpu.memory_space<vmem>>, vector<1x1x384xf32>
    %336 = vector.shape_cast %335 : vector<1x1x384xf32> to vector<1x384xf32>
    %c95_394 = arith.constant 95 : index
    %c0_395 = arith.constant 0 : index
    %337 = vector.load %arg5[%c95_394, %c0_395] : memref<128x384xf32, #tpu.memory_space<vmem>>, vector<1x384xf32>
    tpu.vector_store %arg5[%c95_394, %c0_395], %336 {strides = array<i32>} : memref<128x384xf32, #tpu.memory_space<vmem>>, vector<1x384xf32>,
    %c0_396 = arith.constant 0 : index
    %c0_397 = arith.constant 0 : index
    %c96 = arith.constant 96 : index
    %338 = vector.load %arg3[%c0_396, %c0_397, %c96] : memref<1x1x512xf32, #tpu.memory_space<vmem>>, vector<1x1x384xf32>
    %339 = vector.shape_cast %338 : vector<1x1x384xf32> to vector<1x384xf32>
    %c96_398 = arith.constant 96 : index
    %c0_399 = arith.constant 0 : index
    %340 = vector.load %arg5[%c96_398, %c0_399] : memref<128x384xf32, #tpu.memory_space<vmem>>, vector<1x384xf32>
    tpu.vector_store %arg5[%c96_398, %c0_399], %339 {strides = array<i32>} : memref<128x384xf32, #tpu.memory_space<vmem>>, vector<1x384xf32>,
    %c0_400 = arith.constant 0 : index
    %c0_401 = arith.constant 0 : index
    %c97 = arith.constant 97 : index
    %341 = vector.load %arg3[%c0_400, %c0_401, %c97] : memref<1x1x512xf32, #tpu.memory_space<vmem>>, vector<1x1x384xf32>
    %342 = vector.shape_cast %341 : vector<1x1x384xf32> to vector<1x384xf32>
    %c97_402 = arith.constant 97 : index
    %c0_403 = arith.constant 0 : index
    %343 = vector.load %arg5[%c97_402, %c0_403] : memref<128x384xf32, #tpu.memory_space<vmem>>, vector<1x384xf32>
    tpu.vector_store %arg5[%c97_402, %c0_403], %342 {strides = array<i32>} : memref<128x384xf32, #tpu.memory_space<vmem>>, vector<1x384xf32>,
    %c0_404 = arith.constant 0 : index
    %c0_405 = arith.constant 0 : index
    %c98 = arith.constant 98 : index
    %344 = vector.load %arg3[%c0_404, %c0_405, %c98] : memref<1x1x512xf32, #tpu.memory_space<vmem>>, vector<1x1x384xf32>
    %345 = vector.shape_cast %344 : vector<1x1x384xf32> to vector<1x384xf32>
    %c98_406 = arith.constant 98 : index
    %c0_407 = arith.constant 0 : index
    %346 = vector.load %arg5[%c98_406, %c0_407] : memref<128x384xf32, #tpu.memory_space<vmem>>, vector<1x384xf32>
    tpu.vector_store %arg5[%c98_406, %c0_407], %345 {strides = array<i32>} : memref<128x384xf32, #tpu.memory_space<vmem>>, vector<1x384xf32>,
    %c0_408 = arith.constant 0 : index
    %c0_409 = arith.constant 0 : index
    %c99 = arith.constant 99 : index
    %347 = vector.load %arg3[%c0_408, %c0_409, %c99] : memref<1x1x512xf32, #tpu.memory_space<vmem>>, vector<1x1x384xf32>
    %348 = vector.shape_cast %347 : vector<1x1x384xf32> to vector<1x384xf32>
    %c99_410 = arith.constant 99 : index
    %c0_411 = arith.constant 0 : index
    %349 = vector.load %arg5[%c99_410, %c0_411] : memref<128x384xf32, #tpu.memory_space<vmem>>, vector<1x384xf32>
    tpu.vector_store %arg5[%c99_410, %c0_411], %348 {strides = array<i32>} : memref<128x384xf32, #tpu.memory_space<vmem>>, vector<1x384xf32>,
    %c0_412 = arith.constant 0 : index
    %c0_413 = arith.constant 0 : index
    %c100 = arith.constant 100 : index
    %350 = vector.load %arg3[%c0_412, %c0_413, %c100] : memref<1x1x512xf32, #tpu.memory_space<vmem>>, vector<1x1x384xf32>
    %351 = vector.shape_cast %350 : vector<1x1x384xf32> to vector<1x384xf32>
    %c100_414 = arith.constant 100 : index
    %c0_415 = arith.constant 0 : index
    %352 = vector.load %arg5[%c100_414, %c0_415] : memref<128x384xf32, #tpu.memory_space<vmem>>, vector<1x384xf32>
    tpu.vector_store %arg5[%c100_414, %c0_415], %351 {strides = array<i32>} : memref<128x384xf32, #tpu.memory_space<vmem>>, vector<1x384xf32>,
    %c0_416 = arith.constant 0 : index
    %c0_417 = arith.constant 0 : index
    %c101 = arith.constant 101 : index
    %353 = vector.load %arg3[%c0_416, %c0_417, %c101] : memref<1x1x512xf32, #tpu.memory_space<vmem>>, vector<1x1x384xf32>
    %354 = vector.shape_cast %353 : vector<1x1x384xf32> to vector<1x384xf32>
    %c101_418 = arith.constant 101 : index
    %c0_419 = arith.constant 0 : index
    %355 = vector.load %arg5[%c101_418, %c0_419] : memref<128x384xf32, #tpu.memory_space<vmem>>, vector<1x384xf32>
    tpu.vector_store %arg5[%c101_418, %c0_419], %354 {strides = array<i32>} : memref<128x384xf32, #tpu.memory_space<vmem>>, vector<1x384xf32>,
    %c0_420 = arith.constant 0 : index
    %c0_421 = arith.constant 0 : index
    %c102 = arith.constant 102 : index
    %356 = vector.load %arg3[%c0_420, %c0_421, %c102] : memref<1x1x512xf32, #tpu.memory_space<vmem>>, vector<1x1x384xf32>
    %357 = vector.shape_cast %356 : vector<1x1x384xf32> to vector<1x384xf32>
    %c102_422 = arith.constant 102 : index
    %c0_423 = arith.constant 0 : index
    %358 = vector.load %arg5[%c102_422, %c0_423] : memref<128x384xf32, #tpu.memory_space<vmem>>, vector<1x384xf32>
    tpu.vector_store %arg5[%c102_422, %c0_423], %357 {strides = array<i32>} : memref<128x384xf32, #tpu.memory_space<vmem>>, vector<1x384xf32>,
    %c0_424 = arith.constant 0 : index
    %c0_425 = arith.constant 0 : index
    %c103 = arith.constant 103 : index
    %359 = vector.load %arg3[%c0_424, %c0_425, %c103] : memref<1x1x512xf32, #tpu.memory_space<vmem>>, vector<1x1x384xf32>
    %360 = vector.shape_cast %359 : vector<1x1x384xf32> to vector<1x384xf32>
    %c103_426 = arith.constant 103 : index
    %c0_427 = arith.constant 0 : index
    %361 = vector.load %arg5[%c103_426, %c0_427] : memref<128x384xf32, #tpu.memory_space<vmem>>, vector<1x384xf32>
    tpu.vector_store %arg5[%c103_426, %c0_427], %360 {strides = array<i32>} : memref<128x384xf32, #tpu.memory_space<vmem>>, vector<1x384xf32>,
    %c0_428 = arith.constant 0 : index
    %c0_429 = arith.constant 0 : index
    %c104 = arith.constant 104 : index
    %362 = vector.load %arg3[%c0_428, %c0_429, %c104] : memref<1x1x512xf32, #tpu.memory_space<vmem>>, vector<1x1x384xf32>
    %363 = vector.shape_cast %362 : vector<1x1x384xf32> to vector<1x384xf32>
    %c104_430 = arith.constant 104 : index
    %c0_431 = arith.constant 0 : index
    %364 = vector.load %arg5[%c104_430, %c0_431] : memref<128x384xf32, #tpu.memory_space<vmem>>, vector<1x384xf32>
    tpu.vector_store %arg5[%c104_430, %c0_431], %363 {strides = array<i32>} : memref<128x384xf32, #tpu.memory_space<vmem>>, vector<1x384xf32>,
    %c0_432 = arith.constant 0 : index
    %c0_433 = arith.constant 0 : index
    %c105 = arith.constant 105 : index
    %365 = vector.load %arg3[%c0_432, %c0_433, %c105] : memref<1x1x512xf32, #tpu.memory_space<vmem>>, vector<1x1x384xf32>
    %366 = vector.shape_cast %365 : vector<1x1x384xf32> to vector<1x384xf32>
    %c105_434 = arith.constant 105 : index
    %c0_435 = arith.constant 0 : index
    %367 = vector.load %arg5[%c105_434, %c0_435] : memref<128x384xf32, #tpu.memory_space<vmem>>, vector<1x384xf32>
    tpu.vector_store %arg5[%c105_434, %c0_435], %366 {strides = array<i32>} : memref<128x384xf32, #tpu.memory_space<vmem>>, vector<1x384xf32>,
    %c0_436 = arith.constant 0 : index
    %c0_437 = arith.constant 0 : index
    %c106 = arith.constant 106 : index
    %368 = vector.load %arg3[%c0_436, %c0_437, %c106] : memref<1x1x512xf32, #tpu.memory_space<vmem>>, vector<1x1x384xf32>
    %369 = vector.shape_cast %368 : vector<1x1x384xf32> to vector<1x384xf32>
    %c106_438 = arith.constant 106 : index
    %c0_439 = arith.constant 0 : index
    %370 = vector.load %arg5[%c106_438, %c0_439] : memref<128x384xf32, #tpu.memory_space<vmem>>, vector<1x384xf32>
    tpu.vector_store %arg5[%c106_438, %c0_439], %369 {strides = array<i32>} : memref<128x384xf32, #tpu.memory_space<vmem>>, vector<1x384xf32>,
    %c0_440 = arith.constant 0 : index
    %c0_441 = arith.constant 0 : index
    %c107 = arith.constant 107 : index
    %371 = vector.load %arg3[%c0_440, %c0_441, %c107] : memref<1x1x512xf32, #tpu.memory_space<vmem>>, vector<1x1x384xf32>
    %372 = vector.shape_cast %371 : vector<1x1x384xf32> to vector<1x384xf32>
    %c107_442 = arith.constant 107 : index
    %c0_443 = arith.constant 0 : index
    %373 = vector.load %arg5[%c107_442, %c0_443] : memref<128x384xf32, #tpu.memory_space<vmem>>, vector<1x384xf32>
    tpu.vector_store %arg5[%c107_442, %c0_443], %372 {strides = array<i32>} : memref<128x384xf32, #tpu.memory_space<vmem>>, vector<1x384xf32>,
    %c0_444 = arith.constant 0 : index
    %c0_445 = arith.constant 0 : index
    %c108 = arith.constant 108 : index
    %374 = vector.load %arg3[%c0_444, %c0_445, %c108] : memref<1x1x512xf32, #tpu.memory_space<vmem>>, vector<1x1x384xf32>
    %375 = vector.shape_cast %374 : vector<1x1x384xf32> to vector<1x384xf32>
    %c108_446 = arith.constant 108 : index
    %c0_447 = arith.constant 0 : index
    %376 = vector.load %arg5[%c108_446, %c0_447] : memref<128x384xf32, #tpu.memory_space<vmem>>, vector<1x384xf32>
    tpu.vector_store %arg5[%c108_446, %c0_447], %375 {strides = array<i32>} : memref<128x384xf32, #tpu.memory_space<vmem>>, vector<1x384xf32>,
    %c0_448 = arith.constant 0 : index
    %c0_449 = arith.constant 0 : index
    %c109 = arith.constant 109 : index
    %377 = vector.load %arg3[%c0_448, %c0_449, %c109] : memref<1x1x512xf32, #tpu.memory_space<vmem>>, vector<1x1x384xf32>
    %378 = vector.shape_cast %377 : vector<1x1x384xf32> to vector<1x384xf32>
    %c109_450 = arith.constant 109 : index
    %c0_451 = arith.constant 0 : index
    %379 = vector.load %arg5[%c109_450, %c0_451] : memref<128x384xf32, #tpu.memory_space<vmem>>, vector<1x384xf32>
    tpu.vector_store %arg5[%c109_450, %c0_451], %378 {strides = array<i32>} : memref<128x384xf32, #tpu.memory_space<vmem>>, vector<1x384xf32>,
    %c0_452 = arith.constant 0 : index
    %c0_453 = arith.constant 0 : index
    %c110 = arith.constant 110 : index
    %380 = vector.load %arg3[%c0_452, %c0_453, %c110] : memref<1x1x512xf32, #tpu.memory_space<vmem>>, vector<1x1x384xf32>
    %381 = vector.shape_cast %380 : vector<1x1x384xf32> to vector<1x384xf32>
    %c110_454 = arith.constant 110 : index
    %c0_455 = arith.constant 0 : index
    %382 = vector.load %arg5[%c110_454, %c0_455] : memref<128x384xf32, #tpu.memory_space<vmem>>, vector<1x384xf32>
    tpu.vector_store %arg5[%c110_454, %c0_455], %381 {strides = array<i32>} : memref<128x384xf32, #tpu.memory_space<vmem>>, vector<1x384xf32>,
    %c0_456 = arith.constant 0 : index
    %c0_457 = arith.constant 0 : index
    %c111 = arith.constant 111 : index
    %383 = vector.load %arg3[%c0_456, %c0_457, %c111] : memref<1x1x512xf32, #tpu.memory_space<vmem>>, vector<1x1x384xf32>
    %384 = vector.shape_cast %383 : vector<1x1x384xf32> to vector<1x384xf32>
    %c111_458 = arith.constant 111 : index
    %c0_459 = arith.constant 0 : index
    %385 = vector.load %arg5[%c111_458, %c0_459] : memref<128x384xf32, #tpu.memory_space<vmem>>, vector<1x384xf32>
    tpu.vector_store %arg5[%c111_458, %c0_459], %384 {strides = array<i32>} : memref<128x384xf32, #tpu.memory_space<vmem>>, vector<1x384xf32>,
    %c0_460 = arith.constant 0 : index
    %c0_461 = arith.constant 0 : index
    %c112 = arith.constant 112 : index
    %386 = vector.load %arg3[%c0_460, %c0_461, %c112] : memref<1x1x512xf32, #tpu.memory_space<vmem>>, vector<1x1x384xf32>
    %387 = vector.shape_cast %386 : vector<1x1x384xf32> to vector<1x384xf32>
    %c112_462 = arith.constant 112 : index
    %c0_463 = arith.constant 0 : index
    %388 = vector.load %arg5[%c112_462, %c0_463] : memref<128x384xf32, #tpu.memory_space<vmem>>, vector<1x384xf32>
    tpu.vector_store %arg5[%c112_462, %c0_463], %387 {strides = array<i32>} : memref<128x384xf32, #tpu.memory_space<vmem>>, vector<1x384xf32>,
    %c0_464 = arith.constant 0 : index
    %c0_465 = arith.constant 0 : index
    %c113 = arith.constant 113 : index
    %389 = vector.load %arg3[%c0_464, %c0_465, %c113] : memref<1x1x512xf32, #tpu.memory_space<vmem>>, vector<1x1x384xf32>
    %390 = vector.shape_cast %389 : vector<1x1x384xf32> to vector<1x384xf32>
    %c113_466 = arith.constant 113 : index
    %c0_467 = arith.constant 0 : index
    %391 = vector.load %arg5[%c113_466, %c0_467] : memref<128x384xf32, #tpu.memory_space<vmem>>, vector<1x384xf32>
    tpu.vector_store %arg5[%c113_466, %c0_467], %390 {strides = array<i32>} : memref<128x384xf32, #tpu.memory_space<vmem>>, vector<1x384xf32>,
    %c0_468 = arith.constant 0 : index
    %c0_469 = arith.constant 0 : index
    %c114 = arith.constant 114 : index
    %392 = vector.load %arg3[%c0_468, %c0_469, %c114] : memref<1x1x512xf32, #tpu.memory_space<vmem>>, vector<1x1x384xf32>
    %393 = vector.shape_cast %392 : vector<1x1x384xf32> to vector<1x384xf32>
    %c114_470 = arith.constant 114 : index
    %c0_471 = arith.constant 0 : index
    %394 = vector.load %arg5[%c114_470, %c0_471] : memref<128x384xf32, #tpu.memory_space<vmem>>, vector<1x384xf32>
    tpu.vector_store %arg5[%c114_470, %c0_471], %393 {strides = array<i32>} : memref<128x384xf32, #tpu.memory_space<vmem>>, vector<1x384xf32>,
    %c0_472 = arith.constant 0 : index
    %c0_473 = arith.constant 0 : index
    %c115 = arith.constant 115 : index
    %395 = vector.load %arg3[%c0_472, %c0_473, %c115] : memref<1x1x512xf32, #tpu.memory_space<vmem>>, vector<1x1x384xf32>
    %396 = vector.shape_cast %395 : vector<1x1x384xf32> to vector<1x384xf32>
    %c115_474 = arith.constant 115 : index
    %c0_475 = arith.constant 0 : index
    %397 = vector.load %arg5[%c115_474, %c0_475] : memref<128x384xf32, #tpu.memory_space<vmem>>, vector<1x384xf32>
    tpu.vector_store %arg5[%c115_474, %c0_475], %396 {strides = array<i32>} : memref<128x384xf32, #tpu.memory_space<vmem>>, vector<1x384xf32>,
    %c0_476 = arith.constant 0 : index
    %c0_477 = arith.constant 0 : index
    %c116 = arith.constant 116 : index
    %398 = vector.load %arg3[%c0_476, %c0_477, %c116] : memref<1x1x512xf32, #tpu.memory_space<vmem>>, vector<1x1x384xf32>
    %399 = vector.shape_cast %398 : vector<1x1x384xf32> to vector<1x384xf32>
    %c116_478 = arith.constant 116 : index
    %c0_479 = arith.constant 0 : index
    %400 = vector.load %arg5[%c116_478, %c0_479] : memref<128x384xf32, #tpu.memory_space<vmem>>, vector<1x384xf32>
    tpu.vector_store %arg5[%c116_478, %c0_479], %399 {strides = array<i32>} : memref<128x384xf32, #tpu.memory_space<vmem>>, vector<1x384xf32>,
    %c0_480 = arith.constant 0 : index
    %c0_481 = arith.constant 0 : index
    %c117 = arith.constant 117 : index
    %401 = vector.load %arg3[%c0_480, %c0_481, %c117] : memref<1x1x512xf32, #tpu.memory_space<vmem>>, vector<1x1x384xf32>
    %402 = vector.shape_cast %401 : vector<1x1x384xf32> to vector<1x384xf32>
    %c117_482 = arith.constant 117 : index
    %c0_483 = arith.constant 0 : index
    %403 = vector.load %arg5[%c117_482, %c0_483] : memref<128x384xf32, #tpu.memory_space<vmem>>, vector<1x384xf32>
    tpu.vector_store %arg5[%c117_482, %c0_483], %402 {strides = array<i32>} : memref<128x384xf32, #tpu.memory_space<vmem>>, vector<1x384xf32>,
    %c0_484 = arith.constant 0 : index
    %c0_485 = arith.constant 0 : index
    %c118 = arith.constant 118 : index
    %404 = vector.load %arg3[%c0_484, %c0_485, %c118] : memref<1x1x512xf32, #tpu.memory_space<vmem>>, vector<1x1x384xf32>
    %405 = vector.shape_cast %404 : vector<1x1x384xf32> to vector<1x384xf32>
    %c118_486 = arith.constant 118 : index
    %c0_487 = arith.constant 0 : index
    %406 = vector.load %arg5[%c118_486, %c0_487] : memref<128x384xf32, #tpu.memory_space<vmem>>, vector<1x384xf32>
    tpu.vector_store %arg5[%c118_486, %c0_487], %405 {strides = array<i32>} : memref<128x384xf32, #tpu.memory_space<vmem>>, vector<1x384xf32>,
    %c0_488 = arith.constant 0 : index
    %c0_489 = arith.constant 0 : index
    %c119 = arith.constant 119 : index
    %407 = vector.load %arg3[%c0_488, %c0_489, %c119] : memref<1x1x512xf32, #tpu.memory_space<vmem>>, vector<1x1x384xf32>
    %408 = vector.shape_cast %407 : vector<1x1x384xf32> to vector<1x384xf32>
    %c119_490 = arith.constant 119 : index
    %c0_491 = arith.constant 0 : index
    %409 = vector.load %arg5[%c119_490, %c0_491] : memref<128x384xf32, #tpu.memory_space<vmem>>, vector<1x384xf32>
    tpu.vector_store %arg5[%c119_490, %c0_491], %408 {strides = array<i32>} : memref<128x384xf32, #tpu.memory_space<vmem>>, vector<1x384xf32>,
    %c0_492 = arith.constant 0 : index
    %c0_493 = arith.constant 0 : index
    %c120 = arith.constant 120 : index
    %410 = vector.load %arg3[%c0_492, %c0_493, %c120] : memref<1x1x512xf32, #tpu.memory_space<vmem>>, vector<1x1x384xf32>
    %411 = vector.shape_cast %410 : vector<1x1x384xf32> to vector<1x384xf32>
    %c120_494 = arith.constant 120 : index
    %c0_495 = arith.constant 0 : index
    %412 = vector.load %arg5[%c120_494, %c0_495] : memref<128x384xf32, #tpu.memory_space<vmem>>, vector<1x384xf32>
    tpu.vector_store %arg5[%c120_494, %c0_495], %411 {strides = array<i32>} : memref<128x384xf32, #tpu.memory_space<vmem>>, vector<1x384xf32>,
    %c0_496 = arith.constant 0 : index
    %c0_497 = arith.constant 0 : index
    %c121 = arith.constant 121 : index
    %413 = vector.load %arg3[%c0_496, %c0_497, %c121] : memref<1x1x512xf32, #tpu.memory_space<vmem>>, vector<1x1x384xf32>
    %414 = vector.shape_cast %413 : vector<1x1x384xf32> to vector<1x384xf32>
    %c121_498 = arith.constant 121 : index
    %c0_499 = arith.constant 0 : index
    %415 = vector.load %arg5[%c121_498, %c0_499] : memref<128x384xf32, #tpu.memory_space<vmem>>, vector<1x384xf32>
    tpu.vector_store %arg5[%c121_498, %c0_499], %414 {strides = array<i32>} : memref<128x384xf32, #tpu.memory_space<vmem>>, vector<1x384xf32>,
    %c0_500 = arith.constant 0 : index
    %c0_501 = arith.constant 0 : index
    %c122 = arith.constant 122 : index
    %416 = vector.load %arg3[%c0_500, %c0_501, %c122] : memref<1x1x512xf32, #tpu.memory_space<vmem>>, vector<1x1x384xf32>
    %417 = vector.shape_cast %416 : vector<1x1x384xf32> to vector<1x384xf32>
    %c122_502 = arith.constant 122 : index
    %c0_503 = arith.constant 0 : index
    %418 = vector.load %arg5[%c122_502, %c0_503] : memref<128x384xf32, #tpu.memory_space<vmem>>, vector<1x384xf32>
    tpu.vector_store %arg5[%c122_502, %c0_503], %417 {strides = array<i32>} : memref<128x384xf32, #tpu.memory_space<vmem>>, vector<1x384xf32>,
    %c0_504 = arith.constant 0 : index
    %c0_505 = arith.constant 0 : index
    %c123 = arith.constant 123 : index
    %419 = vector.load %arg3[%c0_504, %c0_505, %c123] : memref<1x1x512xf32, #tpu.memory_space<vmem>>, vector<1x1x384xf32>
    %420 = vector.shape_cast %419 : vector<1x1x384xf32> to vector<1x384xf32>
    %c123_506 = arith.constant 123 : index
    %c0_507 = arith.constant 0 : index
    %421 = vector.load %arg5[%c123_506, %c0_507] : memref<128x384xf32, #tpu.memory_space<vmem>>, vector<1x384xf32>
    tpu.vector_store %arg5[%c123_506, %c0_507], %420 {strides = array<i32>} : memref<128x384xf32, #tpu.memory_space<vmem>>, vector<1x384xf32>,
    %c0_508 = arith.constant 0 : index
    %c0_509 = arith.constant 0 : index
    %c124 = arith.constant 124 : index
    %422 = vector.load %arg3[%c0_508, %c0_509, %c124] : memref<1x1x512xf32, #tpu.memory_space<vmem>>, vector<1x1x384xf32>
    %423 = vector.shape_cast %422 : vector<1x1x384xf32> to vector<1x384xf32>
    %c124_510 = arith.constant 124 : index
    %c0_511 = arith.constant 0 : index
    %424 = vector.load %arg5[%c124_510, %c0_511] : memref<128x384xf32, #tpu.memory_space<vmem>>, vector<1x384xf32>
    tpu.vector_store %arg5[%c124_510, %c0_511], %423 {strides = array<i32>} : memref<128x384xf32, #tpu.memory_space<vmem>>, vector<1x384xf32>,
    %c0_512 = arith.constant 0 : index
    %c0_513 = arith.constant 0 : index
    %c125 = arith.constant 125 : index
    %425 = vector.load %arg3[%c0_512, %c0_513, %c125] : memref<1x1x512xf32, #tpu.memory_space<vmem>>, vector<1x1x384xf32>
    %426 = vector.shape_cast %425 : vector<1x1x384xf32> to vector<1x384xf32>
    %c125_514 = arith.constant 125 : index
    %c0_515 = arith.constant 0 : index
    %427 = vector.load %arg5[%c125_514, %c0_515] : memref<128x384xf32, #tpu.memory_space<vmem>>, vector<1x384xf32>
    tpu.vector_store %arg5[%c125_514, %c0_515], %426 {strides = array<i32>} : memref<128x384xf32, #tpu.memory_space<vmem>>, vector<1x384xf32>,
    %c0_516 = arith.constant 0 : index
    %c0_517 = arith.constant 0 : index
    %c126 = arith.constant 126 : index
    %428 = vector.load %arg3[%c0_516, %c0_517, %c126] : memref<1x1x512xf32, #tpu.memory_space<vmem>>, vector<1x1x384xf32>
    %429 = vector.shape_cast %428 : vector<1x1x384xf32> to vector<1x384xf32>
    %c126_518 = arith.constant 126 : index
    %c0_519 = arith.constant 0 : index
    %430 = vector.load %arg5[%c126_518, %c0_519] : memref<128x384xf32, #tpu.memory_space<vmem>>, vector<1x384xf32>
    tpu.vector_store %arg5[%c126_518, %c0_519], %429 {strides = array<i32>} : memref<128x384xf32, #tpu.memory_space<vmem>>, vector<1x384xf32>,
    %c0_520 = arith.constant 0 : index
    %c0_521 = arith.constant 0 : index
    %c127 = arith.constant 127 : index
    %431 = vector.load %arg3[%c0_520, %c0_521, %c127] : memref<1x1x512xf32, #tpu.memory_space<vmem>>, vector<1x1x384xf32>
    %432 = vector.shape_cast %431 : vector<1x1x384xf32> to vector<1x384xf32>
    %c127_522 = arith.constant 127 : index
    %c0_523 = arith.constant 0 : index
    %433 = vector.load %arg5[%c127_522, %c0_523] : memref<128x384xf32, #tpu.memory_space<vmem>>, vector<1x384xf32>
    tpu.vector_store %arg5[%c127_522, %c0_523], %432 {strides = array<i32>} : memref<128x384xf32, #tpu.memory_space<vmem>>, vector<1x384xf32>,
    %c0_524 = arith.constant 0 : index
    %c0_525 = arith.constant 0 : index
    %c0_526 = arith.constant 0 : index
    %c0_527 = arith.constant 0 : index
    %434 = vector.load %arg2[%c0_524, %c0_525, %c0_526, %c0_527] : memref<1x1x24x128xf32, #tpu.memory_space<vmem>>, vector<1x1x24x128xf32>
    %435 = vector.shape_cast %434 : vector<1x1x24x128xf32> to vector<24x128xf32>
    %c0_528 = arith.constant 0 : index
    %c0_529 = arith.constant 0 : index
    %436 = vector.load %arg5[%c0_528, %c0_529] : memref<128x384xf32, #tpu.memory_space<vmem>>, vector<128x384xf32>
    %cst_530 = arith.constant dense<0.000000e+00> : vector<24x384xf32>
    %437 = tpu.matmul %435, %436, %cst_530 {dimension_numbers = #tpu.dot_dimension_numbers<[1], [0], [0], [1], [0, 0, 1, 1], [], []>, precision = #tpu.contract_precision<fp32>} : vector<24x128xf32>, vector<128x384xf32>, vector<24x384xf32> -> vector<24x384xf32>
    %438 = arith.mulf %49, %437 : vector<24x384xf32>
    %cst_531 = arith.constant dense<0.000000e+00> : vector<384xf32>
    %439 = vector.multi_reduction <add>, %438, %cst_531 [0] : vector<24x384xf32> to vector<384xf32>
    %440 = vector.shape_cast %439 : vector<384xf32> to vector<1x384xf32>
    %c0_532 = arith.constant 0 : index
    %c0_533 = arith.constant 0 : index
    %c0_534 = arith.constant 0 : index
    %441 = vector.load %arg4[%c0_532, %c0_533, %c0_534] : memref<1x1x384xf32, #tpu.memory_space<vmem>>, vector<1x1x384xf32>
    %442 = vector.shape_cast %441 : vector<1x1x384xf32> to vector<1x384xf32>
    %443 = vector.shape_cast %440 : vector<1x384xf32> to vector<1x1x384xf32>
    tpu.vector_store %arg4[%c0_532, %c0_533, %c0_534], %443 {strides = array<i32>} : memref<1x1x384xf32, #tpu.memory_space<vmem>>, vector<1x1x384xf32>,
    return
  }
  func.func @transform_0(%arg0: i32, %arg1: i32) -> (i32, i32, i32, i32) {
    %c0_i32 = arith.constant 0 : i32
    %c0_i32_0 = arith.constant 0 : i32
    %c0_i32_1 = arith.constant 0 : i32
    return %arg0, %arg1, %c0_i32, %c0_i32_0 : i32, i32, i32, i32
  }
  func.func @transform_1(%arg0: i32, %arg1: i32) -> (i32, i32, i32) {
    %c0_i32 = arith.constant 0 : i32
    %c0_i32_0 = arith.constant 0 : i32
    return %arg0, %arg1, %c0_i32 : i32, i32, i32
  }
  func.func @transform_2(%arg0: i32, %arg1: i32) -> (i32, i32, i32) {
    %c0_i32 = arith.constant 0 : i32
    %c0_i32_0 = arith.constant 0 : i32
    return %arg0, %arg1, %c0_i32 : i32, i32, i32
  }
}

</mosaic_0001>

<llo_original>
// kernel: tpu_custom_call.1
$region0: #{tpu_custom_call.1}
  #allocation0 [shape = 'u32[]', space=smem, size = 0x4, offset = 0x4, fixed_abs, tag = 'smem constant byte address 0x4 - core index']
  #allocation1 [shape = 'u32[144,128]{1,0:T(1,128)}', space=vmem, size = 0x12000, scoped, tag = 'internal scratch']
  #allocation2 [shape = 'f32[128,384]{1,0:T(8,128)}', space=vmem, size = 0x30000, scoped, tag = 'scratch operand']
  %s0 = inlined_call_operand.hbm [shape: f32[2,1,24,128], index: 0, kind: input, shape index: {}]
  %s1 = inlined_call_operand.hbm [shape: f32[2,1,512], index: 1, kind: input, shape index: {}]
  %s2 = inlined_call_operand.hbm [shape: f32[2,1,384], index: 2, kind: output, shape index: {}]
  %s3 = sld [smem:[#allocation0]]
  $region49: #{tpu_custom_call.1} parent=0
    _
  %s5 = ssub.s32 1, %s3
  %s6 = scalar_select 0, %s5, %s3
  $region1: #{tpu_custom_call.1} parent=0
    #allocation3 [shape = 'u8[24576]{0}', space=vmem, size = 0x6000, scoped, tag = 'input window, operand 0']
    #allocation4 [shape = 's32[2]{0}', space=sflag, size = 0x8, scoped, tag = 'scoped memory for tpu_custom_call.1']
    #allocation5 [shape = 's32[2]{0}', space=sflag, size = 0x8, scoped, tag = 'scoped memory for tpu_custom_call.1']
    #allocation6 [shape = 'u8[4096]{0}', space=vmem, size = 0x1000, scoped, tag = 'input window, operand 1']
    #allocation7 [shape = 's32[2]{0}', space=sflag, size = 0x8, scoped, tag = 'scoped memory for tpu_custom_call.1']
    #allocation8 [shape = 'u8[3072]{0}', space=vmem, size = 0xc00, scoped, tag = 'output window, operand 0']
    %7 = vsyncpa [#allocation4], 0
    %s8 = scalar_lea.sflag [#allocation4], 1
    %9 = vsyncpa %s8, 0
    %10 = vsyncpa [#allocation7], 0
    %s11 = scalar_lea.sflag [#allocation7], 1
    %12 = vsyncpa %s11, 0
    %13 = vsyncpa [#allocation5], 0
    %s14 = scalar_lea.sflag [#allocation5], 1
    %15 = vsyncpa %s14, 0
    loop: start=0, step=1, limit=4
    $region2: #{tpu_custom_call.1} parent=1 // loop_pre_header
      _
    $region3: #{tpu_custom_call.1} parent=1 // loop_header
      %s17 = sphi 0, %s21
      %p18 = scmp.ge.s32.totalorder %s17, 4
      %s24 = sphi 0, %s36
      %s25 = sphi 0, %s32
      %s26 = sphi 0, %s24
      %s27 = sphi 0, %s25
      %s28 = sphi 0, %s26
      %s29 = sphi 0, %s27
      %s41 = sphi 0, %s43
      %s44 = sphi 0, %s41
      %s45 = sphi 0, %s44
      %s61 = sphi 0, %s45
      %s69 = sphi 0, %s71
      %s72 = sphi 0, %s69
      %s73 = sphi 0, %s72
      %s89 = sphi 0, %s73
      %s97 = sphi 0, %s99
      %s100 = sphi 0, %s97
      %s101 = sphi 0, %s100
      %s117 = sphi 0, %s101
    $region4: #{tpu_custom_call.1} parent=1 // loop_header_branch
      %20 = sbr.rel (%p18) target = $region8
    $region5: #{tpu_custom_call.1} parent=1 // loop_body
      %s22 = ssub.s32 %s17, 1
      %s23 = ssub.s32 %s17, 2
      %s30 = sadd.s32 1, %s25
      %p31 = scmp.ge.s32.totalorder %s30, 1
      %s32 = scalar_select %p31, 0, %s30
      %s33 = sadd.s32 1, %s24
      %s34 = scalar_select %p31, %s33, %s24
      %p35 = scmp.ge.s32.totalorder %s34, 2
      %s36 = scalar_select %p35, 0, %s34
      %s37 = ssub.s32 %s24, %s36
      %s38 = ssub.s32 %s25, %s32
      %s39 = sor.u32 %s37, %s38
      %p40 = scmp.eq.s32.totalorder %s39, 0
      %s42 = sadd.s32 %s41, 1
      %s43 = scalar_select %p40, %s41, %s42
      %p46 = pneg %p40
      %p47 = scmp.eq.s32.totalorder %s17, 1
      %p48 = por %p46, %p47
      %p49 = scmp.ne.s32.totalorder %s41, %s44
      %p50 = scmp.eq.s32.totalorder %s17, 0
      %p51 = por %p49, %p50
      %p52 = scmp.ne.s32.totalorder %s41, %s44
      %p53 = scmp.eq.s32.totalorder %s22, 1
      %p54 = por %p52, %p53
      %p55 = scmp.ne.s32.totalorder %s44, %s45
      %p56 = scmp.eq.s32.totalorder %s22, 0
      %p57 = por %p55, %p56
      %p58 = scmp.ne.s32.totalorder %s44, %s45
      %p59 = scmp.eq.s32.totalorder %s23, 1
      %p60 = por %p58, %p59
      %p62 = scmp.ne.s32.totalorder %s45, %s61
      %p63 = scmp.eq.s32.totalorder %s23, 0
      %p64 = por %p62, %p63
      %s65 = ssub.s32 %s24, %s36
      %s66 = ssub.s32 %s25, %s32
      %s67 = sor.u32 %s65, %s66
      %p68 = scmp.eq.s32.totalorder %s67, 0
      %s70 = sadd.s32 %s69, 1
      %s71 = scalar_select %p68, %s69, %s70
      %p74 = pneg %p68
      %p75 = scmp.eq.s32.totalorder %s17, 1
      %p76 = por %p74, %p75
      %p77 = scmp.ne.s32.totalorder %s69, %s72
      %p78 = scmp.eq.s32.totalorder %s17, 0
      %p79 = por %p77, %p78
      %p80 = scmp.ne.s32.totalorder %s69, %s72
      %p81 = scmp.eq.s32.totalorder %s22, 1
      %p82 = por %p80, %p81
      %p83 = scmp.ne.s32.totalorder %s72, %s73
      %p84 = scmp.eq.s32.totalorder %s22, 0
      %p85 = por %p83, %p84
      %p86 = scmp.ne.s32.totalorder %s72, %s73
      %p87 = scmp.eq.s32.totalorder %s23, 1
      %p88 = por %p86, %p87
      %p90 = scmp.ne.s32.totalorder %s73, %s89
      %p91 = scmp.eq.s32.totalorder %s23, 0
      %p92 = por %p90, %p91
      %s93 = ssub.s32 %s24, %s36
      %s94 = ssub.s32 %s25, %s32
      %s95 = sor.u32 %s93, %s94
      %p96 = scmp.eq.s32.totalorder %s95, 0
      %s98 = sadd.s32 %s97, 1
      %s99 = scalar_select %p96, %s97, %s98
      %p102 = pneg %p96
      %p103 = scmp.eq.s32.totalorder %s17, 1
      %p104 = por %p102, %p103
      %p105 = scmp.ne.s32.totalorder %s97, %s100
      %p106 = scmp.eq.s32.totalorder %s17, 0
      %p107 = por %p105, %p106
      %p108 = scmp.ne.s32.totalorder %s97, %s100
      %p109 = scmp.eq.s32.totalorder %s22, 1
      %p110 = por %p108, %p109
      %p111 = scmp.ne.s32.totalorder %s100, %s101
      %p112 = scmp.eq.s32.totalorder %s22, 0
      %p113 = por %p111, %p112
      %p114 = scmp.ne.s32.totalorder %s100, %s101
      %p115 = scmp.eq.s32.totalorder %s23, 1
      %p116 = por %p114, %p115
      %p118 = scmp.ne.s32.totalorder %s101, %s117
      %p119 = scmp.eq.s32.totalorder %s23, 0
      %p120 = por %p118, %p119
      %p121 = scmp.le.s32.totalorder 1, %s17
      %p122 = scmp.lt.s32.totalorder %s17, 3
      %p123 = pnand %p121, %p122
      %p124 = pneg %p123
      // Predicated region
      $region9: #{tpu_custom_call.1} parent=5 // pred_check
        _
      $region10: #{tpu_custom_call.1} parent=5 // pred_check_branch
        %126 = sbr.rel (%p123) target = $region12
      $region11: #{tpu_custom_call.1} parent=5 // pred_region
        %s127 = ssub.s32 %s17, 1
      $region12: #{tpu_custom_call.1} parent=5 // pred_fallthru
        _
      %p128 = scmp.lt.s32.totalorder %s17, 2
      // Predicated region
      $region13: #{tpu_custom_call.1} parent=5 // pred_check
        %p129 = pneg %p128
      $region14: #{tpu_custom_call.1} parent=5 // pred_check_branch
        %131 = sbr.rel (%p129) target = $region16
      $region15: #{tpu_custom_call.1} parent=5 // pred_region
        // Predicated region
        $region17: #{tpu_custom_call.1} parent=15 // pred_check
          %p132 = pneg %p51
        $region18: #{tpu_custom_call.1} parent=15 // pred_check_branch
          %134 = sbr.rel (%p132) target = $region20
        $region19: #{tpu_custom_call.1} parent=15 // pred_region
          %s135 = sand.u32 %s41, 1
          %s136 = scalar_lea.sflag [#allocation4], %s135
          %s137 = sand.u32 %s41, 1
          %s138 = smul.addr %s137, 24
          %s139 = scalar_lea.vmem [#allocation3], %s138
          %s141 = ssub.s32 384, 384
          %142 = vsyncadd %s136, %s141
          %s143 = smul.addr %s25, 3
          %s144 = smul.addr %s24, 3
          %s145 = sadd.s32 %s143, %s144
          %s146 = smul.addr %s145, 128
          %s147 = scalar_lea.hbm %s0, %s146
          %s148 = sshll.u32 %s139, 4
          %s149 = int_to_ptr.vmem [resolvable:$true] %s148
          %154 = dma.hbm_to_vmem [thread:$0]  %s147, 384, %s149, %s136, 128, 128, 8
        $region20: #{tpu_custom_call.1} parent=15 // pred_fallthru
          _
        // Predicated region
        $region21: #{tpu_custom_call.1} parent=15 // pred_check
          %p155 = pneg %p79
        $region22: #{tpu_custom_call.1} parent=15 // pred_check_branch
          %157 = sbr.rel (%p155) target = $region24
        $region23: #{tpu_custom_call.1} parent=15 // pred_region
          %s158 = sand.u32 %s69, 1
          %s159 = scalar_lea.sflag [#allocation7], %s158
          %s160 = sand.u32 %s69, 1
          %s161 = smul.addr %s160, 4
          %s162 = scalar_lea.vmem [#allocation6], %s161
          %s164 = ssub.s32 64, 64
          %165 = vsyncadd %s159, %s164
          %s166 = smul.addr %s25, 4
          %s167 = smul.addr %s24, 4
          %s168 = sadd.s32 %s166, %s167
          %s169 = smul.addr %s168, 16
          %s170 = scalar_lea.hbm %s1, %s169
          %s172 = sshll.u32 %s162, 4
          %s173 = int_to_ptr.vmem [resolvable:$true] %s172
          %175 = dma.hbm_to_vmem [thread:$0]  %s170, 64, %s173, %s159
        $region24: #{tpu_custom_call.1} parent=15 // pred_fallthru
          _
      $region16: #{tpu_custom_call.1} parent=5 // pred_fallthru
        _
      %p176 = scmp.le.s32.totalorder 1, %s17
      %p177 = scmp.lt.s32.totalorder %s17, 3
      %p178 = pnand %p176, %p177
      %p179 = pneg %p178
      // Predicated region
      $region25: #{tpu_custom_call.1} parent=5 // pred_check
        _
      $region26: #{tpu_custom_call.1} parent=5 // pred_check_branch
        %181 = sbr.rel (%p178) target = $region28
      $region27: #{tpu_custom_call.1} parent=5 // pred_region
        %s182 = ssub.s32 %s17, 1
        %s183 = sand.u32 %s44, 1
        %s184 = scalar_lea.sflag [#allocation4], %s183
        %s185 = sand.u32 %s44, 1
        %s186 = smul.addr %s185, 24
        %s187 = scalar_lea.vmem [#allocation3], %s186
        // Predicated region
        $region29: #{tpu_custom_call.1} parent=27 // pred_check
          %p188 = pneg %p57
        $region30: #{tpu_custom_call.1} parent=27 // pred_check_branch
          %190 = sbr.rel (%p188) target = $region32
        $region31: #{tpu_custom_call.1} parent=27 // pred_region
          %191 = dma.done %s184, 384
        $region32: #{tpu_custom_call.1} parent=27 // pred_fallthru
          _
        %s192 = sand.u32 %s72, 1
        %s193 = scalar_lea.sflag [#allocation7], %s192
        %s194 = sand.u32 %s72, 1
        %s195 = smul.addr %s194, 4
        %s196 = scalar_lea.vmem [#allocation6], %s195
        // Predicated region
        $region33: #{tpu_custom_call.1} parent=27 // pred_check
          %p197 = pneg %p85
        $region34: #{tpu_custom_call.1} parent=27 // pred_check_branch
          %199 = sbr.rel (%p197) target = $region36
        $region35: #{tpu_custom_call.1} parent=27 // pred_region
          %200 = dma.done %s193, 64
        $region36: #{tpu_custom_call.1} parent=27 // pred_fallthru
          _
        %s201 = sand.u32 %s44, 1
        %s202 = scalar_lea.sflag [#allocation4], %s201
        %s203 = sand.u32 %s44, 1
        %s204 = smul.addr %s203, 24
        %s205 = scalar_lea.vmem [#allocation3], %s204
        %p206 = pneg %p57
        %p207 = pneg %p54
        %s208 = sand.u32 %s72, 1
        %s209 = scalar_lea.sflag [#allocation7], %s208
        %s210 = sand.u32 %s72, 1
        %s211 = smul.addr %s210, 4
        %s212 = scalar_lea.vmem [#allocation6], %s211
        %p213 = pneg %p85
        %p214 = pneg %p82
        %p215 = pneg %p113
        %p216 = pneg %p110
        %s217 = sand.u32 %s100, 1
        %s218 = scalar_lea.sflag [#allocation5], %s217
        %s219 = sand.u32 %s100, 1
        %s220 = smul.addr %s219, 3
        %s221 = scalar_lea.vmem [#allocation8], %s220
        %s222 = smul.u32 %s27, 24
        %s223 = ssub.s32 %s222, 1
        %p224 = scmp.gt.s32.totalorder %s223, 0
        %s225 = scalar_select %p224, %s223, 0
        %p226 = scmp.lt.s32.totalorder %s225, 0
        %s227 = scalar_select %p226, %s225, 0
        %v228 = vlaneseq
        %v229 = vand.u32 %v228, 127
        %v230 = vadd.s32 %v229, 128
        %v231 = vadd.s32 %v229, 256
        %v232 = vcvt.s32.f32 %v229
        %v233 = vcvt.s32.f32 %v230
        %v234 = vcvt.s32.f32 %v231
        %v235 = vadd.f32 %v232, 0.5
        %v236 = vadd.f32 %v233, 0.5
        %v237 = vadd.f32 %v234, 0.5
        %v238 = vrcp.pop 16.0
        %v239 = vmul.f32 %v235, %v238
        %v240 = vmul.f32 %v236, %v238
        %v241 = vmul.f32 %v237, %v238
        %v242 = vsub.f32 %v239, 0.5
        %v243 = vsub.f32 %v240, 0.5
        %v244 = vsub.f32 %v241, 0.5
        %v245 = vfloor.f32 %v242
        %v246 = vfloor.f32 %v243
        %v247 = vfloor.f32 %v244
        %v248 = vsub.f32 %v242, %v245
        %v249 = vsub.f32 %v243, %v246
        %v250 = vsub.f32 %v244, %v247
        %v251 = vcvt.f32.s32.to.zero.pseudo %v245
        %v252 = vcvt.f32.s32.to.zero.pseudo %v246
        %v253 = vcvt.f32.s32.to.zero.pseudo %v247
        %v254 = vstv %s222
        %v255 = vadd.s32 %v254, %v251
        %v256 = vadd.s32 %v254, %v252
        %v257 = vadd.s32 %v254, %v253
        %vm258 = vcmp.lt.s32.totalorder %v255, 0
        %vm259 = vcmp.lt.s32.totalorder %v256, 0
        %vm260 = vcmp.lt.s32.totalorder %v257, 0
        %v261 = vsel %vm258, 0, %v255
        %v262 = vsel %vm259, 0, %v256
        %v263 = vsel %vm260, 0, %v257
        %v264 = vsel %vm258, 0.0, %v248
        %v265 = vsel %vm259, 0.0, %v249
        %v266 = vsel %vm260, 0.0, %v250
        %vm267 = vcmp.lt.s32.totalorder %v261, 23
        %v268 = vsel %vm267, %v261, 23
        %vm269 = vcmp.lt.s32.totalorder %v262, 23
        %v270 = vsel %vm269, %v262, 23
        %vm271 = vcmp.lt.s32.totalorder %v263, 23
        %v272 = vsel %vm271, %v263, 23
        %v273 = vadd.s32 %v268, 1
        %v274 = vadd.s32 %v270, 1
        %v275 = vadd.s32 %v272, 1
        %vm276 = vcmp.lt.s32.totalorder %v273, 23
        %v277 = vsel %vm276, %v273, 23
        %vm278 = vcmp.lt.s32.totalorder %v274, 23
        %v279 = vsel %vm278, %v274, 23
        %vm280 = vcmp.lt.s32.totalorder %v275, 23
        %v281 = vsel %vm280, %v275, 23
        %v282 = vsub.f32 1.0, %v264
        %v283 = vsub.f32 1.0, %v265
        %v284 = vsub.f32 1.0, %v266
        %v285 = vstv %s227
        %v286 = vsub.s32 %v268, %v285
        %v287 = vsub.s32 %v270, %v285
        %v288 = vsub.s32 %v272, %v285
        %v289 = vsub.s32 %v277, %v285
        %v290 = vsub.s32 %v279, %v285
        %v291 = vsub.s32 %v281, %v285
        %v292 = vlaneseq
        %v293 = vshrl.u32 %v292, 7
        %v294 = vadd.s32 %v293, 8
        %v295 = vadd.s32 %v293, 16
        %vm296 = vcmp.eq.s32.totalorder %v293, %v286
        %vm297 = vcmp.eq.s32.totalorder %v293, %v287
        %vm298 = vcmp.eq.s32.totalorder %v293, %v288
        %vm299 = vcmp.eq.s32.totalorder %v294, %v286
        %vm300 = vcmp.eq.s32.totalorder %v294, %v287
        %vm301 = vcmp.eq.s32.totalorder %v294, %v288
        %vm302 = vcmp.eq.s32.totalorder %v295, %v286
        %vm303 = vcmp.eq.s32.totalorder %v295, %v287
        %vm304 = vcmp.eq.s32.totalorder %v295, %v288
        %v305 = vsel %vm296, %v282, 0.0
        %v306 = vsel %vm297, %v283, 0.0
        %v307 = vsel %vm298, %v284, 0.0
        %v308 = vsel %vm299, %v282, 0.0
        %v309 = vsel %vm300, %v283, 0.0
        %v310 = vsel %vm301, %v284, 0.0
        %v311 = vsel %vm302, %v282, 0.0
        %v312 = vsel %vm303, %v283, 0.0
        %v313 = vsel %vm304, %v284, 0.0
        %vm314 = vcmp.eq.s32.totalorder %v293, %v289
        %vm315 = vcmp.eq.s32.totalorder %v293, %v290
        %vm316 = vcmp.eq.s32.totalorder %v293, %v291
        %vm317 = vcmp.eq.s32.totalorder %v294, %v289
        %vm318 = vcmp.eq.s32.totalorder %v294, %v290
        %vm319 = vcmp.eq.s32.totalorder %v294, %v291
        %vm320 = vcmp.eq.s32.totalorder %v295, %v289
        %vm321 = vcmp.eq.s32.totalorder %v295, %v290
        %vm322 = vcmp.eq.s32.totalorder %v295, %v291
        %v323 = vsel %vm314, %v264, 0.0
        %v324 = vsel %vm315, %v265, 0.0
        %v325 = vsel %vm316, %v266, 0.0
        %v326 = vsel %vm317, %v264, 0.0
        %v327 = vsel %vm318, %v265, 0.0
        %v328 = vsel %vm319, %v266, 0.0
        %v329 = vsel %vm320, %v264, 0.0
        %v330 = vsel %vm321, %v265, 0.0
        %v331 = vsel %vm322, %v266, 0.0
        %v332 = vadd.f32 %v305, %v323
        %v333 = vadd.f32 %v306, %v324
        %v334 = vadd.f32 %v307, %v325
        %v335 = vadd.f32 %v308, %v326
        %v336 = vadd.f32 %v309, %v327
        %v337 = vadd.f32 %v310, %v328
        %v338 = vadd.f32 %v311, %v329
        %v339 = vadd.f32 %v312, %v330
        %v340 = vadd.f32 %v313, %v331
        %v341 = vld [vmem:[%s196] sm:$0x7]
        %v342 = vlaneseq
        %vm343 = vcmp.ge.s32.totalorder %v342, 0
        %vm344 = vcmp.lt.s32.totalorder %v342, 384
        %vm345 = vmand %vm343, %vm344
        %346 = vst.msk [vmem:[#allocation2] ss:$8 sm:$0x7] %vm345, %v341
        %347 = vst.msk [vmem:[#allocation2] ss:$8 sm:$0x0] %vm345, %v341
        %v348 = vld [vmem:[%s196] sm:$0xf]
        %350 = vrot.lane.b32.xlu0 %v348, 127
        %v351 = vpop.permute.xlu0 %350
        %v352 = vrot.slane %v351, 1
        %vm353 = vcmask 1039360
        %v354 = vsel %vm353, %v351, %v352
        %s356 = scalar_lea.vmem [#allocation2], 1
        %357 = vst.msk [vmem:[%s356] ss:$8 sm:$0x7] %vm345, %v354
        %358 = vst.msk [vmem:[%s356] ss:$8 sm:$0x0] %vm345, %v354
        %v359 = vld [vmem:[%s196] sm:$0xf]
        %361 = vrot.lane.b32.xlu0 %v359, 126
        %v362 = vpop.permute.xlu0 %361
        %v363 = vrot.slane %v362, 1
        %vm364 = vcmask 1031168
        %v365 = vsel %vm364, %v362, %v363
        %s367 = scalar_lea.vmem [#allocation2], 2
        %368 = vst.msk [vmem:[%s367] ss:$8 sm:$0x7] %vm345, %v365
        %369 = vst.msk [vmem:[%s367] ss:$8 sm:$0x0] %vm345, %v365
        %v370 = vld [vmem:[%s196] sm:$0xf]
        %372 = vrot.lane.b32.xlu0 %v370, 125
        %v373 = vpop.permute.xlu0 %372
        %v374 = vrot.slane %v373, 1
        %vm375 = vcmask 1022976
        %v376 = vsel %vm375, %v373, %v374
        %s378 = scalar_lea.vmem [#allocation2], 3
        %379 = vst.msk [vmem:[%s378] ss:$8 sm:$0x7] %vm345, %v376
        %380 = vst.msk [vmem:[%s378] ss:$8 sm:$0x0] %vm345, %v376
        %v381 = vld [vmem:[%s196] sm:$0xf]
        %383 = vrot.lane.b32.xlu0 %v381, 124
        %v384 = vpop.permute.xlu0 %383
        %v385 = vrot.slane %v384, 1
        %vm386 = vcmask 1014784
        %v387 = vsel %vm386, %v384, %v385
        %s389 = scalar_lea.vmem [#allocation2], 4
        %390 = vst.msk [vmem:[%s389] ss:$8 sm:$0x7] %vm345, %v387
        %391 = vst.msk [vmem:[%s389] ss:$8 sm:$0x0] %vm345, %v387
        %v392 = vld [vmem:[%s196] sm:$0xf]
        %394 = vrot.lane.b32.xlu0 %v392, 123
        %v395 = vpop.permute.xlu0 %394
        %v396 = vrot.slane %v395, 1
        %vm397 = vcmask 1006592
        %v398 = vsel %vm397, %v395, %v396
        %s400 = scalar_lea.vmem [#allocation2], 5
        %401 = vst.msk [vmem:[%s400] ss:$8 sm:$0x7] %vm345, %v398
        %402 = vst.msk [vmem:[%s400] ss:$8 sm:$0x0] %vm345, %v398
        %v403 = vld [vmem:[%s196] sm:$0xf]
        %405 = vrot.lane.b32.xlu0 %v403, 122
        %v406 = vpop.permute.xlu0 %405
        %v407 = vrot.slane %v406, 1
        %vm408 = vcmask 998400
        %v409 = vsel %vm408, %v406, %v407
        %s411 = scalar_lea.vmem [#allocation2], 6
        %412 = vst.msk [vmem:[%s411] ss:$8 sm:$0x7] %vm345, %v409
        %413 = vst.msk [vmem:[%s411] ss:$8 sm:$0x0] %vm345, %v409
        %v414 = vld [vmem:[%s196] sm:$0xf]
        %416 = vrot.lane.b32.xlu0 %v414, 121
        %v417 = vpop.permute.xlu0 %416
        %v418 = vrot.slane %v417, 1
        %vm419 = vcmask 990208
        %v420 = vsel %vm419, %v417, %v418
        %s422 = scalar_lea.vmem [#allocation2], 7
        %423 = vst.msk [vmem:[%s422] ss:$8 sm:$0x7] %vm345, %v420
        %424 = vst.msk [vmem:[%s422] ss:$8 sm:$0x0] %vm345, %v420
        %v425 = vld [vmem:[%s196] sm:$0xf]
        %427 = vrot.lane.b32.xlu0 %v425, 120
        %v428 = vpop.permute.xlu0 %427
        %v429 = vrot.slane %v428, 1
        %vm430 = vcmask 982016
        %v431 = vsel %vm430, %v428, %v429
        %s433 = scalar_lea.vmem [#allocation2], 24
        %434 = vst.msk [vmem:[%s433] ss:$8 sm:$0x7] %vm345, %v431
        %435 = vst.msk [vmem:[%s433] ss:$8 sm:$0x0] %vm345, %v431
        %v436 = vld [vmem:[%s196] sm:$0xf]
        %438 = vrot.lane.b32.xlu0 %v436, 119
        %v439 = vpop.permute.xlu0 %438
        %v440 = vrot.slane %v439, 1
        %vm441 = vcmask 973824
        %v442 = vsel %vm441, %v439, %v440
        %s444 = scalar_lea.vmem [#allocation2], 25
        %445 = vst.msk [vmem:[%s444] ss:$8 sm:$0x7] %vm345, %v442
        %446 = vst.msk [vmem:[%s444] ss:$8 sm:$0x0] %vm345, %v442
        %v447 = vld [vmem:[%s196] sm:$0xf]
        %449 = vrot.lane.b32.xlu0 %v447, 118
        %v450 = vpop.permute.xlu0 %449
        %v451 = vrot.slane %v450, 1
        %vm452 = vcmask 965632
        %v453 = vsel %vm452, %v450, %v451
        %s455 = scalar_lea.vmem [#allocation2], 26
        %456 = vst.msk [vmem:[%s455] ss:$8 sm:$0x7] %vm345, %v453
        %457 = vst.msk [vmem:[%s455] ss:$8 sm:$0x0] %vm345, %v453
        %v458 = vld [vmem:[%s196] sm:$0xf]
        %460 = vrot.lane.b32.xlu0 %v458, 117
        %v461 = vpop.permute.xlu0 %460
        %v462 = vrot.slane %v461, 1
        %vm463 = vcmask 957440
        %v464 = vsel %vm463, %v461, %v462
        %s466 = scalar_lea.vmem [#allocation2], 27
        %467 = vst.msk [vmem:[%s466] ss:$8 sm:$0x7] %vm345, %v464
        %468 = vst.msk [vmem:[%s466] ss:$8 sm:$0x0] %vm345, %v464
        %v469 = vld [vmem:[%s196] sm:$0xf]
        %471 = vrot.lane.b32.xlu0 %v469, 116
        %v472 = vpop.permute.xlu0 %471
        %v473 = vrot.slane %v472, 1
        %vm474 = vcmask 949248
        %v475 = vsel %vm474, %v472, %v473
        %s477 = scalar_lea.vmem [#allocation2], 28
        %478 = vst.msk [vmem:[%s477] ss:$8 sm:$0x7] %vm345, %v475
        %479 = vst.msk [vmem:[%s477] ss:$8 sm:$0x0] %vm345, %v475
        %v480 = vld [vmem:[%s196] sm:$0xf]
        %482 = vrot.lane.b32.xlu0 %v480, 115
        %v483 = vpop.permute.xlu0 %482
        %v484 = vrot.slane %v483, 1
        %vm485 = vcmask 941056
        %v486 = vsel %vm485, %v483, %v484
        %s488 = scalar_lea.vmem [#allocation2], 29
        %489 = vst.msk [vmem:[%s488] ss:$8 sm:$0x7] %vm345, %v486
        %490 = vst.msk [vmem:[%s488] ss:$8 sm:$0x0] %vm345, %v486
        %v491 = vld [vmem:[%s196] sm:$0xf]
        %493 = vrot.lane.b32.xlu0 %v491, 114
        %v494 = vpop.permute.xlu0 %493
        %v495 = vrot.slane %v494, 1
        %vm496 = vcmask 932864
        %v497 = vsel %vm496, %v494, %v495
        %s499 = scalar_lea.vmem [#allocation2], 30
        %500 = vst.msk [vmem:[%s499] ss:$8 sm:$0x7] %vm345, %v497
        %501 = vst.msk [vmem:[%s499] ss:$8 sm:$0x0] %vm345, %v497
        %v502 = vld [vmem:[%s196] sm:$0xf]
        %504 = vrot.lane.b32.xlu0 %v502, 113
        %v505 = vpop.permute.xlu0 %504
        %v506 = vrot.slane %v505, 1
        %vm507 = vcmask 924672
        %v508 = vsel %vm507, %v505, %v506
        %s510 = scalar_lea.vmem [#allocation2], 31
        %511 = vst.msk [vmem:[%s510] ss:$8 sm:$0x7] %vm345, %v508
        %512 = vst.msk [vmem:[%s510] ss:$8 sm:$0x0] %vm345, %v508
        %v513 = vld [vmem:[%s196] sm:$0xf]
        %515 = vrot.lane.b32.xlu0 %v513, 112
        %v516 = vpop.permute.xlu0 %515
        %v517 = vrot.slane %v516, 1
        %vm518 = vcmask 916480
        %v519 = vsel %vm518, %v516, %v517
        %s521 = scalar_lea.vmem [#allocation2], 48
        %522 = vst.msk [vmem:[%s521] ss:$8 sm:$0x7] %vm345, %v519
        %523 = vst.msk [vmem:[%s521] ss:$8 sm:$0x0] %vm345, %v519
        %v524 = vld [vmem:[%s196] sm:$0xf]
        %526 = vrot.lane.b32.xlu0 %v524, 111
        %v527 = vpop.permute.xlu0 %526
        %v528 = vrot.slane %v527, 1
        %vm529 = vcmask 908288
        %v530 = vsel %vm529, %v527, %v528
        %s532 = scalar_lea.vmem [#allocation2], 49
        %533 = vst.msk [vmem:[%s532] ss:$8 sm:$0x7] %vm345, %v530
        %534 = vst.msk [vmem:[%s532] ss:$8 sm:$0x0] %vm345, %v530
        %v535 = vld [vmem:[%s196] sm:$0xf]
        %537 = vrot.lane.b32.xlu0 %v535, 110
        %v538 = vpop.permute.xlu0 %537
        %v539 = vrot.slane %v538, 1
        %vm540 = vcmask 900096
        %v541 = vsel %vm540, %v538, %v539
        %s543 = scalar_lea.vmem [#allocation2], 50
        %544 = vst.msk [vmem:[%s543] ss:$8 sm:$0x7] %vm345, %v541
        %545 = vst.msk [vmem:[%s543] ss:$8 sm:$0x0] %vm345, %v541
        %v546 = vld [vmem:[%s196] sm:$0xf]
        %548 = vrot.lane.b32.xlu0 %v546, 109
        %v549 = vpop.permute.xlu0 %548
        %v550 = vrot.slane %v549, 1
        %vm551 = vcmask 891904
        %v552 = vsel %vm551, %v549, %v550
        %s554 = scalar_lea.vmem [#allocation2], 51
        %555 = vst.msk [vmem:[%s554] ss:$8 sm:$0x7] %vm345, %v552
        %556 = vst.msk [vmem:[%s554] ss:$8 sm:$0x0] %vm345, %v552
        %v557 = vld [vmem:[%s196] sm:$0xf]
        %559 = vrot.lane.b32.xlu0 %v557, 108
        %v560 = vpop.permute.xlu0 %559
        %v561 = vrot.slane %v560, 1
        %vm562 = vcmask 883712
        %v563 = vsel %vm562, %v560, %v561
        %s565 = scalar_lea.vmem [#allocation2], 52
        %566 = vst.msk [vmem:[%s565] ss:$8 sm:$0x7] %vm345, %v563
        %567 = vst.msk [vmem:[%s565] ss:$8 sm:$0x0] %vm345, %v563
        %v568 = vld [vmem:[%s196] sm:$0xf]
        %570 = vrot.lane.b32.xlu0 %v568, 107
        %v571 = vpop.permute.xlu0 %570
        %v572 = vrot.slane %v571, 1
        %vm573 = vcmask 875520
        %v574 = vsel %vm573, %v571, %v572
        %s576 = scalar_lea.vmem [#allocation2], 53
        %577 = vst.msk [vmem:[%s576] ss:$8 sm:$0x7] %vm345, %v574
        %578 = vst.msk [vmem:[%s576] ss:$8 sm:$0x0] %vm345, %v574
        %v579 = vld [vmem:[%s196] sm:$0xf]
        %581 = vrot.lane.b32.xlu0 %v579, 106
        %v582 = vpop.permute.xlu0 %581
        %v583 = vrot.slane %v582, 1
        %vm584 = vcmask 867328
        %v585 = vsel %vm584, %v582, %v583
        %s587 = scalar_lea.vmem [#allocation2], 54
        %588 = vst.msk [vmem:[%s587] ss:$8 sm:$0x7] %vm345, %v585
        %589 = vst.msk [vmem:[%s587] ss:$8 sm:$0x0] %vm345, %v585
        %v590 = vld [vmem:[%s196] sm:$0xf]
        %592 = vrot.lane.b32.xlu0 %v590, 105
        %v593 = vpop.permute.xlu0 %592
        %v594 = vrot.slane %v593, 1
        %vm595 = vcmask 859136
        %v596 = vsel %vm595, %v593, %v594
        %s598 = scalar_lea.vmem [#allocation2], 55
        %599 = vst.msk [vmem:[%s598] ss:$8 sm:$0x7] %vm345, %v596
        %600 = vst.msk [vmem:[%s598] ss:$8 sm:$0x0] %vm345, %v596
        %v601 = vld [vmem:[%s196] sm:$0xf]
        %603 = vrot.lane.b32.xlu0 %v601, 104
        %v604 = vpop.permute.xlu0 %603
        %v605 = vrot.slane %v604, 1
        %vm606 = vcmask 850944
        %v607 = vsel %vm606, %v604, %v605
        %s609 = scalar_lea.vmem [#allocation2], 72
        %610 = vst.msk [vmem:[%s609] ss:$8 sm:$0x7] %vm345, %v607
        %611 = vst.msk [vmem:[%s609] ss:$8 sm:$0x0] %vm345, %v607
        %v612 = vld [vmem:[%s196] sm:$0xf]
        %614 = vrot.lane.b32.xlu0 %v612, 103
        %v615 = vpop.permute.xlu0 %614
        %v616 = vrot.slane %v615, 1
        %vm617 = vcmask 842752
        %v618 = vsel %vm617, %v615, %v616
        %s620 = scalar_lea.vmem [#allocation2], 73
        %621 = vst.msk [vmem:[%s620] ss:$8 sm:$0x7] %vm345, %v618
        %622 = vst.msk [vmem:[%s620] ss:$8 sm:$0x0] %vm345, %v618
        %v623 = vld [vmem:[%s196] sm:$0xf]
        %625 = vrot.lane.b32.xlu0 %v623, 102
        %v626 = vpop.permute.xlu0 %625
        %v627 = vrot.slane %v626, 1
        %vm628 = vcmask 834560
        %v629 = vsel %vm628, %v626, %v627
        %s631 = scalar_lea.vmem [#allocation2], 74
        %632 = vst.msk [vmem:[%s631] ss:$8 sm:$0x7] %vm345, %v629
        %633 = vst.msk [vmem:[%s631] ss:$8 sm:$0x0] %vm345, %v629
        %v634 = vld [vmem:[%s196] sm:$0xf]
        %636 = vrot.lane.b32.xlu0 %v634, 101
        %v637 = vpop.permute.xlu0 %636
        %v638 = vrot.slane %v637, 1
        %vm639 = vcmask 826368
        %v640 = vsel %vm639, %v637, %v638
        %s642 = scalar_lea.vmem [#allocation2], 75
        %643 = vst.msk [vmem:[%s642] ss:$8 sm:$0x7] %vm345, %v640
        %644 = vst.msk [vmem:[%s642] ss:$8 sm:$0x0] %vm345, %v640
        %v645 = vld [vmem:[%s196] sm:$0xf]
        %647 = vrot.lane.b32.xlu0 %v645, 100
        %v648 = vpop.permute.xlu0 %647
        %v649 = vrot.slane %v648, 1
        %vm650 = vcmask 818176
        %v651 = vsel %vm650, %v648, %v649
        %s653 = scalar_lea.vmem [#allocation2], 76
        %654 = vst.msk [vmem:[%s653] ss:$8 sm:$0x7] %vm345, %v651
        %655 = vst.msk [vmem:[%s653] ss:$8 sm:$0x0] %vm345, %v651
        %v656 = vld [vmem:[%s196] sm:$0xf]
        %658 = vrot.lane.b32.xlu0 %v656, 99
        %v659 = vpop.permute.xlu0 %658
        %v660 = vrot.slane %v659, 1
        %vm661 = vcmask 809984
        %v662 = vsel %vm661, %v659, %v660
        %s664 = scalar_lea.vmem [#allocation2], 77
        %665 = vst.msk [vmem:[%s664] ss:$8 sm:$0x7] %vm345, %v662
        %666 = vst.msk [vmem:[%s664] ss:$8 sm:$0x0] %vm345, %v662
        %v667 = vld [vmem:[%s196] sm:$0xf]
        %669 = vrot.lane.b32.xlu0 %v667, 98
        %v670 = vpop.permute.xlu0 %669
        %v671 = vrot.slane %v670, 1
        %vm672 = vcmask 801792
        %v673 = vsel %vm672, %v670, %v671
        %s675 = scalar_lea.vmem [#allocation2], 78
        %676 = vst.msk [vmem:[%s675] ss:$8 sm:$0x7] %vm345, %v673
        %677 = vst.msk [vmem:[%s675] ss:$8 sm:$0x0] %vm345, %v673
        %v678 = vld [vmem:[%s196] sm:$0xf]
        %680 = vrot.lane.b32.xlu0 %v678, 97
        %v681 = vpop.permute.xlu0 %680
        %v682 = vrot.slane %v681, 1
        %vm683 = vcmask 793600
        %v684 = vsel %vm683, %v681, %v682
        %s686 = scalar_lea.vmem [#allocation2], 79
        %687 = vst.msk [vmem:[%s686] ss:$8 sm:$0x7] %vm345, %v684
        %688 = vst.msk [vmem:[%s686] ss:$8 sm:$0x0] %vm345, %v684
        %v689 = vld [vmem:[%s196] sm:$0xf]
        %691 = vrot.lane.b32.xlu0 %v689, 96
        %v692 = vpop.permute.xlu0 %691
        %v693 = vrot.slane %v692, 1
        %vm694 = vcmask 785408
        %v695 = vsel %vm694, %v692, %v693
        %s697 = scalar_lea.vmem [#allocation2], 96
        %698 = vst.msk [vmem:[%s697] ss:$8 sm:$0x7] %vm345, %v695
        %699 = vst.msk [vmem:[%s697] ss:$8 sm:$0x0] %vm345, %v695
        %v700 = vld [vmem:[%s196] sm:$0xf]
        %702 = vrot.lane.b32.xlu0 %v700, 95
        %v703 = vpop.permute.xlu0 %702
        %v704 = vrot.slane %v703, 1
        %vm705 = vcmask 777216
        %v706 = vsel %vm705, %v703, %v704
        %s708 = scalar_lea.vmem [#allocation2], 97
        %709 = vst.msk [vmem:[%s708] ss:$8 sm:$0x7] %vm345, %v706
        %710 = vst.msk [vmem:[%s708] ss:$8 sm:$0x0] %vm345, %v706
        %v711 = vld [vmem:[%s196] sm:$0xf]
        %713 = vrot.lane.b32.xlu0 %v711, 94
        %v714 = vpop.permute.xlu0 %713
        %v715 = vrot.slane %v714, 1
        %vm716 = vcmask 769024
        %v717 = vsel %vm716, %v714, %v715
        %s719 = scalar_lea.vmem [#allocation2], 98
        %720 = vst.msk [vmem:[%s719] ss:$8 sm:$0x7] %vm345, %v717
        %721 = vst.msk [vmem:[%s719] ss:$8 sm:$0x0] %vm345, %v717
        %v722 = vld [vmem:[%s196] sm:$0xf]
        %724 = vrot.lane.b32.xlu0 %v722, 93
        %v725 = vpop.permute.xlu0 %724
        %v726 = vrot.slane %v725, 1
        %vm727 = vcmask 760832
        %v728 = vsel %vm727, %v725, %v726
        %s730 = scalar_lea.vmem [#allocation2], 99
        %731 = vst.msk [vmem:[%s730] ss:$8 sm:$0x7] %vm345, %v728
        %732 = vst.msk [vmem:[%s730] ss:$8 sm:$0x0] %vm345, %v728
        %v733 = vld [vmem:[%s196] sm:$0xf]
        %735 = vrot.lane.b32.xlu0 %v733, 92
        %v736 = vpop.permute.xlu0 %735
        %v737 = vrot.slane %v736, 1
        %vm738 = vcmask 752640
        %v739 = vsel %vm738, %v736, %v737
        %s741 = scalar_lea.vmem [#allocation2], 100
        %742 = vst.msk [vmem:[%s741] ss:$8 sm:$0x7] %vm345, %v739
        %743 = vst.msk [vmem:[%s741] ss:$8 sm:$0x0] %vm345, %v739
        %v744 = vld [vmem:[%s196] sm:$0xf]
        %746 = vrot.lane.b32.xlu0 %v744, 91
        %v747 = vpop.permute.xlu0 %746
        %v748 = vrot.slane %v747, 1
        %vm749 = vcmask 744448
        %v750 = vsel %vm749, %v747, %v748
        %s752 = scalar_lea.vmem [#allocation2], 101
        %753 = vst.msk [vmem:[%s752] ss:$8 sm:$0x7] %vm345, %v750
        %754 = vst.msk [vmem:[%s752] ss:$8 sm:$0x0] %vm345, %v750
        %v755 = vld [vmem:[%s196] sm:$0xf]
        %757 = vrot.lane.b32.xlu0 %v755, 90
        %v758 = vpop.permute.xlu0 %757
        %v759 = vrot.slane %v758, 1
        %vm760 = vcmask 736256
        %v761 = vsel %vm760, %v758, %v759
        %s763 = scalar_lea.vmem [#allocation2], 102
        %764 = vst.msk [vmem:[%s763] ss:$8 sm:$0x7] %vm345, %v761
        %765 = vst.msk [vmem:[%s763] ss:$8 sm:$0x0] %vm345, %v761
        %v766 = vld [vmem:[%s196] sm:$0xf]
        %768 = vrot.lane.b32.xlu0 %v766, 89
        %v769 = vpop.permute.xlu0 %768
        %v770 = vrot.slane %v769, 1
        %vm771 = vcmask 728064
        %v772 = vsel %vm771, %v769, %v770
        %s774 = scalar_lea.vmem [#allocation2], 103
        %775 = vst.msk [vmem:[%s774] ss:$8 sm:$0x7] %vm345, %v772
        %776 = vst.msk [vmem:[%s774] ss:$8 sm:$0x0] %vm345, %v772
        %v777 = vld [vmem:[%s196] sm:$0xf]
        %779 = vrot.lane.b32.xlu0 %v777, 88
        %v780 = vpop.permute.xlu0 %779
        %v781 = vrot.slane %v780, 1
        %vm782 = vcmask 719872
        %v783 = vsel %vm782, %v780, %v781
        %s785 = scalar_lea.vmem [#allocation2], 120
        %786 = vst.msk [vmem:[%s785] ss:$8 sm:$0x7] %vm345, %v783
        %787 = vst.msk [vmem:[%s785] ss:$8 sm:$0x0] %vm345, %v783
        %v788 = vld [vmem:[%s196] sm:$0xf]
        %790 = vrot.lane.b32.xlu0 %v788, 87
        %v791 = vpop.permute.xlu0 %790
        %v792 = vrot.slane %v791, 1
        %vm793 = vcmask 711680
        %v794 = vsel %vm793, %v791, %v792
        %s796 = scalar_lea.vmem [#allocation2], 121
        %797 = vst.msk [vmem:[%s796] ss:$8 sm:$0x7] %vm345, %v794
        %798 = vst.msk [vmem:[%s796] ss:$8 sm:$0x0] %vm345, %v794
        %v799 = vld [vmem:[%s196] sm:$0xf]
        %801 = vrot.lane.b32.xlu0 %v799, 86
        %v802 = vpop.permute.xlu0 %801
        %v803 = vrot.slane %v802, 1
        %vm804 = vcmask 703488
        %v805 = vsel %vm804, %v802, %v803
        %s807 = scalar_lea.vmem [#allocation2], 122
        %808 = vst.msk [vmem:[%s807] ss:$8 sm:$0x7] %vm345, %v805
        %809 = vst.msk [vmem:[%s807] ss:$8 sm:$0x0] %vm345, %v805
        %v810 = vld [vmem:[%s196] sm:$0xf]
        %812 = vrot.lane.b32.xlu0 %v810, 85
        %v813 = vpop.permute.xlu0 %812
        %v814 = vrot.slane %v813, 1
        %vm815 = vcmask 695296
        %v816 = vsel %vm815, %v813, %v814
        %s818 = scalar_lea.vmem [#allocation2], 123
        %819 = vst.msk [vmem:[%s818] ss:$8 sm:$0x7] %vm345, %v816
        %820 = vst.msk [vmem:[%s818] ss:$8 sm:$0x0] %vm345, %v816
        %v821 = vld [vmem:[%s196] sm:$0xf]
        %823 = vrot.lane.b32.xlu0 %v821, 84
        %v824 = vpop.permute.xlu0 %823
        %v825 = vrot.slane %v824, 1
        %vm826 = vcmask 687104
        %v827 = vsel %vm826, %v824, %v825
        %s829 = scalar_lea.vmem [#allocation2], 124
        %830 = vst.msk [vmem:[%s829] ss:$8 sm:$0x7] %vm345, %v827
        %831 = vst.msk [vmem:[%s829] ss:$8 sm:$0x0] %vm345, %v827
        %v832 = vld [vmem:[%s196] sm:$0xf]
        %834 = vrot.lane.b32.xlu0 %v832, 83
        %v835 = vpop.permute.xlu0 %834
        %v836 = vrot.slane %v835, 1
        %vm837 = vcmask 678912
        %v838 = vsel %vm837, %v835, %v836
        %s840 = scalar_lea.vmem [#allocation2], 125
        %841 = vst.msk [vmem:[%s840] ss:$8 sm:$0x7] %vm345, %v838
        %842 = vst.msk [vmem:[%s840] ss:$8 sm:$0x0] %vm345, %v838
        %v843 = vld [vmem:[%s196] sm:$0xf]
        %845 = vrot.lane.b32.xlu0 %v843, 82
        %v846 = vpop.permute.xlu0 %845
        %v847 = vrot.slane %v846, 1
        %vm848 = vcmask 670720
        %v849 = vsel %vm848, %v846, %v847
        %s851 = scalar_lea.vmem [#allocation2], 126
        %852 = vst.msk [vmem:[%s851] ss:$8 sm:$0x7] %vm345, %v849
        %853 = vst.msk [vmem:[%s851] ss:$8 sm:$0x0] %vm345, %v849
        %v854 = vld [vmem:[%s196] sm:$0xf]
        %856 = vrot.lane.b32.xlu0 %v854, 81
        %v857 = vpop.permute.xlu0 %856
        %v858 = vrot.slane %v857, 1
        %vm859 = vcmask 662528
        %v860 = vsel %vm859, %v857, %v858
        %s862 = scalar_lea.vmem [#allocation2], 127
        %863 = vst.msk [vmem:[%s862] ss:$8 sm:$0x7] %vm345, %v860
        %864 = vst.msk [vmem:[%s862] ss:$8 sm:$0x0] %vm345, %v860
        %v865 = vld [vmem:[%s196] sm:$0xf]
        %867 = vrot.lane.b32.xlu0 %v865, 80
        %v868 = vpop.permute.xlu0 %867
        %v869 = vrot.slane %v868, 1
        %vm870 = vcmask 654336
        %v871 = vsel %vm870, %v868, %v869
        %s873 = scalar_lea.vmem [#allocation2], 144
        %874 = vst.msk [vmem:[%s873] ss:$8 sm:$0x7] %vm345, %v871
        %875 = vst.msk [vmem:[%s873] ss:$8 sm:$0x0] %vm345, %v871
        %v876 = vld [vmem:[%s196] sm:$0xf]
        %878 = vrot.lane.b32.xlu0 %v876, 79
        %v879 = vpop.permute.xlu0 %878
        %v880 = vrot.slane %v879, 1
        %vm881 = vcmask 646144
        %v882 = vsel %vm881, %v879, %v880
        %s884 = scalar_lea.vmem [#allocation2], 145
        %885 = vst.msk [vmem:[%s884] ss:$8 sm:$0x7] %vm345, %v882
        %886 = vst.msk [vmem:[%s884] ss:$8 sm:$0x0] %vm345, %v882
        %v887 = vld [vmem:[%s196] sm:$0xf]
        %889 = vrot.lane.b32.xlu0 %v887, 78
        %v890 = vpop.permute.xlu0 %889
        %v891 = vrot.slane %v890, 1
        %vm892 = vcmask 637952
        %v893 = vsel %vm892, %v890, %v891
        %s895 = scalar_lea.vmem [#allocation2], 146
        %896 = vst.msk [vmem:[%s895] ss:$8 sm:$0x7] %vm345, %v893
        %897 = vst.msk [vmem:[%s895] ss:$8 sm:$0x0] %vm345, %v893
        %v898 = vld [vmem:[%s196] sm:$0xf]
        %900 = vrot.lane.b32.xlu0 %v898, 77
        %v901 = vpop.permute.xlu0 %900
        %v902 = vrot.slane %v901, 1
        %vm903 = vcmask 629760
        %v904 = vsel %vm903, %v901, %v902
        %s906 = scalar_lea.vmem [#allocation2], 147
        %907 = vst.msk [vmem:[%s906] ss:$8 sm:$0x7] %vm345, %v904
        %908 = vst.msk [vmem:[%s906] ss:$8 sm:$0x0] %vm345, %v904
        %v909 = vld [vmem:[%s196] sm:$0xf]
        %911 = vrot.lane.b32.xlu0 %v909, 76
        %v912 = vpop.permute.xlu0 %911
        %v913 = vrot.slane %v912, 1
        %vm914 = vcmask 621568
        %v915 = vsel %vm914, %v912, %v913
        %s917 = scalar_lea.vmem [#allocation2], 148
        %918 = vst.msk [vmem:[%s917] ss:$8 sm:$0x7] %vm345, %v915
        %919 = vst.msk [vmem:[%s917] ss:$8 sm:$0x0] %vm345, %v915
        %v920 = vld [vmem:[%s196] sm:$0xf]
        %922 = vrot.lane.b32.xlu0 %v920, 75
        %v923 = vpop.permute.xlu0 %922
        %v924 = vrot.slane %v923, 1
        %vm925 = vcmask 613376
        %v926 = vsel %vm925, %v923, %v924
        %s928 = scalar_lea.vmem [#allocation2], 149
        %929 = vst.msk [vmem:[%s928] ss:$8 sm:$0x7] %vm345, %v926
        %930 = vst.msk [vmem:[%s928] ss:$8 sm:$0x0] %vm345, %v926
        %v931 = vld [vmem:[%s196] sm:$0xf]
        %933 = vrot.lane.b32.xlu0 %v931, 74
        %v934 = vpop.permute.xlu0 %933
        %v935 = vrot.slane %v934, 1
        %vm936 = vcmask 605184
        %v937 = vsel %vm936, %v934, %v935
        %s939 = scalar_lea.vmem [#allocation2], 150
        %940 = vst.msk [vmem:[%s939] ss:$8 sm:$0x7] %vm345, %v937
        %941 = vst.msk [vmem:[%s939] ss:$8 sm:$0x0] %vm345, %v937
        %v942 = vld [vmem:[%s196] sm:$0xf]
        %944 = vrot.lane.b32.xlu0 %v942, 73
        %v945 = vpop.permute.xlu0 %944
        %v946 = vrot.slane %v945, 1
        %vm947 = vcmask 596992
        %v948 = vsel %vm947, %v945, %v946
        %s950 = scalar_lea.vmem [#allocation2], 151
        %951 = vst.msk [vmem:[%s950] ss:$8 sm:$0x7] %vm345, %v948
        %952 = vst.msk [vmem:[%s950] ss:$8 sm:$0x0] %vm345, %v948
        %v953 = vld [vmem:[%s196] sm:$0xf]
        %955 = vrot.lane.b32.xlu0 %v953, 72
        %v956 = vpop.permute.xlu0 %955
        %v957 = vrot.slane %v956, 1
        %vm958 = vcmask 588800
        %v959 = vsel %vm958, %v956, %v957
        %s961 = scalar_lea.vmem [#allocation2], 168
        %962 = vst.msk [vmem:[%s961] ss:$8 sm:$0x7] %vm345, %v959
        %963 = vst.msk [vmem:[%s961] ss:$8 sm:$0x0] %vm345, %v959
        %v964 = vld [vmem:[%s196] sm:$0xf]
        %966 = vrot.lane.b32.xlu0 %v964, 71
        %v967 = vpop.permute.xlu0 %966
        %v968 = vrot.slane %v967, 1
        %vm969 = vcmask 580608
        %v970 = vsel %vm969, %v967, %v968
        %s972 = scalar_lea.vmem [#allocation2], 169
        %973 = vst.msk [vmem:[%s972] ss:$8 sm:$0x7] %vm345, %v970
        %974 = vst.msk [vmem:[%s972] ss:$8 sm:$0x0] %vm345, %v970
        %v975 = vld [vmem:[%s196] sm:$0xf]
        %977 = vrot.lane.b32.xlu0 %v975, 70
        %v978 = vpop.permute.xlu0 %977
        %v979 = vrot.slane %v978, 1
        %vm980 = vcmask 572416
        %v981 = vsel %vm980, %v978, %v979
        %s983 = scalar_lea.vmem [#allocation2], 170
        %984 = vst.msk [vmem:[%s983] ss:$8 sm:$0x7] %vm345, %v981
        %985 = vst.msk [vmem:[%s983] ss:$8 sm:$0x0] %vm345, %v981
        %v986 = vld [vmem:[%s196] sm:$0xf]
        %988 = vrot.lane.b32.xlu0 %v986, 69
        %v989 = vpop.permute.xlu0 %988
        %v990 = vrot.slane %v989, 1
        %vm991 = vcmask 564224
        %v992 = vsel %vm991, %v989, %v990
        %s994 = scalar_lea.vmem [#allocation2], 171
        %995 = vst.msk [vmem:[%s994] ss:$8 sm:$0x7] %vm345, %v992
        %996 = vst.msk [vmem:[%s994] ss:$8 sm:$0x0] %vm345, %v992
        %v997 = vld [vmem:[%s196] sm:$0xf]
        %999 = vrot.lane.b32.xlu0 %v997, 68
        %v1000 = vpop.permute.xlu0 %999
        %v1001 = vrot.slane %v1000, 1
        %vm1002 = vcmask 556032
        %v1003 = vsel %vm1002, %v1000, %v1001
        %s1005 = scalar_lea.vmem [#allocation2], 172
        %1006 = vst.msk [vmem:[%s1005] ss:$8 sm:$0x7] %vm345, %v1003
        %1007 = vst.msk [vmem:[%s1005] ss:$8 sm:$0x0] %vm345, %v1003
        %v1008 = vld [vmem:[%s196] sm:$0xf]
        %1010 = vrot.lane.b32.xlu0 %v1008, 67
        %v1011 = vpop.permute.xlu0 %1010
        %v1012 = vrot.slane %v1011, 1
        %vm1013 = vcmask 547840
        %v1014 = vsel %vm1013, %v1011, %v1012
        %s1016 = scalar_lea.vmem [#allocation2], 173
        %1017 = vst.msk [vmem:[%s1016] ss:$8 sm:$0x7] %vm345, %v1014
        %1018 = vst.msk [vmem:[%s1016] ss:$8 sm:$0x0] %vm345, %v1014
        %v1019 = vld [vmem:[%s196] sm:$0xf]
        %1021 = vrot.lane.b32.xlu0 %v1019, 66
        %v1022 = vpop.permute.xlu0 %1021
        %v1023 = vrot.slane %v1022, 1
        %vm1024 = vcmask 539648
        %v1025 = vsel %vm1024, %v1022, %v1023
        %s1027 = scalar_lea.vmem [#allocation2], 174
        %1028 = vst.msk [vmem:[%s1027] ss:$8 sm:$0x7] %vm345, %v1025
        %1029 = vst.msk [vmem:[%s1027] ss:$8 sm:$0x0] %vm345, %v1025
        %v1030 = vld [vmem:[%s196] sm:$0xf]
        %1032 = vrot.lane.b32.xlu0 %v1030, 65
        %v1033 = vpop.permute.xlu0 %1032
        %v1034 = vrot.slane %v1033, 1
        %vm1035 = vcmask 531456
        %v1036 = vsel %vm1035, %v1033, %v1034
        %s1038 = scalar_lea.vmem [#allocation2], 175
        %1039 = vst.msk [vmem:[%s1038] ss:$8 sm:$0x7] %vm345, %v1036
        %1040 = vst.msk [vmem:[%s1038] ss:$8 sm:$0x0] %vm345, %v1036
        %v1041 = vld [vmem:[%s196] sm:$0xf]
        %1043 = vrot.lane.b32.xlu0 %v1041, 64
        %v1044 = vpop.permute.xlu0 %1043
        %v1045 = vrot.slane %v1044, 1
        %vm1046 = vcmask 523264
        %v1047 = vsel %vm1046, %v1044, %v1045
        %s1049 = scalar_lea.vmem [#allocation2], 192
        %1050 = vst.msk [vmem:[%s1049] ss:$8 sm:$0x7] %vm345, %v1047
        %1051 = vst.msk [vmem:[%s1049] ss:$8 sm:$0x0] %vm345, %v1047
        %v1052 = vld [vmem:[%s196] sm:$0xf]
        %1054 = vrot.lane.b32.xlu0 %v1052, 63
        %v1055 = vpop.permute.xlu0 %1054
        %v1056 = vrot.slane %v1055, 1
        %vm1057 = vcmask 515072
        %v1058 = vsel %vm1057, %v1055, %v1056
        %s1060 = scalar_lea.vmem [#allocation2], 193
        %1061 = vst.msk [vmem:[%s1060] ss:$8 sm:$0x7] %vm345, %v1058
        %1062 = vst.msk [vmem:[%s1060] ss:$8 sm:$0x0] %vm345, %v1058
        %v1063 = vld [vmem:[%s196] sm:$0xf]
        %1065 = vrot.lane.b32.xlu0 %v1063, 62
        %v1066 = vpop.permute.xlu0 %1065
        %v1067 = vrot.slane %v1066, 1
        %vm1068 = vcmask 506880
        %v1069 = vsel %vm1068, %v1066, %v1067
        %s1071 = scalar_lea.vmem [#allocation2], 194
        %1072 = vst.msk [vmem:[%s1071] ss:$8 sm:$0x7] %vm345, %v1069
        %1073 = vst.msk [vmem:[%s1071] ss:$8 sm:$0x0] %vm345, %v1069
        %v1074 = vld [vmem:[%s196] sm:$0xf]
        %1076 = vrot.lane.b32.xlu0 %v1074, 61
        %v1077 = vpop.permute.xlu0 %1076
        %v1078 = vrot.slane %v1077, 1
        %vm1079 = vcmask 498688
        %v1080 = vsel %vm1079, %v1077, %v1078
        %s1082 = scalar_lea.vmem [#allocation2], 195
        %1083 = vst.msk [vmem:[%s1082] ss:$8 sm:$0x7] %vm345, %v1080
        %1084 = vst.msk [vmem:[%s1082] ss:$8 sm:$0x0] %vm345, %v1080
        %v1085 = vld [vmem:[%s196] sm:$0xf]
        %1087 = vrot.lane.b32.xlu0 %v1085, 60
        %v1088 = vpop.permute.xlu0 %1087
        %v1089 = vrot.slane %v1088, 1
        %vm1090 = vcmask 490496
        %v1091 = vsel %vm1090, %v1088, %v1089
        %s1093 = scalar_lea.vmem [#allocation2], 196
        %1094 = vst.msk [vmem:[%s1093] ss:$8 sm:$0x7] %vm345, %v1091
        %1095 = vst.msk [vmem:[%s1093] ss:$8 sm:$0x0] %vm345, %v1091
        %v1096 = vld [vmem:[%s196] sm:$0xf]
        %1098 = vrot.lane.b32.xlu0 %v1096, 59
        %v1099 = vpop.permute.xlu0 %1098
        %v1100 = vrot.slane %v1099, 1
        %vm1101 = vcmask 482304
        %v1102 = vsel %vm1101, %v1099, %v1100
        %s1104 = scalar_lea.vmem [#allocation2], 197
        %1105 = vst.msk [vmem:[%s1104] ss:$8 sm:$0x7] %vm345, %v1102
        %1106 = vst.msk [vmem:[%s1104] ss:$8 sm:$0x0] %vm345, %v1102
        %v1107 = vld [vmem:[%s196] sm:$0xf]
        %1109 = vrot.lane.b32.xlu0 %v1107, 58
        %v1110 = vpop.permute.xlu0 %1109
        %v1111 = vrot.slane %v1110, 1
        %vm1112 = vcmask 474112
        %v1113 = vsel %vm1112, %v1110, %v1111
        %s1115 = scalar_lea.vmem [#allocation2], 198
        %1116 = vst.msk [vmem:[%s1115] ss:$8 sm:$0x7] %vm345, %v1113
        %1117 = vst.msk [vmem:[%s1115] ss:$8 sm:$0x0] %vm345, %v1113
        %v1118 = vld [vmem:[%s196] sm:$0xf]
        %1120 = vrot.lane.b32.xlu0 %v1118, 57
        %v1121 = vpop.permute.xlu0 %1120
        %v1122 = vrot.slane %v1121, 1
        %vm1123 = vcmask 465920
        %v1124 = vsel %vm1123, %v1121, %v1122
        %s1126 = scalar_lea.vmem [#allocation2], 199
        %1127 = vst.msk [vmem:[%s1126] ss:$8 sm:$0x7] %vm345, %v1124
        %1128 = vst.msk [vmem:[%s1126] ss:$8 sm:$0x0] %vm345, %v1124
        %v1129 = vld [vmem:[%s196] sm:$0xf]
        %1131 = vrot.lane.b32.xlu0 %v1129, 56
        %v1132 = vpop.permute.xlu0 %1131
        %v1133 = vrot.slane %v1132, 1
        %vm1134 = vcmask 457728
        %v1135 = vsel %vm1134, %v1132, %v1133
        %s1137 = scalar_lea.vmem [#allocation2], 216
        %1138 = vst.msk [vmem:[%s1137] ss:$8 sm:$0x7] %vm345, %v1135
        %1139 = vst.msk [vmem:[%s1137] ss:$8 sm:$0x0] %vm345, %v1135
        %v1140 = vld [vmem:[%s196] sm:$0xf]
        %1142 = vrot.lane.b32.xlu0 %v1140, 55
        %v1143 = vpop.permute.xlu0 %1142
        %v1144 = vrot.slane %v1143, 1
        %vm1145 = vcmask 449536
        %v1146 = vsel %vm1145, %v1143, %v1144
        %s1148 = scalar_lea.vmem [#allocation2], 217
        %1149 = vst.msk [vmem:[%s1148] ss:$8 sm:$0x7] %vm345, %v1146
        %1150 = vst.msk [vmem:[%s1148] ss:$8 sm:$0x0] %vm345, %v1146
        %v1151 = vld [vmem:[%s196] sm:$0xf]
        %1153 = vrot.lane.b32.xlu0 %v1151, 54
        %v1154 = vpop.permute.xlu0 %1153
        %v1155 = vrot.slane %v1154, 1
        %vm1156 = vcmask 441344
        %v1157 = vsel %vm1156, %v1154, %v1155
        %s1159 = scalar_lea.vmem [#allocation2], 218
        %1160 = vst.msk [vmem:[%s1159] ss:$8 sm:$0x7] %vm345, %v1157
        %1161 = vst.msk [vmem:[%s1159] ss:$8 sm:$0x0] %vm345, %v1157
        %v1162 = vld [vmem:[%s196] sm:$0xf]
        %1164 = vrot.lane.b32.xlu0 %v1162, 53
        %v1165 = vpop.permute.xlu0 %1164
        %v1166 = vrot.slane %v1165, 1
        %vm1167 = vcmask 433152
        %v1168 = vsel %vm1167, %v1165, %v1166
        %s1170 = scalar_lea.vmem [#allocation2], 219
        %1171 = vst.msk [vmem:[%s1170] ss:$8 sm:$0x7] %vm345, %v1168
        %1172 = vst.msk [vmem:[%s1170] ss:$8 sm:$0x0] %vm345, %v1168
        %v1173 = vld [vmem:[%s196] sm:$0xf]
        %1175 = vrot.lane.b32.xlu0 %v1173, 52
        %v1176 = vpop.permute.xlu0 %1175
        %v1177 = vrot.slane %v1176, 1
        %vm1178 = vcmask 424960
        %v1179 = vsel %vm1178, %v1176, %v1177
        %s1181 = scalar_lea.vmem [#allocation2], 220
        %1182 = vst.msk [vmem:[%s1181] ss:$8 sm:$0x7] %vm345, %v1179
        %1183 = vst.msk [vmem:[%s1181] ss:$8 sm:$0x0] %vm345, %v1179
        %v1184 = vld [vmem:[%s196] sm:$0xf]
        %1186 = vrot.lane.b32.xlu0 %v1184, 51
        %v1187 = vpop.permute.xlu0 %1186
        %v1188 = vrot.slane %v1187, 1
        %vm1189 = vcmask 416768
        %v1190 = vsel %vm1189, %v1187, %v1188
        %s1192 = scalar_lea.vmem [#allocation2], 221
        %1193 = vst.msk [vmem:[%s1192] ss:$8 sm:$0x7] %vm345, %v1190
        %1194 = vst.msk [vmem:[%s1192] ss:$8 sm:$0x0] %vm345, %v1190
        %v1195 = vld [vmem:[%s196] sm:$0xf]
        %1197 = vrot.lane.b32.xlu0 %v1195, 50
        %v1198 = vpop.permute.xlu0 %1197
        %v1199 = vrot.slane %v1198, 1
        %vm1200 = vcmask 408576
        %v1201 = vsel %vm1200, %v1198, %v1199
        %s1203 = scalar_lea.vmem [#allocation2], 222
        %1204 = vst.msk [vmem:[%s1203] ss:$8 sm:$0x7] %vm345, %v1201
        %1205 = vst.msk [vmem:[%s1203] ss:$8 sm:$0x0] %vm345, %v1201
        %v1206 = vld [vmem:[%s196] sm:$0xf]
        %1208 = vrot.lane.b32.xlu0 %v1206, 49
        %v1209 = vpop.permute.xlu0 %1208
        %v1210 = vrot.slane %v1209, 1
        %vm1211 = vcmask 400384
        %v1212 = vsel %vm1211, %v1209, %v1210
        %s1214 = scalar_lea.vmem [#allocation2], 223
        %1215 = vst.msk [vmem:[%s1214] ss:$8 sm:$0x7] %vm345, %v1212
        %1216 = vst.msk [vmem:[%s1214] ss:$8 sm:$0x0] %vm345, %v1212
        %v1217 = vld [vmem:[%s196] sm:$0xf]
        %1219 = vrot.lane.b32.xlu0 %v1217, 48
        %v1220 = vpop.permute.xlu0 %1219
        %v1221 = vrot.slane %v1220, 1
        %vm1222 = vcmask 392192
        %v1223 = vsel %vm1222, %v1220, %v1221
        %s1225 = scalar_lea.vmem [#allocation2], 240
        %1226 = vst.msk [vmem:[%s1225] ss:$8 sm:$0x7] %vm345, %v1223
        %1227 = vst.msk [vmem:[%s1225] ss:$8 sm:$0x0] %vm345, %v1223
        %v1228 = vld [vmem:[%s196] sm:$0xf]
        %1230 = vrot.lane.b32.xlu0 %v1228, 47
        %v1231 = vpop.permute.xlu0 %1230
        %v1232 = vrot.slane %v1231, 1
        %vm1233 = vcmask 384000
        %v1234 = vsel %vm1233, %v1231, %v1232
        %s1236 = scalar_lea.vmem [#allocation2], 241
        %1237 = vst.msk [vmem:[%s1236] ss:$8 sm:$0x7] %vm345, %v1234
        %1238 = vst.msk [vmem:[%s1236] ss:$8 sm:$0x0] %vm345, %v1234
        %v1239 = vld [vmem:[%s196] sm:$0xf]
        %1241 = vrot.lane.b32.xlu0 %v1239, 46
        %v1242 = vpop.permute.xlu0 %1241
        %v1243 = vrot.slane %v1242, 1
        %vm1244 = vcmask 375808
        %v1245 = vsel %vm1244, %v1242, %v1243
        %s1247 = scalar_lea.vmem [#allocation2], 242
        %1248 = vst.msk [vmem:[%s1247] ss:$8 sm:$0x7] %vm345, %v1245
        %1249 = vst.msk [vmem:[%s1247] ss:$8 sm:$0x0] %vm345, %v1245
        %v1250 = vld [vmem:[%s196] sm:$0xf]
        %1252 = vrot.lane.b32.xlu0 %v1250, 45
        %v1253 = vpop.permute.xlu0 %1252
        %v1254 = vrot.slane %v1253, 1
        %vm1255 = vcmask 367616
        %v1256 = vsel %vm1255, %v1253, %v1254
        %s1258 = scalar_lea.vmem [#allocation2], 243
        %1259 = vst.msk [vmem:[%s1258] ss:$8 sm:$0x7] %vm345, %v1256
        %1260 = vst.msk [vmem:[%s1258] ss:$8 sm:$0x0] %vm345, %v1256
        %v1261 = vld [vmem:[%s196] sm:$0xf]
        %1263 = vrot.lane.b32.xlu0 %v1261, 44
        %v1264 = vpop.permute.xlu0 %1263
        %v1265 = vrot.slane %v1264, 1
        %vm1266 = vcmask 359424
        %v1267 = vsel %vm1266, %v1264, %v1265
        %s1269 = scalar_lea.vmem [#allocation2], 244
        %1270 = vst.msk [vmem:[%s1269] ss:$8 sm:$0x7] %vm345, %v1267
        %1271 = vst.msk [vmem:[%s1269] ss:$8 sm:$0x0] %vm345, %v1267
        %v1272 = vld [vmem:[%s196] sm:$0xf]
        %1274 = vrot.lane.b32.xlu0 %v1272, 43
        %v1275 = vpop.permute.xlu0 %1274
        %v1276 = vrot.slane %v1275, 1
        %vm1277 = vcmask 351232
        %v1278 = vsel %vm1277, %v1275, %v1276
        %s1280 = scalar_lea.vmem [#allocation2], 245
        %1281 = vst.msk [vmem:[%s1280] ss:$8 sm:$0x7] %vm345, %v1278
        %1282 = vst.msk [vmem:[%s1280] ss:$8 sm:$0x0] %vm345, %v1278
        %v1283 = vld [vmem:[%s196] sm:$0xf]
        %1285 = vrot.lane.b32.xlu0 %v1283, 42
        %v1286 = vpop.permute.xlu0 %1285
        %v1287 = vrot.slane %v1286, 1
        %vm1288 = vcmask 343040
        %v1289 = vsel %vm1288, %v1286, %v1287
        %s1291 = scalar_lea.vmem [#allocation2], 246
        %1292 = vst.msk [vmem:[%s1291] ss:$8 sm:$0x7] %vm345, %v1289
        %1293 = vst.msk [vmem:[%s1291] ss:$8 sm:$0x0] %vm345, %v1289
        %v1294 = vld [vmem:[%s196] sm:$0xf]
        %1296 = vrot.lane.b32.xlu0 %v1294, 41
        %v1297 = vpop.permute.xlu0 %1296
        %v1298 = vrot.slane %v1297, 1
        %vm1299 = vcmask 334848
        %v1300 = vsel %vm1299, %v1297, %v1298
        %s1302 = scalar_lea.vmem [#allocation2], 247
        %1303 = vst.msk [vmem:[%s1302] ss:$8 sm:$0x7] %vm345, %v1300
        %1304 = vst.msk [vmem:[%s1302] ss:$8 sm:$0x0] %vm345, %v1300
        %v1305 = vld [vmem:[%s196] sm:$0xf]
        %1307 = vrot.lane.b32.xlu0 %v1305, 40
        %v1308 = vpop.permute.xlu0 %1307
        %v1309 = vrot.slane %v1308, 1
        %vm1310 = vcmask 326656
        %v1311 = vsel %vm1310, %v1308, %v1309
        %s1313 = scalar_lea.vmem [#allocation2], 264
        %1314 = vst.msk [vmem:[%s1313] ss:$8 sm:$0x7] %vm345, %v1311
        %1315 = vst.msk [vmem:[%s1313] ss:$8 sm:$0x0] %vm345, %v1311
        %v1316 = vld [vmem:[%s196] sm:$0xf]
        %1318 = vrot.lane.b32.xlu0 %v1316, 39
        %v1319 = vpop.permute.xlu0 %1318
        %v1320 = vrot.slane %v1319, 1
        %vm1321 = vcmask 318464
        %v1322 = vsel %vm1321, %v1319, %v1320
        %s1324 = scalar_lea.vmem [#allocation2], 265
        %1325 = vst.msk [vmem:[%s1324] ss:$8 sm:$0x7] %vm345, %v1322
        %1326 = vst.msk [vmem:[%s1324] ss:$8 sm:$0x0] %vm345, %v1322
        %v1327 = vld [vmem:[%s196] sm:$0xf]
        %1329 = vrot.lane.b32.xlu0 %v1327, 38
        %v1330 = vpop.permute.xlu0 %1329
        %v1331 = vrot.slane %v1330, 1
        %vm1332 = vcmask 310272
        %v1333 = vsel %vm1332, %v1330, %v1331
        %s1335 = scalar_lea.vmem [#allocation2], 266
        %1336 = vst.msk [vmem:[%s1335] ss:$8 sm:$0x7] %vm345, %v1333
        %1337 = vst.msk [vmem:[%s1335] ss:$8 sm:$0x0] %vm345, %v1333
        %v1338 = vld [vmem:[%s196] sm:$0xf]
        %1340 = vrot.lane.b32.xlu0 %v1338, 37
        %v1341 = vpop.permute.xlu0 %1340
        %v1342 = vrot.slane %v1341, 1
        %vm1343 = vcmask 302080
        %v1344 = vsel %vm1343, %v1341, %v1342
        %s1346 = scalar_lea.vmem [#allocation2], 267
        %1347 = vst.msk [vmem:[%s1346] ss:$8 sm:$0x7] %vm345, %v1344
        %1348 = vst.msk [vmem:[%s1346] ss:$8 sm:$0x0] %vm345, %v1344
        %v1349 = vld [vmem:[%s196] sm:$0xf]
        %1351 = vrot.lane.b32.xlu0 %v1349, 36
        %v1352 = vpop.permute.xlu0 %1351
        %v1353 = vrot.slane %v1352, 1
        %vm1354 = vcmask 293888
        %v1355 = vsel %vm1354, %v1352, %v1353
        %s1357 = scalar_lea.vmem [#allocation2], 268
        %1358 = vst.msk [vmem:[%s1357] ss:$8 sm:$0x7] %vm345, %v1355
        %1359 = vst.msk [vmem:[%s1357] ss:$8 sm:$0x0] %vm345, %v1355
        %v1360 = vld [vmem:[%s196] sm:$0xf]
        %1362 = vrot.lane.b32.xlu0 %v1360, 35
        %v1363 = vpop.permute.xlu0 %1362
        %v1364 = vrot.slane %v1363, 1
        %vm1365 = vcmask 285696
        %v1366 = vsel %vm1365, %v1363, %v1364
        %s1368 = scalar_lea.vmem [#allocation2], 269
        %1369 = vst.msk [vmem:[%s1368] ss:$8 sm:$0x7] %vm345, %v1366
        %1370 = vst.msk [vmem:[%s1368] ss:$8 sm:$0x0] %vm345, %v1366
        %v1371 = vld [vmem:[%s196] sm:$0xf]
        %1373 = vrot.lane.b32.xlu0 %v1371, 34
        %v1374 = vpop.permute.xlu0 %1373
        %v1375 = vrot.slane %v1374, 1
        %vm1376 = vcmask 277504
        %v1377 = vsel %vm1376, %v1374, %v1375
        %s1379 = scalar_lea.vmem [#allocation2], 270
        %1380 = vst.msk [vmem:[%s1379] ss:$8 sm:$0x7] %vm345, %v1377
        %1381 = vst.msk [vmem:[%s1379] ss:$8 sm:$0x0] %vm345, %v1377
        %v1382 = vld [vmem:[%s196] sm:$0xf]
        %1384 = vrot.lane.b32.xlu0 %v1382, 33
        %v1385 = vpop.permute.xlu0 %1384
        %v1386 = vrot.slane %v1385, 1
        %vm1387 = vcmask 269312
        %v1388 = vsel %vm1387, %v1385, %v1386
        %s1390 = scalar_lea.vmem [#allocation2], 271
        %1391 = vst.msk [vmem:[%s1390] ss:$8 sm:$0x7] %vm345, %v1388
        %1392 = vst.msk [vmem:[%s1390] ss:$8 sm:$0x0] %vm345, %v1388
        %v1393 = vld [vmem:[%s196] sm:$0xf]
        %1395 = vrot.lane.b32.xlu0 %v1393, 32
        %v1396 = vpop.permute.xlu0 %1395
        %v1397 = vrot.slane %v1396, 1
        %vm1398 = vcmask 261120
        %v1399 = vsel %vm1398, %v1396, %v1397
        %s1401 = scalar_lea.vmem [#allocation2], 288
        %1402 = vst.msk [vmem:[%s1401] ss:$8 sm:$0x7] %vm345, %v1399
        %1403 = vst.msk [vmem:[%s1401] ss:$8 sm:$0x0] %vm345, %v1399
        %v1404 = vld [vmem:[%s196] sm:$0xf]
        %1406 = vrot.lane.b32.xlu0 %v1404, 31
        %v1407 = vpop.permute.xlu0 %1406
        %v1408 = vrot.slane %v1407, 1
        %vm1409 = vcmask 252928
        %v1410 = vsel %vm1409, %v1407, %v1408
        %s1412 = scalar_lea.vmem [#allocation2], 289
        %1413 = vst.msk [vmem:[%s1412] ss:$8 sm:$0x7] %vm345, %v1410
        %1414 = vst.msk [vmem:[%s1412] ss:$8 sm:$0x0] %vm345, %v1410
        %v1415 = vld [vmem:[%s196] sm:$0xf]
        %1417 = vrot.lane.b32.xlu0 %v1415, 30
        %v1418 = vpop.permute.xlu0 %1417
        %v1419 = vrot.slane %v1418, 1
        %vm1420 = vcmask 244736
        %v1421 = vsel %vm1420, %v1418, %v1419
        %s1423 = scalar_lea.vmem [#allocation2], 290
        %1424 = vst.msk [vmem:[%s1423] ss:$8 sm:$0x7] %vm345, %v1421
        %1425 = vst.msk [vmem:[%s1423] ss:$8 sm:$0x0] %vm345, %v1421
        %v1426 = vld [vmem:[%s196] sm:$0xf]
        %1428 = vrot.lane.b32.xlu0 %v1426, 29
        %v1429 = vpop.permute.xlu0 %1428
        %v1430 = vrot.slane %v1429, 1
        %vm1431 = vcmask 236544
        %v1432 = vsel %vm1431, %v1429, %v1430
        %s1434 = scalar_lea.vmem [#allocation2], 291
        %1435 = vst.msk [vmem:[%s1434] ss:$8 sm:$0x7] %vm345, %v1432
        %1436 = vst.msk [vmem:[%s1434] ss:$8 sm:$0x0] %vm345, %v1432
        %v1437 = vld [vmem:[%s196] sm:$0xf]
        %1439 = vrot.lane.b32.xlu0 %v1437, 28
        %v1440 = vpop.permute.xlu0 %1439
        %v1441 = vrot.slane %v1440, 1
        %vm1442 = vcmask 228352
        %v1443 = vsel %vm1442, %v1440, %v1441
        %s1445 = scalar_lea.vmem [#allocation2], 292
        %1446 = vst.msk [vmem:[%s1445] ss:$8 sm:$0x7] %vm345, %v1443
        %1447 = vst.msk [vmem:[%s1445] ss:$8 sm:$0x0] %vm345, %v1443
        %v1448 = vld [vmem:[%s196] sm:$0xf]
        %1450 = vrot.lane.b32.xlu0 %v1448, 27
        %v1451 = vpop.permute.xlu0 %1450
        %v1452 = vrot.slane %v1451, 1
        %vm1453 = vcmask 220160
        %v1454 = vsel %vm1453, %v1451, %v1452
        %s1456 = scalar_lea.vmem [#allocation2], 293
        %1457 = vst.msk [vmem:[%s1456] ss:$8 sm:$0x7] %vm345, %v1454
        %1458 = vst.msk [vmem:[%s1456] ss:$8 sm:$0x0] %vm345, %v1454
        %v1459 = vld [vmem:[%s196] sm:$0xf]
        %1461 = vrot.lane.b32.xlu0 %v1459, 26
        %v1462 = vpop.permute.xlu0 %1461
        %v1463 = vrot.slane %v1462, 1
        %vm1464 = vcmask 211968
        %v1465 = vsel %vm1464, %v1462, %v1463
        %s1467 = scalar_lea.vmem [#allocation2], 294
        %1468 = vst.msk [vmem:[%s1467] ss:$8 sm:$0x7] %vm345, %v1465
        %1469 = vst.msk [vmem:[%s1467] ss:$8 sm:$0x0] %vm345, %v1465
        %v1470 = vld [vmem:[%s196] sm:$0xf]
        %1472 = vrot.lane.b32.xlu0 %v1470, 25
        %v1473 = vpop.permute.xlu0 %1472
        %v1474 = vrot.slane %v1473, 1
        %vm1475 = vcmask 203776
        %v1476 = vsel %vm1475, %v1473, %v1474
        %s1478 = scalar_lea.vmem [#allocation2], 295
        %1479 = vst.msk [vmem:[%s1478] ss:$8 sm:$0x7] %vm345, %v1476
        %1480 = vst.msk [vmem:[%s1478] ss:$8 sm:$0x0] %vm345, %v1476
        %v1481 = vld [vmem:[%s196] sm:$0xf]
        %1483 = vrot.lane.b32.xlu0 %v1481, 24
        %v1484 = vpop.permute.xlu0 %1483
        %v1485 = vrot.slane %v1484, 1
        %vm1486 = vcmask 195584
        %v1487 = vsel %vm1486, %v1484, %v1485
        %s1489 = scalar_lea.vmem [#allocation2], 312
        %1490 = vst.msk [vmem:[%s1489] ss:$8 sm:$0x7] %vm345, %v1487
        %1491 = vst.msk [vmem:[%s1489] ss:$8 sm:$0x0] %vm345, %v1487
        %v1492 = vld [vmem:[%s196] sm:$0xf]
        %1494 = vrot.lane.b32.xlu0 %v1492, 23
        %v1495 = vpop.permute.xlu0 %1494
        %v1496 = vrot.slane %v1495, 1
        %vm1497 = vcmask 187392
        %v1498 = vsel %vm1497, %v1495, %v1496
        %s1500 = scalar_lea.vmem [#allocation2], 313
        %1501 = vst.msk [vmem:[%s1500] ss:$8 sm:$0x7] %vm345, %v1498
        %1502 = vst.msk [vmem:[%s1500] ss:$8 sm:$0x0] %vm345, %v1498
        %v1503 = vld [vmem:[%s196] sm:$0xf]
        %1505 = vrot.lane.b32.xlu0 %v1503, 22
        %v1506 = vpop.permute.xlu0 %1505
        %v1507 = vrot.slane %v1506, 1
        %vm1508 = vcmask 179200
        %v1509 = vsel %vm1508, %v1506, %v1507
        %s1511 = scalar_lea.vmem [#allocation2], 314
        %1512 = vst.msk [vmem:[%s1511] ss:$8 sm:$0x7] %vm345, %v1509
        %1513 = vst.msk [vmem:[%s1511] ss:$8 sm:$0x0] %vm345, %v1509
        %v1514 = vld [vmem:[%s196] sm:$0xf]
        %1516 = vrot.lane.b32.xlu0 %v1514, 21
        %v1517 = vpop.permute.xlu0 %1516
        %v1518 = vrot.slane %v1517, 1
        %vm1519 = vcmask 171008
        %v1520 = vsel %vm1519, %v1517, %v1518
        %s1522 = scalar_lea.vmem [#allocation2], 315
        %1523 = vst.msk [vmem:[%s1522] ss:$8 sm:$0x7] %vm345, %v1520
        %1524 = vst.msk [vmem:[%s1522] ss:$8 sm:$0x0] %vm345, %v1520
        %v1525 = vld [vmem:[%s196] sm:$0xf]
        %1527 = vrot.lane.b32.xlu0 %v1525, 20
        %v1528 = vpop.permute.xlu0 %1527
        %v1529 = vrot.slane %v1528, 1
        %vm1530 = vcmask 162816
        %v1531 = vsel %vm1530, %v1528, %v1529
        %s1533 = scalar_lea.vmem [#allocation2], 316
        %1534 = vst.msk [vmem:[%s1533] ss:$8 sm:$0x7] %vm345, %v1531
        %1535 = vst.msk [vmem:[%s1533] ss:$8 sm:$0x0] %vm345, %v1531
        %v1536 = vld [vmem:[%s196] sm:$0xf]
        %1538 = vrot.lane.b32.xlu0 %v1536, 19
        %v1539 = vpop.permute.xlu0 %1538
        %v1540 = vrot.slane %v1539, 1
        %vm1541 = vcmask 154624
        %v1542 = vsel %vm1541, %v1539, %v1540
        %s1544 = scalar_lea.vmem [#allocation2], 317
        %1545 = vst.msk [vmem:[%s1544] ss:$8 sm:$0x7] %vm345, %v1542
        %1546 = vst.msk [vmem:[%s1544] ss:$8 sm:$0x0] %vm345, %v1542
        %v1547 = vld [vmem:[%s196] sm:$0xf]
        %1549 = vrot.lane.b32.xlu0 %v1547, 18
        %v1550 = vpop.permute.xlu0 %1549
        %v1551 = vrot.slane %v1550, 1
        %vm1552 = vcmask 146432
        %v1553 = vsel %vm1552, %v1550, %v1551
        %s1555 = scalar_lea.vmem [#allocation2], 318
        %1556 = vst.msk [vmem:[%s1555] ss:$8 sm:$0x7] %vm345, %v1553
        %1557 = vst.msk [vmem:[%s1555] ss:$8 sm:$0x0] %vm345, %v1553
        %v1558 = vld [vmem:[%s196] sm:$0xf]
        %1560 = vrot.lane.b32.xlu0 %v1558, 17
        %v1561 = vpop.permute.xlu0 %1560
        %v1562 = vrot.slane %v1561, 1
        %vm1563 = vcmask 138240
        %v1564 = vsel %vm1563, %v1561, %v1562
        %s1566 = scalar_lea.vmem [#allocation2], 319
        %1567 = vst.msk [vmem:[%s1566] ss:$8 sm:$0x7] %vm345, %v1564
        %1568 = vst.msk [vmem:[%s1566] ss:$8 sm:$0x0] %vm345, %v1564
        %v1569 = vld [vmem:[%s196] sm:$0xf]
        %1571 = vrot.lane.b32.xlu0 %v1569, 16
        %v1572 = vpop.permute.xlu0 %1571
        %v1573 = vrot.slane %v1572, 1
        %vm1574 = vcmask 130048
        %v1575 = vsel %vm1574, %v1572, %v1573
        %s1577 = scalar_lea.vmem [#allocation2], 336
        %1578 = vst.msk [vmem:[%s1577] ss:$8 sm:$0x7] %vm345, %v1575
        %1579 = vst.msk [vmem:[%s1577] ss:$8 sm:$0x0] %vm345, %v1575
        %v1580 = vld [vmem:[%s196] sm:$0xf]
        %1582 = vrot.lane.b32.xlu0 %v1580, 15
        %v1583 = vpop.permute.xlu0 %1582
        %v1584 = vrot.slane %v1583, 1
        %vm1585 = vcmask 121856
        %v1586 = vsel %vm1585, %v1583, %v1584
        %s1588 = scalar_lea.vmem [#allocation2], 337
        %1589 = vst.msk [vmem:[%s1588] ss:$8 sm:$0x7] %vm345, %v1586
        %1590 = vst.msk [vmem:[%s1588] ss:$8 sm:$0x0] %vm345, %v1586
        %v1591 = vld [vmem:[%s196] sm:$0xf]
        %1593 = vrot.lane.b32.xlu0 %v1591, 14
        %v1594 = vpop.permute.xlu0 %1593
        %v1595 = vrot.slane %v1594, 1
        %vm1596 = vcmask 113664
        %v1597 = vsel %vm1596, %v1594, %v1595
        %s1599 = scalar_lea.vmem [#allocation2], 338
        %1600 = vst.msk [vmem:[%s1599] ss:$8 sm:$0x7] %vm345, %v1597
        %1601 = vst.msk [vmem:[%s1599] ss:$8 sm:$0x0] %vm345, %v1597
        %v1602 = vld [vmem:[%s196] sm:$0xf]
        %1604 = vrot.lane.b32.xlu0 %v1602, 13
        %v1605 = vpop.permute.xlu0 %1604
        %v1606 = vrot.slane %v1605, 1
        %vm1607 = vcmask 105472
        %v1608 = vsel %vm1607, %v1605, %v1606
        %s1610 = scalar_lea.vmem [#allocation2], 339
        %1611 = vst.msk [vmem:[%s1610] ss:$8 sm:$0x7] %vm345, %v1608
        %1612 = vst.msk [vmem:[%s1610] ss:$8 sm:$0x0] %vm345, %v1608
        %v1613 = vld [vmem:[%s196] sm:$0xf]
        %1615 = vrot.lane.b32.xlu0 %v1613, 12
        %v1616 = vpop.permute.xlu0 %1615
        %v1617 = vrot.slane %v1616, 1
        %vm1618 = vcmask 97280
        %v1619 = vsel %vm1618, %v1616, %v1617
        %s1621 = scalar_lea.vmem [#allocation2], 340
        %1622 = vst.msk [vmem:[%s1621] ss:$8 sm:$0x7] %vm345, %v1619
        %1623 = vst.msk [vmem:[%s1621] ss:$8 sm:$0x0] %vm345, %v1619
        %v1624 = vld [vmem:[%s196] sm:$0xf]
        %1626 = vrot.lane.b32.xlu0 %v1624, 11
        %v1627 = vpop.permute.xlu0 %1626
        %v1628 = vrot.slane %v1627, 1
        %vm1629 = vcmask 89088
        %v1630 = vsel %vm1629, %v1627, %v1628
        %s1632 = scalar_lea.vmem [#allocation2], 341
        %1633 = vst.msk [vmem:[%s1632] ss:$8 sm:$0x7] %vm345, %v1630
        %1634 = vst.msk [vmem:[%s1632] ss:$8 sm:$0x0] %vm345, %v1630
        %v1635 = vld [vmem:[%s196] sm:$0xf]
        %1637 = vrot.lane.b32.xlu0 %v1635, 10
        %v1638 = vpop.permute.xlu0 %1637
        %v1639 = vrot.slane %v1638, 1
        %vm1640 = vcmask 80896
        %v1641 = vsel %vm1640, %v1638, %v1639
        %s1643 = scalar_lea.vmem [#allocation2], 342
        %1644 = vst.msk [vmem:[%s1643] ss:$8 sm:$0x7] %vm345, %v1641
        %1645 = vst.msk [vmem:[%s1643] ss:$8 sm:$0x0] %vm345, %v1641
        %v1646 = vld [vmem:[%s196] sm:$0xf]
        %1648 = vrot.lane.b32.xlu0 %v1646, 9
        %v1649 = vpop.permute.xlu0 %1648
        %v1650 = vrot.slane %v1649, 1
        %vm1651 = vcmask 72704
        %v1652 = vsel %vm1651, %v1649, %v1650
        %s1654 = scalar_lea.vmem [#allocation2], 343
        %1655 = vst.msk [vmem:[%s1654] ss:$8 sm:$0x7] %vm345, %v1652
        %1656 = vst.msk [vmem:[%s1654] ss:$8 sm:$0x0] %vm345, %v1652
        %v1657 = vld [vmem:[%s196] sm:$0xf]
        %1659 = vrot.lane.b32.xlu0 %v1657, 8
        %v1660 = vpop.permute.xlu0 %1659
        %v1661 = vrot.slane %v1660, 1
        %vm1662 = vcmask 64512
        %v1663 = vsel %vm1662, %v1660, %v1661
        %s1665 = scalar_lea.vmem [#allocation2], 360
        %1666 = vst.msk [vmem:[%s1665] ss:$8 sm:$0x7] %vm345, %v1663
        %1667 = vst.msk [vmem:[%s1665] ss:$8 sm:$0x0] %vm345, %v1663
        %v1668 = vld [vmem:[%s196] sm:$0xf]
        %1670 = vrot.lane.b32.xlu0 %v1668, 7
        %v1671 = vpop.permute.xlu0 %1670
        %v1672 = vrot.slane %v1671, 1
        %vm1673 = vcmask 56320
        %v1674 = vsel %vm1673, %v1671, %v1672
        %s1676 = scalar_lea.vmem [#allocation2], 361
        %1677 = vst.msk [vmem:[%s1676] ss:$8 sm:$0x7] %vm345, %v1674
        %1678 = vst.msk [vmem:[%s1676] ss:$8 sm:$0x0] %vm345, %v1674
        %v1679 = vld [vmem:[%s196] sm:$0xf]
        %1681 = vrot.lane.b32.xlu0 %v1679, 6
        %v1682 = vpop.permute.xlu0 %1681
        %v1683 = vrot.slane %v1682, 1
        %vm1684 = vcmask 48128
        %v1685 = vsel %vm1684, %v1682, %v1683
        %s1687 = scalar_lea.vmem [#allocation2], 362
        %1688 = vst.msk [vmem:[%s1687] ss:$8 sm:$0x7] %vm345, %v1685
        %1689 = vst.msk [vmem:[%s1687] ss:$8 sm:$0x0] %vm345, %v1685
        %v1690 = vld [vmem:[%s196] sm:$0xf]
        %1692 = vrot.lane.b32.xlu0 %v1690, 5
        %v1693 = vpop.permute.xlu0 %1692
        %v1694 = vrot.slane %v1693, 1
        %vm1695 = vcmask 39936
        %v1696 = vsel %vm1695, %v1693, %v1694
        %s1698 = scalar_lea.vmem [#allocation2], 363
        %1699 = vst.msk [vmem:[%s1698] ss:$8 sm:$0x7] %vm345, %v1696
        %1700 = vst.msk [vmem:[%s1698] ss:$8 sm:$0x0] %vm345, %v1696
        %v1701 = vld [vmem:[%s196] sm:$0xf]
        %1703 = vrot.lane.b32.xlu0 %v1701, 4
        %v1704 = vpop.permute.xlu0 %1703
        %v1705 = vrot.slane %v1704, 1
        %vm1706 = vcmask 31744
        %v1707 = vsel %vm1706, %v1704, %v1705
        %s1709 = scalar_lea.vmem [#allocation2], 364
        %1710 = vst.msk [vmem:[%s1709] ss:$8 sm:$0x7] %vm345, %v1707
        %1711 = vst.msk [vmem:[%s1709] ss:$8 sm:$0x0] %vm345, %v1707
        %v1712 = vld [vmem:[%s196] sm:$0xf]
        %1714 = vrot.lane.b32.xlu0 %v1712, 3
        %v1715 = vpop.permute.xlu0 %1714
        %v1716 = vrot.slane %v1715, 1
        %vm1717 = vcmask 23552
        %v1718 = vsel %vm1717, %v1715, %v1716
        %s1720 = scalar_lea.vmem [#allocation2], 365
        %1721 = vst.msk [vmem:[%s1720] ss:$8 sm:$0x7] %vm345, %v1718
        %1722 = vst.msk [vmem:[%s1720] ss:$8 sm:$0x0] %vm345, %v1718
        %v1723 = vld [vmem:[%s196] sm:$0xf]
        %1725 = vrot.lane.b32.xlu0 %v1723, 2
        %v1726 = vpop.permute.xlu0 %1725
        %v1727 = vrot.slane %v1726, 1
        %vm1728 = vcmask 15360
        %v1729 = vsel %vm1728, %v1726, %v1727
        %s1731 = scalar_lea.vmem [#allocation2], 366
        %1732 = vst.msk [vmem:[%s1731] ss:$8 sm:$0x7] %vm345, %v1729
        %1733 = vst.msk [vmem:[%s1731] ss:$8 sm:$0x0] %vm345, %v1729
        %v1734 = vld [vmem:[%s196] sm:$0xf]
        %1736 = vrot.lane.b32.xlu0 %v1734, 1
        %v1737 = vpop.permute.xlu0 %1736
        %v1738 = vrot.slane %v1737, 1
        %vm1739 = vcmask 7168
        %v1740 = vsel %vm1739, %v1737, %v1738
        %s1742 = scalar_lea.vmem [#allocation2], 367
        %1743 = vst.msk [vmem:[%s1742] ss:$8 sm:$0x7] %vm345, %v1740
        %1744 = vst.msk [vmem:[%s1742] ss:$8 sm:$0x0] %vm345, %v1740
        %v1745 = vld [vmem:[%s187] sm:$0xff]
        %v1746 = vld [vmem:[%s187 + $0x8] sm:$0xff]
        %v1747 = vld [vmem:[%s187 + $0x10] sm:$0xff]
        %v1748 = vld [vmem:[#allocation2] sm:$0xff]
        %v1749 = vld [vmem:[#allocation2 + $0x8] sm:$0xff]
        %v1750 = vld [vmem:[#allocation2 + $0x10] sm:$0xff]
        %v1751 = vld [vmem:[#allocation2 + $0x18] sm:$0xff]
        %v1752 = vld [vmem:[#allocation2 + $0x20] sm:$0xff]
        %v1753 = vld [vmem:[#allocation2 + $0x28] sm:$0xff]
        %v1754 = vld [vmem:[#allocation2 + $0x30] sm:$0xff]
        %v1755 = vld [vmem:[#allocation2 + $0x38] sm:$0xff]
        %v1756 = vld [vmem:[#allocation2 + $0x40] sm:$0xff]
        %v1757 = vld [vmem:[#allocation2 + $0x48] sm:$0xff]
        %v1758 = vld [vmem:[#allocation2 + $0x50] sm:$0xff]
        %v1759 = vld [vmem:[#allocation2 + $0x58] sm:$0xff]
        %v1760 = vld [vmem:[#allocation2 + $0x60] sm:$0xff]
        %v1761 = vld [vmem:[#allocation2 + $0x68] sm:$0xff]
        %v1762 = vld [vmem:[#allocation2 + $0x70] sm:$0xff]
        %v1763 = vld [vmem:[#allocation2 + $0x78] sm:$0xff]
        %v1764 = vld [vmem:[#allocation2 + $0x80] sm:$0xff]
        %v1765 = vld [vmem:[#allocation2 + $0x88] sm:$0xff]
        %v1766 = vld [vmem:[#allocation2 + $0x90] sm:$0xff]
        %v1767 = vld [vmem:[#allocation2 + $0x98] sm:$0xff]
        %v1768 = vld [vmem:[#allocation2 + $0xa0] sm:$0xff]
        %v1769 = vld [vmem:[#allocation2 + $0xa8] sm:$0xff]
        %v1770 = vld [vmem:[#allocation2 + $0xb0] sm:$0xff]
        %v1771 = vld [vmem:[#allocation2 + $0xb8] sm:$0xff]
        %v1772 = vld [vmem:[#allocation2 + $0xc0] sm:$0xff]
        %v1773 = vld [vmem:[#allocation2 + $0xc8] sm:$0xff]
        %v1774 = vld [vmem:[#allocation2 + $0xd0] sm:$0xff]
        %v1775 = vld [vmem:[#allocation2 + $0xd8] sm:$0xff]
        %v1776 = vld [vmem:[#allocation2 + $0xe0] sm:$0xff]
        %v1777 = vld [vmem:[#allocation2 + $0xe8] sm:$0xff]
        %v1778 = vld [vmem:[#allocation2 + $0xf0] sm:$0xff]
        %v1779 = vld [vmem:[#allocation2 + $0xf8] sm:$0xff]
        %v1780 = vld [vmem:[#allocation2 + $0x100] sm:$0xff]
        %v1781 = vld [vmem:[#allocation2 + $0x108] sm:$0xff]
        %v1782 = vld [vmem:[#allocation2 + $0x110] sm:$0xff]
        %v1783 = vld [vmem:[#allocation2 + $0x118] sm:$0xff]
        %v1784 = vld [vmem:[#allocation2 + $0x120] sm:$0xff]
        %v1785 = vld [vmem:[#allocation2 + $0x128] sm:$0xff]
        %v1786 = vld [vmem:[#allocation2 + $0x130] sm:$0xff]
        %v1787 = vld [vmem:[#allocation2 + $0x138] sm:$0xff]
        %v1788 = vld [vmem:[#allocation2 + $0x140] sm:$0xff]
        %v1789 = vld [vmem:[#allocation2 + $0x148] sm:$0xff]
        %v1790 = vld [vmem:[#allocation2 + $0x150] sm:$0xff]
        %v1791 = vld [vmem:[#allocation2 + $0x158] sm:$0xff]
        %v1792 = vld [vmem:[#allocation2 + $0x160] sm:$0xff]
        %v1793 = vld [vmem:[#allocation2 + $0x168] sm:$0xff]
        %v1794 = vld [vmem:[#allocation2 + $0x170] sm:$0xff]
        %v1795 = vld [vmem:[#allocation2 + $0x178] sm:$0xff]
        %v1796 = vand.u32 %v1794, 4294901760
        %1797 = vmatprep.subr.mxu0 %v1796
        %v1798 = vand.u32 %v1793, 4294901760
        %1799 = vmatpush1.msra.mxu0 %v1798
        %v1800 = vand.u32 %v1791, 4294901760
        %1801 = vmatprep.subr.mxu0 %v1800
        %v1802 = vand.u32 %v1790, 4294901760
        %1803 = vmatpush1.msra.mxu0 %v1802
        %v1804 = vand.u32 %v1788, 4294901760
        %1805 = vmatprep.subr.mxu0 %v1804
        %v1806 = vand.u32 %v1787, 4294901760
        %1807 = vmatpush1.msra.mxu0 %v1806
        %v1808 = vand.u32 %v1785, 4294901760
        %1809 = vmatprep.subr.mxu0 %v1808
        %v1810 = vand.u32 %v1784, 4294901760
        %1811 = vmatpush1.msra.mxu0 %v1810
        %v1812 = vand.u32 %v1782, 4294901760
        %1813 = vmatprep.subr.mxu0 %v1812
        %v1814 = vand.u32 %v1781, 4294901760
        %1815 = vmatpush1.msra.mxu0 %v1814
        %v1816 = vand.u32 %v1779, 4294901760
        %1817 = vmatprep.subr.mxu0 %v1816
        %v1818 = vand.u32 %v1778, 4294901760
        %1819 = vmatpush1.msra.mxu0 %v1818
        %v1820 = vand.u32 %v1776, 4294901760
        %1821 = vmatprep.subr.mxu0 %v1820
        %v1822 = vand.u32 %v1775, 4294901760
        %1823 = vmatpush1.msra.mxu0 %v1822
        %v1824 = vand.u32 %v1773, 4294901760
        %1825 = vmatprep.subr.mxu0 %v1824
        %v1826 = vand.u32 %v1772, 4294901760
        %1827 = vmatpush1.msra.mxu0 %v1826
        %v1828 = vand.u32 %v1770, 4294901760
        %1829 = vmatprep.subr.mxu0 %v1828
        %v1830 = vand.u32 %v1769, 4294901760
        %1831 = vmatpush1.msra.mxu0 %v1830
        %v1832 = vand.u32 %v1767, 4294901760
        %1833 = vmatprep.subr.mxu0 %v1832
        %v1834 = vand.u32 %v1766, 4294901760
        %1835 = vmatpush1.msra.mxu0 %v1834
        %v1836 = vand.u32 %v1764, 4294901760
        %1837 = vmatprep.subr.mxu0 %v1836
        %v1838 = vand.u32 %v1763, 4294901760
        %1839 = vmatpush1.msra.mxu0 %v1838
        %v1840 = vand.u32 %v1761, 4294901760
        %1841 = vmatprep.subr.mxu0 %v1840
        %v1842 = vand.u32 %v1760, 4294901760
        %1843 = vmatpush1.msra.mxu0 %v1842
        %v1844 = vand.u32 %v1758, 4294901760
        %1845 = vmatprep.subr.mxu0 %v1844
        %v1846 = vand.u32 %v1757, 4294901760
        %1847 = vmatpush1.msra.mxu0 %v1846
        %v1848 = vand.u32 %v1755, 4294901760
        %1849 = vmatprep.subr.mxu0 %v1848
        %v1850 = vand.u32 %v1754, 4294901760
        %1851 = vmatpush1.msra.mxu0 %v1850
        %v1852 = vand.u32 %v1752, 4294901760
        %1853 = vmatprep.subr.mxu0 %v1852
        %v1854 = vand.u32 %v1751, 4294901760
        %1855 = vmatpush1.msra.mxu0 %v1854
        %v1856 = vand.u32 %v1749, 4294901760
        %1857 = vmatprep.subr.mxu0 %v1856
        %v1858 = vand.u32 %v1748, 4294901760
        %1859 = vmatpush1.msra.mxu0 %v1858
        %1860 = vmatprep.subr.mxu0 0.0
        %1861 = vmatpush2.msra.mxu0 0.0
        %1862 = vmatprep.subr.mxu0 0.0
        %1863 = vmatpush2.msra.mxu0 0.0
        %1864 = vmatprep.subr.mxu0 0.0
        %1865 = vmatpush2.msra.mxu0 0.0
        %1866 = vmatprep.subr.mxu0 0.0
        %1867 = vmatpush2.msra.mxu0 0.0
        %1868 = vmatprep.subr.mxu0 0.0
        %1869 = vmatpush2.msra.mxu0 0.0
        %1870 = vmatprep.subr.mxu0 0.0
        %1871 = vmatpush2.msra.mxu0 0.0
        %1872 = vmatprep.subr.mxu0 0.0
        %1873 = vmatpush2.msra.mxu0 0.0
        %1874 = vmatprep.subr.mxu0 0.0
        %1875 = vmatpush2.msra.mxu0 0.0
        %1876 = vmatprep.subr.mxu0 0.0
        %1877 = vmatpush2.msra.mxu0 0.0
        %1878 = vmatprep.subr.mxu0 0.0
        %1879 = vmatpush2.msra.mxu0 0.0
        %1880 = vmatprep.subr.mxu0 0.0
        %1881 = vmatpush2.msra.mxu0 0.0
        %1882 = vmatprep.subr.mxu0 0.0
        %1883 = vmatpush2.msra.mxu0 0.0
        %1884 = vmatprep.subr.mxu0 0.0
        %1885 = vmatpush2.msra.mxu0 0.0
        %1886 = vmatprep.subr.mxu0 0.0
        %1887 = vmatpush2.msra.mxu0 0.0
        %1888 = vmatprep.subr.mxu0 0.0
        %1889 = vmatpush2.msra.mxu0 0.0
        %1890 = vmatprep.subr.mxu0 0.0
        %1891 = vmatpush2.msra.mxu0 0.0
        %1892 = vmatprep.mubr.f32.mxu0 0.0
        %v1893 = vand.u32 %v1745, 4294901760
        %v1894 = vsub.f32 %v1745, %v1893
        %v1895 = vand.u32 %v1894, 4294901760
        %v1896 = vsub.f32 %v1894, %v1895
        %v1897 = vand.u32 %v1896, 4294901760
        %1898 = vmatmul.mubr.f32.gmra.mxu0 %v1897
        %v1899 = vpop.f32.mrf.mxu0
        %v1900 = vadd.f32 0.0, %v1899
        %v1901 = vpop.f32.mrf.mxu0
        %v1902 = vadd.f32 0.0, %v1901
        %1903 = vmatprep.mubr.f32.mxu0 0.0
        %v1904 = vand.u32 %v1746, 4294901760
        %v1905 = vsub.f32 %v1746, %v1904
        %v1906 = vand.u32 %v1905, 4294901760
        %v1907 = vsub.f32 %v1905, %v1906
        %v1908 = vand.u32 %v1907, 4294901760
        %1909 = vmatmul.mubr.f32.gmra.mxu0 %v1908
        %v1910 = vpop.f32.mrf.mxu0
        %v1911 = vadd.f32 0.0, %v1910
        %v1912 = vpop.f32.mrf.mxu0
        %v1913 = vadd.f32 0.0, %v1912
        %1914 = vmatprep.mubr.f32.mxu0 0.0
        %v1915 = vand.u32 %v1747, 4294901760
        %v1916 = vsub.f32 %v1747, %v1915
        %v1917 = vand.u32 %v1916, 4294901760
        %v1918 = vsub.f32 %v1916, %v1917
        %v1919 = vand.u32 %v1918, 4294901760
        %1920 = vmatmul.mubr.f32.gmra.mxu0 %v1919
        %v1921 = vpop.f32.mrf.mxu0
        %v1922 = vadd.f32 0.0, %v1921
        %v1923 = vpop.f32.mrf.mxu0
        %v1924 = vadd.f32 0.0, %v1923
        %1925 = vdwg.mxu0
        %v1926 = vand.u32 %v1794, 4294901760
        %v1927 = vsub.f32 %v1794, %v1926
        %v1928 = vand.u32 %v1927, 4294901760
        %v1929 = vsub.f32 %v1927, %v1928
        %v1930 = vand.u32 %v1929, 4294901760
        %1931 = vmatprep.subr.mxu0 %v1930
        %v1932 = vand.u32 %v1793, 4294901760
        %v1933 = vsub.f32 %v1793, %v1932
        %v1934 = vand.u32 %v1933, 4294901760
        %v1935 = vsub.f32 %v1933, %v1934
        %v1936 = vand.u32 %v1935, 4294901760
        %1937 = vmatpush1.msra.mxu0 %v1936
        %v1938 = vand.u32 %v1791, 4294901760
        %v1939 = vsub.f32 %v1791, %v1938
        %v1940 = vand.u32 %v1939, 4294901760
        %v1941 = vsub.f32 %v1939, %v1940
        %v1942 = vand.u32 %v1941, 4294901760
        %1943 = vmatprep.subr.mxu0 %v1942
        %v1944 = vand.u32 %v1790, 4294901760
        %v1945 = vsub.f32 %v1790, %v1944
        %v1946 = vand.u32 %v1945, 4294901760
        %v1947 = vsub.f32 %v1945, %v1946
        %v1948 = vand.u32 %v1947, 4294901760
        %1949 = vmatpush1.msra.mxu0 %v1948
        %v1950 = vand.u32 %v1788, 4294901760
        %v1951 = vsub.f32 %v1788, %v1950
        %v1952 = vand.u32 %v1951, 4294901760
        %v1953 = vsub.f32 %v1951, %v1952
        %v1954 = vand.u32 %v1953, 4294901760
        %1955 = vmatprep.subr.mxu0 %v1954
        %v1956 = vand.u32 %v1787, 4294901760
        %v1957 = vsub.f32 %v1787, %v1956
        %v1958 = vand.u32 %v1957, 4294901760
        %v1959 = vsub.f32 %v1957, %v1958
        %v1960 = vand.u32 %v1959, 4294901760
        %1961 = vmatpush1.msra.mxu0 %v1960
        %v1962 = vand.u32 %v1785, 4294901760
        %v1963 = vsub.f32 %v1785, %v1962
        %v1964 = vand.u32 %v1963, 4294901760
        %v1965 = vsub.f32 %v1963, %v1964
        %v1966 = vand.u32 %v1965, 4294901760
        %1967 = vmatprep.subr.mxu0 %v1966
        %v1968 = vand.u32 %v1784, 4294901760
        %v1969 = vsub.f32 %v1784, %v1968
        %v1970 = vand.u32 %v1969, 4294901760
        %v1971 = vsub.f32 %v1969, %v1970
        %v1972 = vand.u32 %v1971, 4294901760
        %1973 = vmatpush1.msra.mxu0 %v1972
        %v1974 = vand.u32 %v1782, 4294901760
        %v1975 = vsub.f32 %v1782, %v1974
        %v1976 = vand.u32 %v1975, 4294901760
        %v1977 = vsub.f32 %v1975, %v1976
        %v1978 = vand.u32 %v1977, 4294901760
        %1979 = vmatprep.subr.mxu0 %v1978
        %v1980 = vand.u32 %v1781, 4294901760
        %v1981 = vsub.f32 %v1781, %v1980
        %v1982 = vand.u32 %v1981, 4294901760
        %v1983 = vsub.f32 %v1981, %v1982
        %v1984 = vand.u32 %v1983, 4294901760
        %1985 = vmatpush1.msra.mxu0 %v1984
        %v1986 = vand.u32 %v1779, 4294901760
        %v1987 = vsub.f32 %v1779, %v1986
        %v1988 = vand.u32 %v1987, 4294901760
        %v1989 = vsub.f32 %v1987, %v1988
        %v1990 = vand.u32 %v1989, 4294901760
        %1991 = vmatprep.subr.mxu0 %v1990
        %v1992 = vand.u32 %v1778, 4294901760
        %v1993 = vsub.f32 %v1778, %v1992
        %v1994 = vand.u32 %v1993, 4294901760
        %v1995 = vsub.f32 %v1993, %v1994
        %v1996 = vand.u32 %v1995, 4294901760
        %1997 = vmatpush1.msra.mxu0 %v1996
        %v1998 = vand.u32 %v1776, 4294901760
        %v1999 = vsub.f32 %v1776, %v1998
        %v2000 = vand.u32 %v1999, 4294901760
        %v2001 = vsub.f32 %v1999, %v2000
        %v2002 = vand.u32 %v2001, 4294901760
        %2003 = vmatprep.subr.mxu0 %v2002
        %v2004 = vand.u32 %v1775, 4294901760
        %v2005 = vsub.f32 %v1775, %v2004
        %v2006 = vand.u32 %v2005, 4294901760
        %v2007 = vsub.f32 %v2005, %v2006
        %v2008 = vand.u32 %v2007, 4294901760
        %2009 = vmatpush1.msra.mxu0 %v2008
        %v2010 = vand.u32 %v1773, 4294901760
        %v2011 = vsub.f32 %v1773, %v2010
        %v2012 = vand.u32 %v2011, 4294901760
        %v2013 = vsub.f32 %v2011, %v2012
        %v2014 = vand.u32 %v2013, 4294901760
        %2015 = vmatprep.subr.mxu0 %v2014
        %v2016 = vand.u32 %v1772, 4294901760
        %v2017 = vsub.f32 %v1772, %v2016
        %v2018 = vand.u32 %v2017, 4294901760
        %v2019 = vsub.f32 %v2017, %v2018
        %v2020 = vand.u32 %v2019, 4294901760
        %2021 = vmatpush1.msra.mxu0 %v2020
        %v2022 = vand.u32 %v1770, 4294901760
        %v2023 = vsub.f32 %v1770, %v2022
        %v2024 = vand.u32 %v2023, 4294901760
        %v2025 = vsub.f32 %v2023, %v2024
        %v2026 = vand.u32 %v2025, 4294901760
        %2027 = vmatprep.subr.mxu0 %v2026
        %v2028 = vand.u32 %v1769, 4294901760
        %v2029 = vsub.f32 %v1769, %v2028
        %v2030 = vand.u32 %v2029, 4294901760
        %v2031 = vsub.f32 %v2029, %v2030
        %v2032 = vand.u32 %v2031, 4294901760
        %2033 = vmatpush1.msra.mxu0 %v2032
        %v2034 = vand.u32 %v1767, 4294901760
        %v2035 = vsub.f32 %v1767, %v2034
        %v2036 = vand.u32 %v2035, 4294901760
        %v2037 = vsub.f32 %v2035, %v2036
        %v2038 = vand.u32 %v2037, 4294901760
        %2039 = vmatprep.subr.mxu0 %v2038
        %v2040 = vand.u32 %v1766, 4294901760
        %v2041 = vsub.f32 %v1766, %v2040
        %v2042 = vand.u32 %v2041, 4294901760
        %v2043 = vsub.f32 %v2041, %v2042
        %v2044 = vand.u32 %v2043, 4294901760
        %2045 = vmatpush1.msra.mxu0 %v2044
        %v2046 = vand.u32 %v1764, 4294901760
        %v2047 = vsub.f32 %v1764, %v2046
        %v2048 = vand.u32 %v2047, 4294901760
        %v2049 = vsub.f32 %v2047, %v2048
        %v2050 = vand.u32 %v2049, 4294901760
        %2051 = vmatprep.subr.mxu0 %v2050
        %v2052 = vand.u32 %v1763, 4294901760
        %v2053 = vsub.f32 %v1763, %v2052
        %v2054 = vand.u32 %v2053, 4294901760
        %v2055 = vsub.f32 %v2053, %v2054
        %v2056 = vand.u32 %v2055, 4294901760
        %2057 = vmatpush1.msra.mxu0 %v2056
        %v2058 = vand.u32 %v1761, 4294901760
        %v2059 = vsub.f32 %v1761, %v2058
        %v2060 = vand.u32 %v2059, 4294901760
        %v2061 = vsub.f32 %v2059, %v2060
        %v2062 = vand.u32 %v2061, 4294901760
        %2063 = vmatprep.subr.mxu0 %v2062
        %v2064 = vand.u32 %v1760, 4294901760
        %v2065 = vsub.f32 %v1760, %v2064
        %v2066 = vand.u32 %v2065, 4294901760
        %v2067 = vsub.f32 %v2065, %v2066
        %v2068 = vand.u32 %v2067, 4294901760
        %2069 = vmatpush1.msra.mxu0 %v2068
        %v2070 = vand.u32 %v1758, 4294901760
        %v2071 = vsub.f32 %v1758, %v2070
        %v2072 = vand.u32 %v2071, 4294901760
        %v2073 = vsub.f32 %v2071, %v2072
        %v2074 = vand.u32 %v2073, 4294901760
        %2075 = vmatprep.subr.mxu0 %v2074
        %v2076 = vand.u32 %v1757, 4294901760
        %v2077 = vsub.f32 %v1757, %v2076
        %v2078 = vand.u32 %v2077, 4294901760
        %v2079 = vsub.f32 %v2077, %v2078
        %v2080 = vand.u32 %v2079, 4294901760
        %2081 = vmatpush1.msra.mxu0 %v2080
        %v2082 = vand.u32 %v1755, 4294901760
        %v2083 = vsub.f32 %v1755, %v2082
        %v2084 = vand.u32 %v2083, 4294901760
        %v2085 = vsub.f32 %v2083, %v2084
        %v2086 = vand.u32 %v2085, 4294901760
        %2087 = vmatprep.subr.mxu0 %v2086
        %v2088 = vand.u32 %v1754, 4294901760
        %v2089 = vsub.f32 %v1754, %v2088
        %v2090 = vand.u32 %v2089, 4294901760
        %v2091 = vsub.f32 %v2089, %v2090
        %v2092 = vand.u32 %v2091, 4294901760
        %2093 = vmatpush1.msra.mxu0 %v2092
        %v2094 = vand.u32 %v1752, 4294901760
        %v2095 = vsub.f32 %v1752, %v2094
        %v2096 = vand.u32 %v2095, 4294901760
        %v2097 = vsub.f32 %v2095, %v2096
        %v2098 = vand.u32 %v2097, 4294901760
        %2099 = vmatprep.subr.mxu0 %v2098
        %v2100 = vand.u32 %v1751, 4294901760
        %v2101 = vsub.f32 %v1751, %v2100
        %v2102 = vand.u32 %v2101, 4294901760
        %v2103 = vsub.f32 %v2101, %v2102
        %v2104 = vand.u32 %v2103, 4294901760
        %2105 = vmatpush1.msra.mxu0 %v2104
        %v2106 = vand.u32 %v1749, 4294901760
        %v2107 = vsub.f32 %v1749, %v2106
        %v2108 = vand.u32 %v2107, 4294901760
        %v2109 = vsub.f32 %v2107, %v2108
        %v2110 = vand.u32 %v2109, 4294901760
        %2111 = vmatprep.subr.mxu0 %v2110
        %v2112 = vand.u32 %v1748, 4294901760
        %v2113 = vsub.f32 %v1748, %v2112
        %v2114 = vand.u32 %v2113, 4294901760
        %v2115 = vsub.f32 %v2113, %v2114
        %v2116 = vand.u32 %v2115, 4294901760
        %2117 = vmatpush1.msra.mxu0 %v2116
        %2118 = vmatprep.subr.mxu0 0.0
        %2119 = vmatpush2.msra.mxu0 0.0
        %2120 = vmatprep.subr.mxu0 0.0
        %2121 = vmatpush2.msra.mxu0 0.0
        %2122 = vmatprep.subr.mxu0 0.0
        %2123 = vmatpush2.msra.mxu0 0.0
        %2124 = vmatprep.subr.mxu0 0.0
        %2125 = vmatpush2.msra.mxu0 0.0
        %2126 = vmatprep.subr.mxu0 0.0
        %2127 = vmatpush2.msra.mxu0 0.0
        %2128 = vmatprep.subr.mxu0 0.0
        %2129 = vmatpush2.msra.mxu0 0.0
        %2130 = vmatprep.subr.mxu0 0.0
        %2131 = vmatpush2.msra.mxu0 0.0
        %2132 = vmatprep.subr.mxu0 0.0
        %2133 = vmatpush2.msra.mxu0 0.0
        %2134 = vmatprep.subr.mxu0 0.0
        %2135 = vmatpush2.msra.mxu0 0.0
        %2136 = vmatprep.subr.mxu0 0.0
        %2137 = vmatpush2.msra.mxu0 0.0
        %2138 = vmatprep.subr.mxu0 0.0
        %2139 = vmatpush2.msra.mxu0 0.0
        %2140 = vmatprep.subr.mxu0 0.0
        %2141 = vmatpush2.msra.mxu0 0.0
        %2142 = vmatprep.subr.mxu0 0.0
        %2143 = vmatpush2.msra.mxu0 0.0
        %2144 = vmatprep.subr.mxu0 0.0
        %2145 = vmatpush2.msra.mxu0 0.0
        %2146 = vmatprep.subr.mxu0 0.0
        %2147 = vmatpush2.msra.mxu0 0.0
        %2148 = vmatprep.subr.mxu0 0.0
        %2149 = vmatpush2.msra.mxu0 0.0
        %2150 = vmatprep.mubr.f32.mxu0 0.0
        %v2151 = vand.u32 %v1745, 4294901760
        %2152 = vmatmul.mubr.f32.gmra.mxu0 %v2151
        %v2153 = vpop.f32.mrf.mxu0
        %v2154 = vadd.f32 %v1900, %v2153
        %v2155 = vpop.f32.mrf.mxu0
        %v2156 = vadd.f32 %v1902, %v2155
        %2157 = vmatprep.mubr.f32.mxu0 0.0
        %v2158 = vand.u32 %v1746, 4294901760
        %2159 = vmatmul.mubr.f32.gmra.mxu0 %v2158
        %v2160 = vpop.f32.mrf.mxu0
        %v2161 = vadd.f32 %v1911, %v2160
        %v2162 = vpop.f32.mrf.mxu0
        %v2163 = vadd.f32 %v1913, %v2162
        %2164 = vmatprep.mubr.f32.mxu0 0.0
        %v2165 = vand.u32 %v1747, 4294901760
        %2166 = vmatmul.mubr.f32.gmra.mxu0 %v2165
        %v2167 = vpop.f32.mrf.mxu0
        %v2168 = vadd.f32 %v1922, %v2167
        %v2169 = vpop.f32.mrf.mxu0
        %v2170 = vadd.f32 %v1924, %v2169
        %2171 = vdwg.mxu0
        %v2172 = vand.u32 %v1794, 4294901760
        %v2173 = vsub.f32 %v1794, %v2172
        %2174 = vmatprep.subr.mxu0 %v2173
        %v2175 = vand.u32 %v1793, 4294901760
        %v2176 = vsub.f32 %v1793, %v2175
        %2177 = vmatpush1.msra.mxu0 %v2176
        %v2178 = vand.u32 %v1791, 4294901760
        %v2179 = vsub.f32 %v1791, %v2178
        %2180 = vmatprep.subr.mxu0 %v2179
        %v2181 = vand.u32 %v1790, 4294901760
        %v2182 = vsub.f32 %v1790, %v2181
        %2183 = vmatpush1.msra.mxu0 %v2182
        %v2184 = vand.u32 %v1788, 4294901760
        %v2185 = vsub.f32 %v1788, %v2184
        %2186 = vmatprep.subr.mxu0 %v2185
        %v2187 = vand.u32 %v1787, 4294901760
        %v2188 = vsub.f32 %v1787, %v2187
        %2189 = vmatpush1.msra.mxu0 %v2188
        %v2190 = vand.u32 %v1785, 4294901760
        %v2191 = vsub.f32 %v1785, %v2190
        %2192 = vmatprep.subr.mxu0 %v2191
        %v2193 = vand.u32 %v1784, 4294901760
        %v2194 = vsub.f32 %v1784, %v2193
        %2195 = vmatpush1.msra.mxu0 %v2194
        %v2196 = vand.u32 %v1782, 4294901760
        %v2197 = vsub.f32 %v1782, %v2196
        %2198 = vmatprep.subr.mxu0 %v2197
        %v2199 = vand.u32 %v1781, 4294901760
        %v2200 = vsub.f32 %v1781, %v2199
        %2201 = vmatpush1.msra.mxu0 %v2200
        %v2202 = vand.u32 %v1779, 4294901760
        %v2203 = vsub.f32 %v1779, %v2202
        %2204 = vmatprep.subr.mxu0 %v2203
        %v2205 = vand.u32 %v1778, 4294901760
        %v2206 = vsub.f32 %v1778, %v2205
        %2207 = vmatpush1.msra.mxu0 %v2206
        %v2208 = vand.u32 %v1776, 4294901760
        %v2209 = vsub.f32 %v1776, %v2208
        %2210 = vmatprep.subr.mxu0 %v2209
        %v2211 = vand.u32 %v1775, 4294901760
        %v2212 = vsub.f32 %v1775, %v2211
        %2213 = vmatpush1.msra.mxu0 %v2212
        %v2214 = vand.u32 %v1773, 4294901760
        %v2215 = vsub.f32 %v1773, %v2214
        %2216 = vmatprep.subr.mxu0 %v2215
        %v2217 = vand.u32 %v1772, 4294901760
        %v2218 = vsub.f32 %v1772, %v2217
        %2219 = vmatpush1.msra.mxu0 %v2218
        %v2220 = vand.u32 %v1770, 4294901760
        %v2221 = vsub.f32 %v1770, %v2220
        %2222 = vmatprep.subr.mxu0 %v2221
        %v2223 = vand.u32 %v1769, 4294901760
        %v2224 = vsub.f32 %v1769, %v2223
        %2225 = vmatpush1.msra.mxu0 %v2224
        %v2226 = vand.u32 %v1767, 4294901760
        %v2227 = vsub.f32 %v1767, %v2226
        %2228 = vmatprep.subr.mxu0 %v2227
        %v2229 = vand.u32 %v1766, 4294901760
        %v2230 = vsub.f32 %v1766, %v2229
        %2231 = vmatpush1.msra.mxu0 %v2230
        %v2232 = vand.u32 %v1764, 4294901760
        %v2233 = vsub.f32 %v1764, %v2232
        %2234 = vmatprep.subr.mxu0 %v2233
        %v2235 = vand.u32 %v1763, 4294901760
        %v2236 = vsub.f32 %v1763, %v2235
        %2237 = vmatpush1.msra.mxu0 %v2236
        %v2238 = vand.u32 %v1761, 4294901760
        %v2239 = vsub.f32 %v1761, %v2238
        %2240 = vmatprep.subr.mxu0 %v2239
        %v2241 = vand.u32 %v1760, 4294901760
        %v2242 = vsub.f32 %v1760, %v2241
        %2243 = vmatpush1.msra.mxu0 %v2242
        %v2244 = vand.u32 %v1758, 4294901760
        %v2245 = vsub.f32 %v1758, %v2244
        %2246 = vmatprep.subr.mxu0 %v2245
        %v2247 = vand.u32 %v1757, 4294901760
        %v2248 = vsub.f32 %v1757, %v2247
        %2249 = vmatpush1.msra.mxu0 %v2248
        %v2250 = vand.u32 %v1755, 4294901760
        %v2251 = vsub.f32 %v1755, %v2250
        %2252 = vmatprep.subr.mxu0 %v2251
        %v2253 = vand.u32 %v1754, 4294901760
        %v2254 = vsub.f32 %v1754, %v2253
        %2255 = vmatpush1.msra.mxu0 %v2254
        %v2256 = vand.u32 %v1752, 4294901760
        %v2257 = vsub.f32 %v1752, %v2256
        %2258 = vmatprep.subr.mxu0 %v2257
        %v2259 = vand.u32 %v1751, 4294901760
        %v2260 = vsub.f32 %v1751, %v2259
        %2261 = vmatpush1.msra.mxu0 %v2260
        %v2262 = vand.u32 %v1749, 4294901760
        %v2263 = vsub.f32 %v1749, %v2262
        %2264 = vmatprep.subr.mxu0 %v2263
        %v2265 = vand.u32 %v1748, 4294901760
        %v2266 = vsub.f32 %v1748, %v2265
        %2267 = vmatpush1.msra.mxu0 %v2266
        %2268 = vmatprep.subr.mxu0 0.0
        %2269 = vmatpush2.msra.mxu0 0.0
        %2270 = vmatprep.subr.mxu0 0.0
        %2271 = vmatpush2.msra.mxu0 0.0
        %2272 = vmatprep.subr.mxu0 0.0
        %2273 = vmatpush2.msra.mxu0 0.0
        %2274 = vmatprep.subr.mxu0 0.0
        %2275 = vmatpush2.msra.mxu0 0.0
        %2276 = vmatprep.subr.mxu0 0.0
        %2277 = vmatpush2.msra.mxu0 0.0
        %2278 = vmatprep.subr.mxu0 0.0
        %2279 = vmatpush2.msra.mxu0 0.0
        %2280 = vmatprep.subr.mxu0 0.0
        %2281 = vmatpush2.msra.mxu0 0.0
        %2282 = vmatprep.subr.mxu0 0.0
        %2283 = vmatpush2.msra.mxu0 0.0
        %2284 = vmatprep.subr.mxu0 0.0
        %2285 = vmatpush2.msra.mxu0 0.0
        %2286 = vmatprep.subr.mxu0 0.0
        %2287 = vmatpush2.msra.mxu0 0.0
        %2288 = vmatprep.subr.mxu0 0.0
        %2289 = vmatpush2.msra.mxu0 0.0
        %2290 = vmatprep.subr.mxu0 0.0
        %2291 = vmatpush2.msra.mxu0 0.0
        %2292 = vmatprep.subr.mxu0 0.0
        %2293 = vmatpush2.msra.mxu0 0.0
        %2294 = vmatprep.subr.mxu0 0.0
        %2295 = vmatpush2.msra.mxu0 0.0
        %2296 = vmatprep.subr.mxu0 0.0
        %2297 = vmatpush2.msra.mxu0 0.0
        %2298 = vmatprep.subr.mxu0 0.0
        %2299 = vmatpush2.msra.mxu0 0.0
        %2300 = vmatprep.mubr.f32.mxu0 0.0
        %v2301 = vand.u32 %v1745, 4294901760
        %v2302 = vsub.f32 %v1745, %v2301
        %2303 = vmatmul.mubr.f32.gmra.mxu0 %v2302
        %v2304 = vpop.f32.mrf.mxu0
        %v2305 = vadd.f32 %v2154, %v2304
        %v2306 = vpop.f32.mrf.mxu0
        %v2307 = vadd.f32 %v2156, %v2306
        %2308 = vmatprep.mubr.f32.mxu0 0.0
        %v2309 = vand.u32 %v1746, 4294901760
        %v2310 = vsub.f32 %v1746, %v2309
        %2311 = vmatmul.mubr.f32.gmra.mxu0 %v2310
        %v2312 = vpop.f32.mrf.mxu0
        %v2313 = vadd.f32 %v2161, %v2312
        %v2314 = vpop.f32.mrf.mxu0
        %v2315 = vadd.f32 %v2163, %v2314
        %2316 = vmatprep.mubr.f32.mxu0 0.0
        %v2317 = vand.u32 %v1747, 4294901760
        %v2318 = vsub.f32 %v1747, %v2317
        %2319 = vmatmul.mubr.f32.gmra.mxu0 %v2318
        %v2320 = vpop.f32.mrf.mxu0
        %v2321 = vadd.f32 %v2168, %v2320
        %v2322 = vpop.f32.mrf.mxu0
        %v2323 = vadd.f32 %v2170, %v2322
        %2324 = vdwg.mxu0
        %v2325 = vand.u32 %v1794, 4294901760
        %2326 = vmatprep.subr.mxu0 %v2325
        %v2327 = vand.u32 %v1793, 4294901760
        %2328 = vmatpush1.msra.mxu0 %v2327
        %v2329 = vand.u32 %v1791, 4294901760
        %2330 = vmatprep.subr.mxu0 %v2329
        %v2331 = vand.u32 %v1790, 4294901760
        %2332 = vmatpush1.msra.mxu0 %v2331
        %v2333 = vand.u32 %v1788, 4294901760
        %2334 = vmatprep.subr.mxu0 %v2333
        %v2335 = vand.u32 %v1787, 4294901760
        %2336 = vmatpush1.msra.mxu0 %v2335
        %v2337 = vand.u32 %v1785, 4294901760
        %2338 = vmatprep.subr.mxu0 %v2337
        %v2339 = vand.u32 %v1784, 4294901760
        %2340 = vmatpush1.msra.mxu0 %v2339
        %v2341 = vand.u32 %v1782, 4294901760
        %2342 = vmatprep.subr.mxu0 %v2341
        %v2343 = vand.u32 %v1781, 4294901760
        %2344 = vmatpush1.msra.mxu0 %v2343
        %v2345 = vand.u32 %v1779, 4294901760
        %2346 = vmatprep.subr.mxu0 %v2345
        %v2347 = vand.u32 %v1778, 4294901760
        %2348 = vmatpush1.msra.mxu0 %v2347
        %v2349 = vand.u32 %v1776, 4294901760
        %2350 = vmatprep.subr.mxu0 %v2349
        %v2351 = vand.u32 %v1775, 4294901760
        %2352 = vmatpush1.msra.mxu0 %v2351
        %v2353 = vand.u32 %v1773, 4294901760
        %2354 = vmatprep.subr.mxu0 %v2353
        %v2355 = vand.u32 %v1772, 4294901760
        %2356 = vmatpush1.msra.mxu0 %v2355
        %v2357 = vand.u32 %v1770, 4294901760
        %2358 = vmatprep.subr.mxu0 %v2357
        %v2359 = vand.u32 %v1769, 4294901760
        %2360 = vmatpush1.msra.mxu0 %v2359
        %v2361 = vand.u32 %v1767, 4294901760
        %2362 = vmatprep.subr.mxu0 %v2361
        %v2363 = vand.u32 %v1766, 4294901760
        %2364 = vmatpush1.msra.mxu0 %v2363
        %v2365 = vand.u32 %v1764, 4294901760
        %2366 = vmatprep.subr.mxu0 %v2365
        %v2367 = vand.u32 %v1763, 4294901760
        %2368 = vmatpush1.msra.mxu0 %v2367
        %v2369 = vand.u32 %v1761, 4294901760
        %2370 = vmatprep.subr.mxu0 %v2369
        %v2371 = vand.u32 %v1760, 4294901760
        %2372 = vmatpush1.msra.mxu0 %v2371
        %v2373 = vand.u32 %v1758, 4294901760
        %2374 = vmatprep.subr.mxu0 %v2373
        %v2375 = vand.u32 %v1757, 4294901760
        %2376 = vmatpush1.msra.mxu0 %v2375
        %v2377 = vand.u32 %v1755, 4294901760
        %2378 = vmatprep.subr.mxu0 %v2377
        %v2379 = vand.u32 %v1754, 4294901760
        %2380 = vmatpush1.msra.mxu0 %v2379
        %v2381 = vand.u32 %v1752, 4294901760
        %2382 = vmatprep.subr.mxu0 %v2381
        %v2383 = vand.u32 %v1751, 4294901760
        %2384 = vmatpush1.msra.mxu0 %v2383
        %v2385 = vand.u32 %v1749, 4294901760
        %2386 = vmatprep.subr.mxu0 %v2385
        %v2387 = vand.u32 %v1748, 4294901760
        %2388 = vmatpush1.msra.mxu0 %v2387
        %2389 = vmatprep.subr.mxu0 0.0
        %2390 = vmatpush2.msra.mxu0 0.0
        %2391 = vmatprep.subr.mxu0 0.0
        %2392 = vmatpush2.msra.mxu0 0.0
        %2393 = vmatprep.subr.mxu0 0.0
        %2394 = vmatpush2.msra.mxu0 0.0
        %2395 = vmatprep.subr.mxu0 0.0
        %2396 = vmatpush2.msra.mxu0 0.0
        %2397 = vmatprep.subr.mxu0 0.0
        %2398 = vmatpush2.msra.mxu0 0.0
        %2399 = vmatprep.subr.mxu0 0.0
        %2400 = vmatpush2.msra.mxu0 0.0
        %2401 = vmatprep.subr.mxu0 0.0
        %2402 = vmatpush2.msra.mxu0 0.0
        %2403 = vmatprep.subr.mxu0 0.0
        %2404 = vmatpush2.msra.mxu0 0.0
        %2405 = vmatprep.subr.mxu0 0.0
        %2406 = vmatpush2.msra.mxu0 0.0
        %2407 = vmatprep.subr.mxu0 0.0
        %2408 = vmatpush2.msra.mxu0 0.0
        %2409 = vmatprep.subr.mxu0 0.0
        %2410 = vmatpush2.msra.mxu0 0.0
        %2411 = vmatprep.subr.mxu0 0.0
        %2412 = vmatpush2.msra.mxu0 0.0
        %2413 = vmatprep.subr.mxu0 0.0
        %2414 = vmatpush2.msra.mxu0 0.0
        %2415 = vmatprep.subr.mxu0 0.0
        %2416 = vmatpush2.msra.mxu0 0.0
        %2417 = vmatprep.subr.mxu0 0.0
        %2418 = vmatpush2.msra.mxu0 0.0
        %2419 = vmatprep.subr.mxu0 0.0
        %2420 = vmatpush2.msra.mxu0 0.0
        %2421 = vmatprep.mubr.f32.mxu0 0.0
        %v2422 = vand.u32 %v1745, 4294901760
        %v2423 = vsub.f32 %v1745, %v2422
        %v2424 = vand.u32 %v2423, 4294901760
        %2425 = vmatmul.mubr.f32.gmra.mxu0 %v2424
        %v2426 = vpop.f32.mrf.mxu0
        %v2427 = vadd.f32 %v2305, %v2426
        %v2428 = vpop.f32.mrf.mxu0
        %v2429 = vadd.f32 %v2307, %v2428
        %2430 = vmatprep.mubr.f32.mxu0 0.0
        %v2431 = vand.u32 %v1746, 4294901760
        %v2432 = vsub.f32 %v1746, %v2431
        %v2433 = vand.u32 %v2432, 4294901760
        %2434 = vmatmul.mubr.f32.gmra.mxu0 %v2433
        %v2435 = vpop.f32.mrf.mxu0
        %v2436 = vadd.f32 %v2313, %v2435
        %v2437 = vpop.f32.mrf.mxu0
        %v2438 = vadd.f32 %v2315, %v2437
        %2439 = vmatprep.mubr.f32.mxu0 0.0
        %v2440 = vand.u32 %v1747, 4294901760
        %v2441 = vsub.f32 %v1747, %v2440
        %v2442 = vand.u32 %v2441, 4294901760
        %2443 = vmatmul.mubr.f32.gmra.mxu0 %v2442
        %v2444 = vpop.f32.mrf.mxu0
        %v2445 = vadd.f32 %v2321, %v2444
        %v2446 = vpop.f32.mrf.mxu0
        %v2447 = vadd.f32 %v2323, %v2446
        %2448 = vdwg.mxu0
        %v2449 = vand.u32 %v1794, 4294901760
        %v2450 = vsub.f32 %v1794, %v2449
        %v2451 = vand.u32 %v2450, 4294901760
        %2452 = vmatprep.subr.mxu0 %v2451
        %v2453 = vand.u32 %v1793, 4294901760
        %v2454 = vsub.f32 %v1793, %v2453
        %v2455 = vand.u32 %v2454, 4294901760
        %2456 = vmatpush1.msra.mxu0 %v2455
        %v2457 = vand.u32 %v1791, 4294901760
        %v2458 = vsub.f32 %v1791, %v2457
        %v2459 = vand.u32 %v2458, 4294901760
        %2460 = vmatprep.subr.mxu0 %v2459
        %v2461 = vand.u32 %v1790, 4294901760
        %v2462 = vsub.f32 %v1790, %v2461
        %v2463 = vand.u32 %v2462, 4294901760
        %2464 = vmatpush1.msra.mxu0 %v2463
        %v2465 = vand.u32 %v1788, 4294901760
        %v2466 = vsub.f32 %v1788, %v2465
        %v2467 = vand.u32 %v2466, 4294901760
        %2468 = vmatprep.subr.mxu0 %v2467
        %v2469 = vand.u32 %v1787, 4294901760
        %v2470 = vsub.f32 %v1787, %v2469
        %v2471 = vand.u32 %v2470, 4294901760
        %2472 = vmatpush1.msra.mxu0 %v2471
        %v2473 = vand.u32 %v1785, 4294901760
        %v2474 = vsub.f32 %v1785, %v2473
        %v2475 = vand.u32 %v2474, 4294901760
        %2476 = vmatprep.subr.mxu0 %v2475
        %v2477 = vand.u32 %v1784, 4294901760
        %v2478 = vsub.f32 %v1784, %v2477
        %v2479 = vand.u32 %v2478, 4294901760
        %2480 = vmatpush1.msra.mxu0 %v2479
        %v2481 = vand.u32 %v1782, 4294901760
        %v2482 = vsub.f32 %v1782, %v2481
        %v2483 = vand.u32 %v2482, 4294901760
        %2484 = vmatprep.subr.mxu0 %v2483
        %v2485 = vand.u32 %v1781, 4294901760
        %v2486 = vsub.f32 %v1781, %v2485
        %v2487 = vand.u32 %v2486, 4294901760
        %2488 = vmatpush1.msra.mxu0 %v2487
        %v2489 = vand.u32 %v1779, 4294901760
        %v2490 = vsub.f32 %v1779, %v2489
        %v2491 = vand.u32 %v2490, 4294901760
        %2492 = vmatprep.subr.mxu0 %v2491
        %v2493 = vand.u32 %v1778, 4294901760
        %v2494 = vsub.f32 %v1778, %v2493
        %v2495 = vand.u32 %v2494, 4294901760
        %2496 = vmatpush1.msra.mxu0 %v2495
        %v2497 = vand.u32 %v1776, 4294901760
        %v2498 = vsub.f32 %v1776, %v2497
        %v2499 = vand.u32 %v2498, 4294901760
        %2500 = vmatprep.subr.mxu0 %v2499
        %v2501 = vand.u32 %v1775, 4294901760
        %v2502 = vsub.f32 %v1775, %v2501
        %v2503 = vand.u32 %v2502, 4294901760
        %2504 = vmatpush1.msra.mxu0 %v2503
        %v2505 = vand.u32 %v1773, 4294901760
        %v2506 = vsub.f32 %v1773, %v2505
        %v2507 = vand.u32 %v2506, 4294901760
        %2508 = vmatprep.subr.mxu0 %v2507
        %v2509 = vand.u32 %v1772, 4294901760
        %v2510 = vsub.f32 %v1772, %v2509
        %v2511 = vand.u32 %v2510, 4294901760
        %2512 = vmatpush1.msra.mxu0 %v2511
        %v2513 = vand.u32 %v1770, 4294901760
        %v2514 = vsub.f32 %v1770, %v2513
        %v2515 = vand.u32 %v2514, 4294901760
        %2516 = vmatprep.subr.mxu0 %v2515
        %v2517 = vand.u32 %v1769, 4294901760
        %v2518 = vsub.f32 %v1769, %v2517
        %v2519 = vand.u32 %v2518, 4294901760
        %2520 = vmatpush1.msra.mxu0 %v2519
        %v2521 = vand.u32 %v1767, 4294901760
        %v2522 = vsub.f32 %v1767, %v2521
        %v2523 = vand.u32 %v2522, 4294901760
        %2524 = vmatprep.subr.mxu0 %v2523
        %v2525 = vand.u32 %v1766, 4294901760
        %v2526 = vsub.f32 %v1766, %v2525
        %v2527 = vand.u32 %v2526, 4294901760
        %2528 = vmatpush1.msra.mxu0 %v2527
        %v2529 = vand.u32 %v1764, 4294901760
        %v2530 = vsub.f32 %v1764, %v2529
        %v2531 = vand.u32 %v2530, 4294901760
        %2532 = vmatprep.subr.mxu0 %v2531
        %v2533 = vand.u32 %v1763, 4294901760
        %v2534 = vsub.f32 %v1763, %v2533
        %v2535 = vand.u32 %v2534, 4294901760
        %2536 = vmatpush1.msra.mxu0 %v2535
        %v2537 = vand.u32 %v1761, 4294901760
        %v2538 = vsub.f32 %v1761, %v2537
        %v2539 = vand.u32 %v2538, 4294901760
        %2540 = vmatprep.subr.mxu0 %v2539
        %v2541 = vand.u32 %v1760, 4294901760
        %v2542 = vsub.f32 %v1760, %v2541
        %v2543 = vand.u32 %v2542, 4294901760
        %2544 = vmatpush1.msra.mxu0 %v2543
        %v2545 = vand.u32 %v1758, 4294901760
        %v2546 = vsub.f32 %v1758, %v2545
        %v2547 = vand.u32 %v2546, 4294901760
        %2548 = vmatprep.subr.mxu0 %v2547
        %v2549 = vand.u32 %v1757, 4294901760
        %v2550 = vsub.f32 %v1757, %v2549
        %v2551 = vand.u32 %v2550, 4294901760
        %2552 = vmatpush1.msra.mxu0 %v2551
        %v2553 = vand.u32 %v1755, 4294901760
        %v2554 = vsub.f32 %v1755, %v2553
        %v2555 = vand.u32 %v2554, 4294901760
        %2556 = vmatprep.subr.mxu0 %v2555
        %v2557 = vand.u32 %v1754, 4294901760
        %v2558 = vsub.f32 %v1754, %v2557
        %v2559 = vand.u32 %v2558, 4294901760
        %2560 = vmatpush1.msra.mxu0 %v2559
        %v2561 = vand.u32 %v1752, 4294901760
        %v2562 = vsub.f32 %v1752, %v2561
        %v2563 = vand.u32 %v2562, 4294901760
        %2564 = vmatprep.subr.mxu0 %v2563
        %v2565 = vand.u32 %v1751, 4294901760
        %v2566 = vsub.f32 %v1751, %v2565
        %v2567 = vand.u32 %v2566, 4294901760
        %2568 = vmatpush1.msra.mxu0 %v2567
        %v2569 = vand.u32 %v1749, 4294901760
        %v2570 = vsub.f32 %v1749, %v2569
        %v2571 = vand.u32 %v2570, 4294901760
        %2572 = vmatprep.subr.mxu0 %v2571
        %v2573 = vand.u32 %v1748, 4294901760
        %v2574 = vsub.f32 %v1748, %v2573
        %v2575 = vand.u32 %v2574, 4294901760
        %2576 = vmatpush1.msra.mxu0 %v2575
        %2577 = vmatprep.subr.mxu0 0.0
        %2578 = vmatpush2.msra.mxu0 0.0
        %2579 = vmatprep.subr.mxu0 0.0
        %2580 = vmatpush2.msra.mxu0 0.0
        %2581 = vmatprep.subr.mxu0 0.0
        %2582 = vmatpush2.msra.mxu0 0.0
        %2583 = vmatprep.subr.mxu0 0.0
        %2584 = vmatpush2.msra.mxu0 0.0
        %2585 = vmatprep.subr.mxu0 0.0
        %2586 = vmatpush2.msra.mxu0 0.0
        %2587 = vmatprep.subr.mxu0 0.0
        %2588 = vmatpush2.msra.mxu0 0.0
        %2589 = vmatprep.subr.mxu0 0.0
        %2590 = vmatpush2.msra.mxu0 0.0
        %2591 = vmatprep.subr.mxu0 0.0
        %2592 = vmatpush2.msra.mxu0 0.0
        %2593 = vmatprep.subr.mxu0 0.0
        %2594 = vmatpush2.msra.mxu0 0.0
        %2595 = vmatprep.subr.mxu0 0.0
        %2596 = vmatpush2.msra.mxu0 0.0
        %2597 = vmatprep.subr.mxu0 0.0
        %2598 = vmatpush2.msra.mxu0 0.0
        %2599 = vmatprep.subr.mxu0 0.0
        %2600 = vmatpush2.msra.mxu0 0.0
        %2601 = vmatprep.subr.mxu0 0.0
        %2602 = vmatpush2.msra.mxu0 0.0
        %2603 = vmatprep.subr.mxu0 0.0
        %2604 = vmatpush2.msra.mxu0 0.0
        %2605 = vmatprep.subr.mxu0 0.0
        %2606 = vmatpush2.msra.mxu0 0.0
        %2607 = vmatprep.subr.mxu0 0.0
        %2608 = vmatpush2.msra.mxu0 0.0
        %2609 = vmatprep.mubr.f32.mxu0 0.0
        %v2610 = vand.u32 %v1745, 4294901760
        %2611 = vmatmul.mubr.f32.gmra.mxu0 %v2610
        %v2612 = vpop.f32.mrf.mxu0
        %v2613 = vadd.f32 %v2427, %v2612
        %v2614 = vpop.f32.mrf.mxu0
        %v2615 = vadd.f32 %v2429, %v2614
        %2616 = vmatprep.mubr.f32.mxu0 0.0
        %v2617 = vand.u32 %v1746, 4294901760
        %2618 = vmatmul.mubr.f32.gmra.mxu0 %v2617
        %v2619 = vpop.f32.mrf.mxu0
        %v2620 = vadd.f32 %v2436, %v2619
        %v2621 = vpop.f32.mrf.mxu0
        %v2622 = vadd.f32 %v2438, %v2621
        %2623 = vmatprep.mubr.f32.mxu0 0.0
        %v2624 = vand.u32 %v1747, 4294901760
        %2625 = vmatmul.mubr.f32.gmra.mxu0 %v2624
        %v2626 = vpop.f32.mrf.mxu0
        %v2627 = vadd.f32 %v2445, %v2626
        %v2628 = vpop.f32.mrf.mxu0
        %v2629 = vadd.f32 %v2447, %v2628
        %2630 = vdwg.mxu0
        %v2631 = vand.u32 %v1794, 4294901760
        %2632 = vmatprep.subr.mxu0 %v2631
        %v2633 = vand.u32 %v1793, 4294901760
        %2634 = vmatpush1.msra.mxu0 %v2633
        %v2635 = vand.u32 %v1791, 4294901760
        %2636 = vmatprep.subr.mxu0 %v2635
        %v2637 = vand.u32 %v1790, 4294901760
        %2638 = vmatpush1.msra.mxu0 %v2637
        %v2639 = vand.u32 %v1788, 4294901760
        %2640 = vmatprep.subr.mxu0 %v2639
        %v2641 = vand.u32 %v1787, 4294901760
        %2642 = vmatpush1.msra.mxu0 %v2641
        %v2643 = vand.u32 %v1785, 4294901760
        %2644 = vmatprep.subr.mxu0 %v2643
        %v2645 = vand.u32 %v1784, 4294901760
        %2646 = vmatpush1.msra.mxu0 %v2645
        %v2647 = vand.u32 %v1782, 4294901760
        %2648 = vmatprep.subr.mxu0 %v2647
        %v2649 = vand.u32 %v1781, 4294901760
        %2650 = vmatpush1.msra.mxu0 %v2649
        %v2651 = vand.u32 %v1779, 4294901760
        %2652 = vmatprep.subr.mxu0 %v2651
        %v2653 = vand.u32 %v1778, 4294901760
        %2654 = vmatpush1.msra.mxu0 %v2653
        %v2655 = vand.u32 %v1776, 4294901760
        %2656 = vmatprep.subr.mxu0 %v2655
        %v2657 = vand.u32 %v1775, 4294901760
        %2658 = vmatpush1.msra.mxu0 %v2657
        %v2659 = vand.u32 %v1773, 4294901760
        %2660 = vmatprep.subr.mxu0 %v2659
        %v2661 = vand.u32 %v1772, 4294901760
        %2662 = vmatpush1.msra.mxu0 %v2661
        %v2663 = vand.u32 %v1770, 4294901760
        %2664 = vmatprep.subr.mxu0 %v2663
        %v2665 = vand.u32 %v1769, 4294901760
        %2666 = vmatpush1.msra.mxu0 %v2665
        %v2667 = vand.u32 %v1767, 4294901760
        %2668 = vmatprep.subr.mxu0 %v2667
        %v2669 = vand.u32 %v1766, 4294901760
        %2670 = vmatpush1.msra.mxu0 %v2669
        %v2671 = vand.u32 %v1764, 4294901760
        %2672 = vmatprep.subr.mxu0 %v2671
        %v2673 = vand.u32 %v1763, 4294901760
        %2674 = vmatpush1.msra.mxu0 %v2673
        %v2675 = vand.u32 %v1761, 4294901760
        %2676 = vmatprep.subr.mxu0 %v2675
        %v2677 = vand.u32 %v1760, 4294901760
        %2678 = vmatpush1.msra.mxu0 %v2677
        %v2679 = vand.u32 %v1758, 4294901760
        %2680 = vmatprep.subr.mxu0 %v2679
        %v2681 = vand.u32 %v1757, 4294901760
        %2682 = vmatpush1.msra.mxu0 %v2681
        %v2683 = vand.u32 %v1755, 4294901760
        %2684 = vmatprep.subr.mxu0 %v2683
        %v2685 = vand.u32 %v1754, 4294901760
        %2686 = vmatpush1.msra.mxu0 %v2685
        %v2687 = vand.u32 %v1752, 4294901760
        %2688 = vmatprep.subr.mxu0 %v2687
        %v2689 = vand.u32 %v1751, 4294901760
        %2690 = vmatpush1.msra.mxu0 %v2689
        %v2691 = vand.u32 %v1749, 4294901760
        %2692 = vmatprep.subr.mxu0 %v2691
        %v2693 = vand.u32 %v1748, 4294901760
        %2694 = vmatpush1.msra.mxu0 %v2693
        %2695 = vmatprep.subr.mxu0 0.0
        %2696 = vmatpush2.msra.mxu0 0.0
        %2697 = vmatprep.subr.mxu0 0.0
        %2698 = vmatpush2.msra.mxu0 0.0
        %2699 = vmatprep.subr.mxu0 0.0
        %2700 = vmatpush2.msra.mxu0 0.0
        %2701 = vmatprep.subr.mxu0 0.0
        %2702 = vmatpush2.msra.mxu0 0.0
        %2703 = vmatprep.subr.mxu0 0.0
        %2704 = vmatpush2.msra.mxu0 0.0
        %2705 = vmatprep.subr.mxu0 0.0
        %2706 = vmatpush2.msra.mxu0 0.0
        %2707 = vmatprep.subr.mxu0 0.0
        %2708 = vmatpush2.msra.mxu0 0.0
        %2709 = vmatprep.subr.mxu0 0.0
        %2710 = vmatpush2.msra.mxu0 0.0
        %2711 = vmatprep.subr.mxu0 0.0
        %2712 = vmatpush2.msra.mxu0 0.0
        %2713 = vmatprep.subr.mxu0 0.0
        %2714 = vmatpush2.msra.mxu0 0.0
        %2715 = vmatprep.subr.mxu0 0.0
        %2716 = vmatpush2.msra.mxu0 0.0
        %2717 = vmatprep.subr.mxu0 0.0
        %2718 = vmatpush2.msra.mxu0 0.0
        %2719 = vmatprep.subr.mxu0 0.0
        %2720 = vmatpush2.msra.mxu0 0.0
        %2721 = vmatprep.subr.mxu0 0.0
        %2722 = vmatpush2.msra.mxu0 0.0
        %2723 = vmatprep.subr.mxu0 0.0
        %2724 = vmatpush2.msra.mxu0 0.0
        %2725 = vmatprep.subr.mxu0 0.0
        %2726 = vmatpush2.msra.mxu0 0.0
        %2727 = vmatprep.mubr.f32.mxu0 0.0
        %v2728 = vand.u32 %v1745, 4294901760
        %2729 = vmatmul.mubr.f32.gmra.mxu0 %v2728
        %v2730 = vpop.f32.mrf.mxu0
        %v2731 = vadd.f32 %v2613, %v2730
        %v2732 = vpop.f32.mrf.mxu0
        %v2733 = vadd.f32 %v2615, %v2732
        %2734 = vmatprep.mubr.f32.mxu0 0.0
        %v2735 = vand.u32 %v1746, 4294901760
        %2736 = vmatmul.mubr.f32.gmra.mxu0 %v2735
        %v2737 = vpop.f32.mrf.mxu0
        %v2738 = vadd.f32 %v2620, %v2737
        %v2739 = vpop.f32.mrf.mxu0
        %v2740 = vadd.f32 %v2622, %v2739
        %2741 = vmatprep.mubr.f32.mxu0 0.0
        %v2742 = vand.u32 %v1747, 4294901760
        %2743 = vmatmul.mubr.f32.gmra.mxu0 %v2742
        %v2744 = vpop.f32.mrf.mxu0
        %v2745 = vadd.f32 %v2627, %v2744
        %v2746 = vpop.f32.mrf.mxu0
        %v2747 = vadd.f32 %v2629, %v2746
        %2748 = vdwg.mxu0
        %2749 = vmatprep.subr.mxu0 0.0
        %v2750 = vand.u32 %v1795, 4294901760
        %2751 = vmatpush1.msra.mxu0 %v2750
        %2752 = vmatprep.subr.mxu0 0.0
        %v2753 = vand.u32 %v1792, 4294901760
        %2754 = vmatpush1.msra.mxu0 %v2753
        %2755 = vmatprep.subr.mxu0 0.0
        %v2756 = vand.u32 %v1789, 4294901760
        %2757 = vmatpush1.msra.mxu0 %v2756
        %2758 = vmatprep.subr.mxu0 0.0
        %v2759 = vand.u32 %v1786, 4294901760
        %2760 = vmatpush1.msra.mxu0 %v2759
        %2761 = vmatprep.subr.mxu0 0.0
        %v2762 = vand.u32 %v1783, 4294901760
        %2763 = vmatpush1.msra.mxu0 %v2762
        %2764 = vmatprep.subr.mxu0 0.0
        %v2765 = vand.u32 %v1780, 4294901760
        %2766 = vmatpush1.msra.mxu0 %v2765
        %2767 = vmatprep.subr.mxu0 0.0
        %v2768 = vand.u32 %v1777, 4294901760
        %2769 = vmatpush1.msra.mxu0 %v2768
        %2770 = vmatprep.subr.mxu0 0.0
        %v2771 = vand.u32 %v1774, 4294901760
        %2772 = vmatpush1.msra.mxu0 %v2771
        %2773 = vmatprep.subr.mxu0 0.0
        %v2774 = vand.u32 %v1771, 4294901760
        %2775 = vmatpush1.msra.mxu0 %v2774
        %2776 = vmatprep.subr.mxu0 0.0
        %v2777 = vand.u32 %v1768, 4294901760
        %2778 = vmatpush1.msra.mxu0 %v2777
        %2779 = vmatprep.subr.mxu0 0.0
        %v2780 = vand.u32 %v1765, 4294901760
        %2781 = vmatpush1.msra.mxu0 %v2780
        %2782 = vmatprep.subr.mxu0 0.0
        %v2783 = vand.u32 %v1762, 4294901760
        %2784 = vmatpush1.msra.mxu0 %v2783
        %2785 = vmatprep.subr.mxu0 0.0
        %v2786 = vand.u32 %v1759, 4294901760
        %2787 = vmatpush1.msra.mxu0 %v2786
        %2788 = vmatprep.subr.mxu0 0.0
        %v2789 = vand.u32 %v1756, 4294901760
        %2790 = vmatpush1.msra.mxu0 %v2789
        %2791 = vmatprep.subr.mxu0 0.0
        %v2792 = vand.u32 %v1753, 4294901760
        %2793 = vmatpush1.msra.mxu0 %v2792
        %2794 = vmatprep.subr.mxu0 0.0
        %v2795 = vand.u32 %v1750, 4294901760
        %2796 = vmatpush1.msra.mxu0 %v2795
        %2797 = vmatprep.subr.mxu0 0.0
        %2798 = vmatpush2.msra.mxu0 0.0
        %2799 = vmatprep.subr.mxu0 0.0
        %2800 = vmatpush2.msra.mxu0 0.0
        %2801 = vmatprep.subr.mxu0 0.0
        %2802 = vmatpush2.msra.mxu0 0.0
        %2803 = vmatprep.subr.mxu0 0.0
        %2804 = vmatpush2.msra.mxu0 0.0
        %2805 = vmatprep.subr.mxu0 0.0
        %2806 = vmatpush2.msra.mxu0 0.0
        %2807 = vmatprep.subr.mxu0 0.0
        %2808 = vmatpush2.msra.mxu0 0.0
        %2809 = vmatprep.subr.mxu0 0.0
        %2810 = vmatpush2.msra.mxu0 0.0
        %2811 = vmatprep.subr.mxu0 0.0
        %2812 = vmatpush2.msra.mxu0 0.0
        %2813 = vmatprep.subr.mxu0 0.0
        %2814 = vmatpush2.msra.mxu0 0.0
        %2815 = vmatprep.subr.mxu0 0.0
        %2816 = vmatpush2.msra.mxu0 0.0
        %2817 = vmatprep.subr.mxu0 0.0
        %2818 = vmatpush2.msra.mxu0 0.0
        %2819 = vmatprep.subr.mxu0 0.0
        %2820 = vmatpush2.msra.mxu0 0.0
        %2821 = vmatprep.subr.mxu0 0.0
        %2822 = vmatpush2.msra.mxu0 0.0
        %2823 = vmatprep.subr.mxu0 0.0
        %2824 = vmatpush2.msra.mxu0 0.0
        %2825 = vmatprep.subr.mxu0 0.0
        %2826 = vmatpush2.msra.mxu0 0.0
        %2827 = vmatprep.subr.mxu0 0.0
        %2828 = vmatpush2.msra.mxu0 0.0
        %2829 = vmatprep.mubr.f32.mxu0 0.0
        %v2830 = vand.u32 %v1745, 4294901760
        %v2831 = vsub.f32 %v1745, %v2830
        %v2832 = vand.u32 %v2831, 4294901760
        %v2833 = vsub.f32 %v2831, %v2832
        %v2834 = vand.u32 %v2833, 4294901760
        %2835 = vmatmul.mubr.f32.gmra.mxu0 %v2834
        %v2836 = vpop.f32.mrf.mxu0
        %v2837 = vadd.f32 0.0, %v2836
        %v2838 = vpop.f32.mrf.mxu0
        %2839 = vmatprep.mubr.f32.mxu0 0.0
        %v2840 = vand.u32 %v1746, 4294901760
        %v2841 = vsub.f32 %v1746, %v2840
        %v2842 = vand.u32 %v2841, 4294901760
        %v2843 = vsub.f32 %v2841, %v2842
        %v2844 = vand.u32 %v2843, 4294901760
        %2845 = vmatmul.mubr.f32.gmra.mxu0 %v2844
        %v2846 = vpop.f32.mrf.mxu0
        %v2847 = vadd.f32 0.0, %v2846
        %v2848 = vpop.f32.mrf.mxu0
        %2849 = vmatprep.mubr.f32.mxu0 0.0
        %v2850 = vand.u32 %v1747, 4294901760
        %v2851 = vsub.f32 %v1747, %v2850
        %v2852 = vand.u32 %v2851, 4294901760
        %v2853 = vsub.f32 %v2851, %v2852
        %v2854 = vand.u32 %v2853, 4294901760
        %2855 = vmatmul.mubr.f32.gmra.mxu0 %v2854
        %v2856 = vpop.f32.mrf.mxu0
        %v2857 = vadd.f32 0.0, %v2856
        %v2858 = vpop.f32.mrf.mxu0
        %2859 = vdwg.mxu0
        %2860 = vmatprep.subr.mxu0 0.0
        %v2861 = vand.u32 %v1795, 4294901760
        %v2862 = vsub.f32 %v1795, %v2861
        %v2863 = vand.u32 %v2862, 4294901760
        %v2864 = vsub.f32 %v2862, %v2863
        %v2865 = vand.u32 %v2864, 4294901760
        %2866 = vmatpush1.msra.mxu0 %v2865
        %2867 = vmatprep.subr.mxu0 0.0
        %v2868 = vand.u32 %v1792, 4294901760
        %v2869 = vsub.f32 %v1792, %v2868
        %v2870 = vand.u32 %v2869, 4294901760
        %v2871 = vsub.f32 %v2869, %v2870
        %v2872 = vand.u32 %v2871, 4294901760
        %2873 = vmatpush1.msra.mxu0 %v2872
        %2874 = vmatprep.subr.mxu0 0.0
        %v2875 = vand.u32 %v1789, 4294901760
        %v2876 = vsub.f32 %v1789, %v2875
        %v2877 = vand.u32 %v2876, 4294901760
        %v2878 = vsub.f32 %v2876, %v2877
        %v2879 = vand.u32 %v2878, 4294901760
        %2880 = vmatpush1.msra.mxu0 %v2879
        %2881 = vmatprep.subr.mxu0 0.0
        %v2882 = vand.u32 %v1786, 4294901760
        %v2883 = vsub.f32 %v1786, %v2882
        %v2884 = vand.u32 %v2883, 4294901760
        %v2885 = vsub.f32 %v2883, %v2884
        %v2886 = vand.u32 %v2885, 4294901760
        %2887 = vmatpush1.msra.mxu0 %v2886
        %2888 = vmatprep.subr.mxu0 0.0
        %v2889 = vand.u32 %v1783, 4294901760
        %v2890 = vsub.f32 %v1783, %v2889
        %v2891 = vand.u32 %v2890, 4294901760
        %v2892 = vsub.f32 %v2890, %v2891
        %v2893 = vand.u32 %v2892, 4294901760
        %2894 = vmatpush1.msra.mxu0 %v2893
        %2895 = vmatprep.subr.mxu0 0.0
        %v2896 = vand.u32 %v1780, 4294901760
        %v2897 = vsub.f32 %v1780, %v2896
        %v2898 = vand.u32 %v2897, 4294901760
        %v2899 = vsub.f32 %v2897, %v2898
        %v2900 = vand.u32 %v2899, 4294901760
        %2901 = vmatpush1.msra.mxu0 %v2900
        %2902 = vmatprep.subr.mxu0 0.0
        %v2903 = vand.u32 %v1777, 4294901760
        %v2904 = vsub.f32 %v1777, %v2903
        %v2905 = vand.u32 %v2904, 4294901760
        %v2906 = vsub.f32 %v2904, %v2905
        %v2907 = vand.u32 %v2906, 4294901760
        %2908 = vmatpush1.msra.mxu0 %v2907
        %2909 = vmatprep.subr.mxu0 0.0
        %v2910 = vand.u32 %v1774, 4294901760
        %v2911 = vsub.f32 %v1774, %v2910
        %v2912 = vand.u32 %v2911, 4294901760
        %v2913 = vsub.f32 %v2911, %v2912
        %v2914 = vand.u32 %v2913, 4294901760
        %2915 = vmatpush1.msra.mxu0 %v2914
        %2916 = vmatprep.subr.mxu0 0.0
        %v2917 = vand.u32 %v1771, 4294901760
        %v2918 = vsub.f32 %v1771, %v2917
        %v2919 = vand.u32 %v2918, 4294901760
        %v2920 = vsub.f32 %v2918, %v2919
        %v2921 = vand.u32 %v2920, 4294901760
        %2922 = vmatpush1.msra.mxu0 %v2921
        %2923 = vmatprep.subr.mxu0 0.0
        %v2924 = vand.u32 %v1768, 4294901760
        %v2925 = vsub.f32 %v1768, %v2924
        %v2926 = vand.u32 %v2925, 4294901760
        %v2927 = vsub.f32 %v2925, %v2926
        %v2928 = vand.u32 %v2927, 4294901760
        %2929 = vmatpush1.msra.mxu0 %v2928
        %2930 = vmatprep.subr.mxu0 0.0
        %v2931 = vand.u32 %v1765, 4294901760
        %v2932 = vsub.f32 %v1765, %v2931
        %v2933 = vand.u32 %v2932, 4294901760
        %v2934 = vsub.f32 %v2932, %v2933
        %v2935 = vand.u32 %v2934, 4294901760
        %2936 = vmatpush1.msra.mxu0 %v2935
        %2937 = vmatprep.subr.mxu0 0.0
        %v2938 = vand.u32 %v1762, 4294901760
        %v2939 = vsub.f32 %v1762, %v2938
        %v2940 = vand.u32 %v2939, 4294901760
        %v2941 = vsub.f32 %v2939, %v2940
        %v2942 = vand.u32 %v2941, 4294901760
        %2943 = vmatpush1.msra.mxu0 %v2942
        %2944 = vmatprep.subr.mxu0 0.0
        %v2945 = vand.u32 %v1759, 4294901760
        %v2946 = vsub.f32 %v1759, %v2945
        %v2947 = vand.u32 %v2946, 4294901760
        %v2948 = vsub.f32 %v2946, %v2947
        %v2949 = vand.u32 %v2948, 4294901760
        %2950 = vmatpush1.msra.mxu0 %v2949
        %2951 = vmatprep.subr.mxu0 0.0
        %v2952 = vand.u32 %v1756, 4294901760
        %v2953 = vsub.f32 %v1756, %v2952
        %v2954 = vand.u32 %v2953, 4294901760
        %v2955 = vsub.f32 %v2953, %v2954
        %v2956 = vand.u32 %v2955, 4294901760
        %2957 = vmatpush1.msra.mxu0 %v2956
        %2958 = vmatprep.subr.mxu0 0.0
        %v2959 = vand.u32 %v1753, 4294901760
        %v2960 = vsub.f32 %v1753, %v2959
        %v2961 = vand.u32 %v2960, 4294901760
        %v2962 = vsub.f32 %v2960, %v2961
        %v2963 = vand.u32 %v2962, 4294901760
        %2964 = vmatpush1.msra.mxu0 %v2963
        %2965 = vmatprep.subr.mxu0 0.0
        %v2966 = vand.u32 %v1750, 4294901760
        %v2967 = vsub.f32 %v1750, %v2966
        %v2968 = vand.u32 %v2967, 4294901760
        %v2969 = vsub.f32 %v2967, %v2968
        %v2970 = vand.u32 %v2969, 4294901760
        %2971 = vmatpush1.msra.mxu0 %v2970
        %2972 = vmatprep.subr.mxu0 0.0
        %2973 = vmatpush2.msra.mxu0 0.0
        %2974 = vmatprep.subr.mxu0 0.0
        %2975 = vmatpush2.msra.mxu0 0.0
        %2976 = vmatprep.subr.mxu0 0.0
        %2977 = vmatpush2.msra.mxu0 0.0
        %2978 = vmatprep.subr.mxu0 0.0
        %2979 = vmatpush2.msra.mxu0 0.0
        %2980 = vmatprep.subr.mxu0 0.0
        %2981 = vmatpush2.msra.mxu0 0.0
        %2982 = vmatprep.subr.mxu0 0.0
        %2983 = vmatpush2.msra.mxu0 0.0
        %2984 = vmatprep.subr.mxu0 0.0
        %2985 = vmatpush2.msra.mxu0 0.0
        %2986 = vmatprep.subr.mxu0 0.0
        %2987 = vmatpush2.msra.mxu0 0.0
        %2988 = vmatprep.subr.mxu0 0.0
        %2989 = vmatpush2.msra.mxu0 0.0
        %2990 = vmatprep.subr.mxu0 0.0
        %2991 = vmatpush2.msra.mxu0 0.0
        %2992 = vmatprep.subr.mxu0 0.0
        %2993 = vmatpush2.msra.mxu0 0.0
        %2994 = vmatprep.subr.mxu0 0.0
        %2995 = vmatpush2.msra.mxu0 0.0
        %2996 = vmatprep.subr.mxu0 0.0
        %2997 = vmatpush2.msra.mxu0 0.0
        %2998 = vmatprep.subr.mxu0 0.0
        %2999 = vmatpush2.msra.mxu0 0.0
        %3000 = vmatprep.subr.mxu0 0.0
        %3001 = vmatpush2.msra.mxu0 0.0
        %3002 = vmatprep.subr.mxu0 0.0
        %3003 = vmatpush2.msra.mxu0 0.0
        %3004 = vmatprep.mubr.f32.mxu0 0.0
        %v3005 = vand.u32 %v1745, 4294901760
        %3006 = vmatmul.mubr.f32.gmra.mxu0 %v3005
        %v3007 = vpop.f32.mrf.mxu0
        %v3008 = vadd.f32 %v2837, %v3007
        %v3009 = vpop.f32.mrf.mxu0
        %3010 = vmatprep.mubr.f32.mxu0 0.0
        %v3011 = vand.u32 %v1746, 4294901760
        %3012 = vmatmul.mubr.f32.gmra.mxu0 %v3011
        %v3013 = vpop.f32.mrf.mxu0
        %v3014 = vadd.f32 %v2847, %v3013
        %v3015 = vpop.f32.mrf.mxu0
        %3016 = vmatprep.mubr.f32.mxu0 0.0
        %v3017 = vand.u32 %v1747, 4294901760
        %3018 = vmatmul.mubr.f32.gmra.mxu0 %v3017
        %v3019 = vpop.f32.mrf.mxu0
        %v3020 = vadd.f32 %v2857, %v3019
        %v3021 = vpop.f32.mrf.mxu0
        %3022 = vdwg.mxu0
        %3023 = vmatprep.subr.mxu0 0.0
        %v3024 = vand.u32 %v1795, 4294901760
        %v3025 = vsub.f32 %v1795, %v3024
        %3026 = vmatpush1.msra.mxu0 %v3025
        %3027 = vmatprep.subr.mxu0 0.0
        %v3028 = vand.u32 %v1792, 4294901760
        %v3029 = vsub.f32 %v1792, %v3028
        %3030 = vmatpush1.msra.mxu0 %v3029
        %3031 = vmatprep.subr.mxu0 0.0
        %v3032 = vand.u32 %v1789, 4294901760
        %v3033 = vsub.f32 %v1789, %v3032
        %3034 = vmatpush1.msra.mxu0 %v3033
        %3035 = vmatprep.subr.mxu0 0.0
        %v3036 = vand.u32 %v1786, 4294901760
        %v3037 = vsub.f32 %v1786, %v3036
        %3038 = vmatpush1.msra.mxu0 %v3037
        %3039 = vmatprep.subr.mxu0 0.0
        %v3040 = vand.u32 %v1783, 4294901760
        %v3041 = vsub.f32 %v1783, %v3040
        %3042 = vmatpush1.msra.mxu0 %v3041
        %3043 = vmatprep.subr.mxu0 0.0
        %v3044 = vand.u32 %v1780, 4294901760
        %v3045 = vsub.f32 %v1780, %v3044
        %3046 = vmatpush1.msra.mxu0 %v3045
        %3047 = vmatprep.subr.mxu0 0.0
        %v3048 = vand.u32 %v1777, 4294901760
        %v3049 = vsub.f32 %v1777, %v3048
        %3050 = vmatpush1.msra.mxu0 %v3049
        %3051 = vmatprep.subr.mxu0 0.0
        %v3052 = vand.u32 %v1774, 4294901760
        %v3053 = vsub.f32 %v1774, %v3052
        %3054 = vmatpush1.msra.mxu0 %v3053
        %3055 = vmatprep.subr.mxu0 0.0
        %v3056 = vand.u32 %v1771, 4294901760
        %v3057 = vsub.f32 %v1771, %v3056
        %3058 = vmatpush1.msra.mxu0 %v3057
        %3059 = vmatprep.subr.mxu0 0.0
        %v3060 = vand.u32 %v1768, 4294901760
        %v3061 = vsub.f32 %v1768, %v3060
        %3062 = vmatpush1.msra.mxu0 %v3061
        %3063 = vmatprep.subr.mxu0 0.0
        %v3064 = vand.u32 %v1765, 4294901760
        %v3065 = vsub.f32 %v1765, %v3064
        %3066 = vmatpush1.msra.mxu0 %v3065
        %3067 = vmatprep.subr.mxu0 0.0
        %v3068 = vand.u32 %v1762, 4294901760
        %v3069 = vsub.f32 %v1762, %v3068
        %3070 = vmatpush1.msra.mxu0 %v3069
        %3071 = vmatprep.subr.mxu0 0.0
        %v3072 = vand.u32 %v1759, 4294901760
        %v3073 = vsub.f32 %v1759, %v3072
        %3074 = vmatpush1.msra.mxu0 %v3073
        %3075 = vmatprep.subr.mxu0 0.0
        %v3076 = vand.u32 %v1756, 4294901760
        %v3077 = vsub.f32 %v1756, %v3076
        %3078 = vmatpush1.msra.mxu0 %v3077
        %3079 = vmatprep.subr.mxu0 0.0
        %v3080 = vand.u32 %v1753, 4294901760
        %v3081 = vsub.f32 %v1753, %v3080
        %3082 = vmatpush1.msra.mxu0 %v3081
        %3083 = vmatprep.subr.mxu0 0.0
        %v3084 = vand.u32 %v1750, 4294901760
        %v3085 = vsub.f32 %v1750, %v3084
        %3086 = vmatpush1.msra.mxu0 %v3085
        %3087 = vmatprep.subr.mxu0 0.0
        %3088 = vmatpush2.msra.mxu0 0.0
        %3089 = vmatprep.subr.mxu0 0.0
        %3090 = vmatpush2.msra.mxu0 0.0
        %3091 = vmatprep.subr.mxu0 0.0
        %3092 = vmatpush2.msra.mxu0 0.0
        %3093 = vmatprep.subr.mxu0 0.0
        %3094 = vmatpush2.msra.mxu0 0.0
        %3095 = vmatprep.subr.mxu0 0.0
        %3096 = vmatpush2.msra.mxu0 0.0
        %3097 = vmatprep.subr.mxu0 0.0
        %3098 = vmatpush2.msra.mxu0 0.0
        %3099 = vmatprep.subr.mxu0 0.0
        %3100 = vmatpush2.msra.mxu0 0.0
        %3101 = vmatprep.subr.mxu0 0.0
        %3102 = vmatpush2.msra.mxu0 0.0
        %3103 = vmatprep.subr.mxu0 0.0
        %3104 = vmatpush2.msra.mxu0 0.0
        %3105 = vmatprep.subr.mxu0 0.0
        %3106 = vmatpush2.msra.mxu0 0.0
        %3107 = vmatprep.subr.mxu0 0.0
        %3108 = vmatpush2.msra.mxu0 0.0
        %3109 = vmatprep.subr.mxu0 0.0
        %3110 = vmatpush2.msra.mxu0 0.0
        %3111 = vmatprep.subr.mxu0 0.0
        %3112 = vmatpush2.msra.mxu0 0.0
        %3113 = vmatprep.subr.mxu0 0.0
        %3114 = vmatpush2.msra.mxu0 0.0
        %3115 = vmatprep.subr.mxu0 0.0
        %3116 = vmatpush2.msra.mxu0 0.0
        %3117 = vmatprep.subr.mxu0 0.0
        %3118 = vmatpush2.msra.mxu0 0.0
        %3119 = vmatprep.mubr.f32.mxu0 0.0
        %v3120 = vand.u32 %v1745, 4294901760
        %v3121 = vsub.f32 %v1745, %v3120
        %3122 = vmatmul.mubr.f32.gmra.mxu0 %v3121
        %v3123 = vpop.f32.mrf.mxu0
        %v3124 = vadd.f32 %v3008, %v3123
        %v3125 = vpop.f32.mrf.mxu0
        %3126 = vmatprep.mubr.f32.mxu0 0.0
        %v3127 = vand.u32 %v1746, 4294901760
        %v3128 = vsub.f32 %v1746, %v3127
        %3129 = vmatmul.mubr.f32.gmra.mxu0 %v3128
        %v3130 = vpop.f32.mrf.mxu0
        %v3131 = vadd.f32 %v3014, %v3130
        %v3132 = vpop.f32.mrf.mxu0
        %3133 = vmatprep.mubr.f32.mxu0 0.0
        %v3134 = vand.u32 %v1747, 4294901760
        %v3135 = vsub.f32 %v1747, %v3134
        %3136 = vmatmul.mubr.f32.gmra.mxu0 %v3135
        %v3137 = vpop.f32.mrf.mxu0
        %v3138 = vadd.f32 %v3020, %v3137
        %v3139 = vpop.f32.mrf.mxu0
        %3140 = vdwg.mxu0
        %3141 = vmatprep.subr.mxu0 0.0
        %v3142 = vand.u32 %v1795, 4294901760
        %3143 = vmatpush1.msra.mxu0 %v3142
        %3144 = vmatprep.subr.mxu0 0.0
        %v3145 = vand.u32 %v1792, 4294901760
        %3146 = vmatpush1.msra.mxu0 %v3145
        %3147 = vmatprep.subr.mxu0 0.0
        %v3148 = vand.u32 %v1789, 4294901760
        %3149 = vmatpush1.msra.mxu0 %v3148
        %3150 = vmatprep.subr.mxu0 0.0
        %v3151 = vand.u32 %v1786, 4294901760
        %3152 = vmatpush1.msra.mxu0 %v3151
        %3153 = vmatprep.subr.mxu0 0.0
        %v3154 = vand.u32 %v1783, 4294901760
        %3155 = vmatpush1.msra.mxu0 %v3154
        %3156 = vmatprep.subr.mxu0 0.0
        %v3157 = vand.u32 %v1780, 4294901760
        %3158 = vmatpush1.msra.mxu0 %v3157
        %3159 = vmatprep.subr.mxu0 0.0
        %v3160 = vand.u32 %v1777, 4294901760
        %3161 = vmatpush1.msra.mxu0 %v3160
        %3162 = vmatprep.subr.mxu0 0.0
        %v3163 = vand.u32 %v1774, 4294901760
        %3164 = vmatpush1.msra.mxu0 %v3163
        %3165 = vmatprep.subr.mxu0 0.0
        %v3166 = vand.u32 %v1771, 4294901760
        %3167 = vmatpush1.msra.mxu0 %v3166
        %3168 = vmatprep.subr.mxu0 0.0
        %v3169 = vand.u32 %v1768, 4294901760
        %3170 = vmatpush1.msra.mxu0 %v3169
        %3171 = vmatprep.subr.mxu0 0.0
        %v3172 = vand.u32 %v1765, 4294901760
        %3173 = vmatpush1.msra.mxu0 %v3172
        %3174 = vmatprep.subr.mxu0 0.0
        %v3175 = vand.u32 %v1762, 4294901760
        %3176 = vmatpush1.msra.mxu0 %v3175
        %3177 = vmatprep.subr.mxu0 0.0
        %v3178 = vand.u32 %v1759, 4294901760
        %3179 = vmatpush1.msra.mxu0 %v3178
        %3180 = vmatprep.subr.mxu0 0.0
        %v3181 = vand.u32 %v1756, 4294901760
        %3182 = vmatpush1.msra.mxu0 %v3181
        %3183 = vmatprep.subr.mxu0 0.0
        %v3184 = vand.u32 %v1753, 4294901760
        %3185 = vmatpush1.msra.mxu0 %v3184
        %3186 = vmatprep.subr.mxu0 0.0
        %v3187 = vand.u32 %v1750, 4294901760
        %3188 = vmatpush1.msra.mxu0 %v3187
        %3189 = vmatprep.subr.mxu0 0.0
        %3190 = vmatpush2.msra.mxu0 0.0
        %3191 = vmatprep.subr.mxu0 0.0
        %3192 = vmatpush2.msra.mxu0 0.0
        %3193 = vmatprep.subr.mxu0 0.0
        %3194 = vmatpush2.msra.mxu0 0.0
        %3195 = vmatprep.subr.mxu0 0.0
        %3196 = vmatpush2.msra.mxu0 0.0
        %3197 = vmatprep.subr.mxu0 0.0
        %3198 = vmatpush2.msra.mxu0 0.0
        %3199 = vmatprep.subr.mxu0 0.0
        %3200 = vmatpush2.msra.mxu0 0.0
        %3201 = vmatprep.subr.mxu0 0.0
        %3202 = vmatpush2.msra.mxu0 0.0
        %3203 = vmatprep.subr.mxu0 0.0
        %3204 = vmatpush2.msra.mxu0 0.0
        %3205 = vmatprep.subr.mxu0 0.0
        %3206 = vmatpush2.msra.mxu0 0.0
        %3207 = vmatprep.subr.mxu0 0.0
        %3208 = vmatpush2.msra.mxu0 0.0
        %3209 = vmatprep.subr.mxu0 0.0
        %3210 = vmatpush2.msra.mxu0 0.0
        %3211 = vmatprep.subr.mxu0 0.0
        %3212 = vmatpush2.msra.mxu0 0.0
        %3213 = vmatprep.subr.mxu0 0.0
        %3214 = vmatpush2.msra.mxu0 0.0
        %3215 = vmatprep.subr.mxu0 0.0
        %3216 = vmatpush2.msra.mxu0 0.0
        %3217 = vmatprep.subr.mxu0 0.0
        %3218 = vmatpush2.msra.mxu0 0.0
        %3219 = vmatprep.subr.mxu0 0.0
        %3220 = vmatpush2.msra.mxu0 0.0
        %3221 = vmatprep.mubr.f32.mxu0 0.0
        %v3222 = vand.u32 %v1745, 4294901760
        %v3223 = vsub.f32 %v1745, %v3222
        %v3224 = vand.u32 %v3223, 4294901760
        %3225 = vmatmul.mubr.f32.gmra.mxu0 %v3224
        %v3226 = vpop.f32.mrf.mxu0
        %v3227 = vadd.f32 %v3124, %v3226
        %v3228 = vpop.f32.mrf.mxu0
        %3229 = vmatprep.mubr.f32.mxu0 0.0
        %v3230 = vand.u32 %v1746, 4294901760
        %v3231 = vsub.f32 %v1746, %v3230
        %v3232 = vand.u32 %v3231, 4294901760
        %3233 = vmatmul.mubr.f32.gmra.mxu0 %v3232
        %v3234 = vpop.f32.mrf.mxu0
        %v3235 = vadd.f32 %v3131, %v3234
        %v3236 = vpop.f32.mrf.mxu0
        %3237 = vmatprep.mubr.f32.mxu0 0.0
        %v3238 = vand.u32 %v1747, 4294901760
        %v3239 = vsub.f32 %v1747, %v3238
        %v3240 = vand.u32 %v3239, 4294901760
        %3241 = vmatmul.mubr.f32.gmra.mxu0 %v3240
        %v3242 = vpop.f32.mrf.mxu0
        %v3243 = vadd.f32 %v3138, %v3242
        %v3244 = vpop.f32.mrf.mxu0
        %3245 = vdwg.mxu0
        %3246 = vmatprep.subr.mxu0 0.0
        %v3247 = vand.u32 %v1795, 4294901760
        %v3248 = vsub.f32 %v1795, %v3247
        %v3249 = vand.u32 %v3248, 4294901760
        %3250 = vmatpush1.msra.mxu0 %v3249
        %3251 = vmatprep.subr.mxu0 0.0
        %v3252 = vand.u32 %v1792, 4294901760
        %v3253 = vsub.f32 %v1792, %v3252
        %v3254 = vand.u32 %v3253, 4294901760
        %3255 = vmatpush1.msra.mxu0 %v3254
        %3256 = vmatprep.subr.mxu0 0.0
        %v3257 = vand.u32 %v1789, 4294901760
        %v3258 = vsub.f32 %v1789, %v3257
        %v3259 = vand.u32 %v3258, 4294901760
        %3260 = vmatpush1.msra.mxu0 %v3259
        %3261 = vmatprep.subr.mxu0 0.0
        %v3262 = vand.u32 %v1786, 4294901760
        %v3263 = vsub.f32 %v1786, %v3262
        %v3264 = vand.u32 %v3263, 4294901760
        %3265 = vmatpush1.msra.mxu0 %v3264
        %3266 = vmatprep.subr.mxu0 0.0
        %v3267 = vand.u32 %v1783, 4294901760
        %v3268 = vsub.f32 %v1783, %v3267
        %v3269 = vand.u32 %v3268, 4294901760
        %3270 = vmatpush1.msra.mxu0 %v3269
        %3271 = vmatprep.subr.mxu0 0.0
        %v3272 = vand.u32 %v1780, 4294901760
        %v3273 = vsub.f32 %v1780, %v3272
        %v3274 = vand.u32 %v3273, 4294901760
        %3275 = vmatpush1.msra.mxu0 %v3274
        %3276 = vmatprep.subr.mxu0 0.0
        %v3277 = vand.u32 %v1777, 4294901760
        %v3278 = vsub.f32 %v1777, %v3277
        %v3279 = vand.u32 %v3278, 4294901760
        %3280 = vmatpush1.msra.mxu0 %v3279
        %3281 = vmatprep.subr.mxu0 0.0
        %v3282 = vand.u32 %v1774, 4294901760
        %v3283 = vsub.f32 %v1774, %v3282
        %v3284 = vand.u32 %v3283, 4294901760
        %3285 = vmatpush1.msra.mxu0 %v3284
        %3286 = vmatprep.subr.mxu0 0.0
        %v3287 = vand.u32 %v1771, 4294901760
        %v3288 = vsub.f32 %v1771, %v3287
        %v3289 = vand.u32 %v3288, 4294901760
        %3290 = vmatpush1.msra.mxu0 %v3289
        %3291 = vmatprep.subr.mxu0 0.0
        %v3292 = vand.u32 %v1768, 4294901760
        %v3293 = vsub.f32 %v1768, %v3292
        %v3294 = vand.u32 %v3293, 4294901760
        %3295 = vmatpush1.msra.mxu0 %v3294
        %3296 = vmatprep.subr.mxu0 0.0
        %v3297 = vand.u32 %v1765, 4294901760
        %v3298 = vsub.f32 %v1765, %v3297
        %v3299 = vand.u32 %v3298, 4294901760
        %3300 = vmatpush1.msra.mxu0 %v3299
        %3301 = vmatprep.subr.mxu0 0.0
        %v3302 = vand.u32 %v1762, 4294901760
        %v3303 = vsub.f32 %v1762, %v3302
        %v3304 = vand.u32 %v3303, 4294901760
        %3305 = vmatpush1.msra.mxu0 %v3304
        %3306 = vmatprep.subr.mxu0 0.0
        %v3307 = vand.u32 %v1759, 4294901760
        %v3308 = vsub.f32 %v1759, %v3307
        %v3309 = vand.u32 %v3308, 4294901760
        %3310 = vmatpush1.msra.mxu0 %v3309
        %3311 = vmatprep.subr.mxu0 0.0
        %v3312 = vand.u32 %v1756, 4294901760
        %v3313 = vsub.f32 %v1756, %v3312
        %v3314 = vand.u32 %v3313, 4294901760
        %3315 = vmatpush1.msra.mxu0 %v3314
        %3316 = vmatprep.subr.mxu0 0.0
        %v3317 = vand.u32 %v1753, 4294901760
        %v3318 = vsub.f32 %v1753, %v3317
        %v3319 = vand.u32 %v3318, 4294901760
        %3320 = vmatpush1.msra.mxu0 %v3319
        %3321 = vmatprep.subr.mxu0 0.0
        %v3322 = vand.u32 %v1750, 4294901760
        %v3323 = vsub.f32 %v1750, %v3322
        %v3324 = vand.u32 %v3323, 4294901760
        %3325 = vmatpush1.msra.mxu0 %v3324
        %3326 = vmatprep.subr.mxu0 0.0
        %3327 = vmatpush2.msra.mxu0 0.0
        %3328 = vmatprep.subr.mxu0 0.0
        %3329 = vmatpush2.msra.mxu0 0.0
        %3330 = vmatprep.subr.mxu0 0.0
        %3331 = vmatpush2.msra.mxu0 0.0
        %3332 = vmatprep.subr.mxu0 0.0
        %3333 = vmatpush2.msra.mxu0 0.0
        %3334 = vmatprep.subr.mxu0 0.0
        %3335 = vmatpush2.msra.mxu0 0.0
        %3336 = vmatprep.subr.mxu0 0.0
        %3337 = vmatpush2.msra.mxu0 0.0
        %3338 = vmatprep.subr.mxu0 0.0
        %3339 = vmatpush2.msra.mxu0 0.0
        %3340 = vmatprep.subr.mxu0 0.0
        %3341 = vmatpush2.msra.mxu0 0.0
        %3342 = vmatprep.subr.mxu0 0.0
        %3343 = vmatpush2.msra.mxu0 0.0
        %3344 = vmatprep.subr.mxu0 0.0
        %3345 = vmatpush2.msra.mxu0 0.0
        %3346 = vmatprep.subr.mxu0 0.0
        %3347 = vmatpush2.msra.mxu0 0.0
        %3348 = vmatprep.subr.mxu0 0.0
        %3349 = vmatpush2.msra.mxu0 0.0
        %3350 = vmatprep.subr.mxu0 0.0
        %3351 = vmatpush2.msra.mxu0 0.0
        %3352 = vmatprep.subr.mxu0 0.0
        %3353 = vmatpush2.msra.mxu0 0.0
        %3354 = vmatprep.subr.mxu0 0.0
        %3355 = vmatpush2.msra.mxu0 0.0
        %3356 = vmatprep.subr.mxu0 0.0
        %3357 = vmatpush2.msra.mxu0 0.0
        %3358 = vmatprep.mubr.f32.mxu0 0.0
        %v3359 = vand.u32 %v1745, 4294901760
        %3360 = vmatmul.mubr.f32.gmra.mxu0 %v3359
        %v3361 = vpop.f32.mrf.mxu0
        %v3362 = vadd.f32 %v3227, %v3361
        %v3363 = vpop.f32.mrf.mxu0
        %3364 = vmatprep.mubr.f32.mxu0 0.0
        %v3365 = vand.u32 %v1746, 4294901760
        %3366 = vmatmul.mubr.f32.gmra.mxu0 %v3365
        %v3367 = vpop.f32.mrf.mxu0
        %v3368 = vadd.f32 %v3235, %v3367
        %v3369 = vpop.f32.mrf.mxu0
        %3370 = vmatprep.mubr.f32.mxu0 0.0
        %v3371 = vand.u32 %v1747, 4294901760
        %3372 = vmatmul.mubr.f32.gmra.mxu0 %v3371
        %v3373 = vpop.f32.mrf.mxu0
        %v3374 = vadd.f32 %v3243, %v3373
        %v3375 = vpop.f32.mrf.mxu0
        %3376 = vdwg.mxu0
        %3377 = vmatprep.subr.mxu0 0.0
        %v3378 = vand.u32 %v1795, 4294901760
        %3379 = vmatpush1.msra.mxu0 %v3378
        %3380 = vmatprep.subr.mxu0 0.0
        %v3381 = vand.u32 %v1792, 4294901760
        %3382 = vmatpush1.msra.mxu0 %v3381
        %3383 = vmatprep.subr.mxu0 0.0
        %v3384 = vand.u32 %v1789, 4294901760
        %3385 = vmatpush1.msra.mxu0 %v3384
        %3386 = vmatprep.subr.mxu0 0.0
        %v3387 = vand.u32 %v1786, 4294901760
        %3388 = vmatpush1.msra.mxu0 %v3387
        %3389 = vmatprep.subr.mxu0 0.0
        %v3390 = vand.u32 %v1783, 4294901760
        %3391 = vmatpush1.msra.mxu0 %v3390
        %3392 = vmatprep.subr.mxu0 0.0
        %v3393 = vand.u32 %v1780, 4294901760
        %3394 = vmatpush1.msra.mxu0 %v3393
        %3395 = vmatprep.subr.mxu0 0.0
        %v3396 = vand.u32 %v1777, 4294901760
        %3397 = vmatpush1.msra.mxu0 %v3396
        %3398 = vmatprep.subr.mxu0 0.0
        %v3399 = vand.u32 %v1774, 4294901760
        %3400 = vmatpush1.msra.mxu0 %v3399
        %3401 = vmatprep.subr.mxu0 0.0
        %v3402 = vand.u32 %v1771, 4294901760
        %3403 = vmatpush1.msra.mxu0 %v3402
        %3404 = vmatprep.subr.mxu0 0.0
        %v3405 = vand.u32 %v1768, 4294901760
        %3406 = vmatpush1.msra.mxu0 %v3405
        %3407 = vmatprep.subr.mxu0 0.0
        %v3408 = vand.u32 %v1765, 4294901760
        %3409 = vmatpush1.msra.mxu0 %v3408
        %3410 = vmatprep.subr.mxu0 0.0
        %v3411 = vand.u32 %v1762, 4294901760
        %3412 = vmatpush1.msra.mxu0 %v3411
        %3413 = vmatprep.subr.mxu0 0.0
        %v3414 = vand.u32 %v1759, 4294901760
        %3415 = vmatpush1.msra.mxu0 %v3414
        %3416 = vmatprep.subr.mxu0 0.0
        %v3417 = vand.u32 %v1756, 4294901760
        %3418 = vmatpush1.msra.mxu0 %v3417
        %3419 = vmatprep.subr.mxu0 0.0
        %v3420 = vand.u32 %v1753, 4294901760
        %3421 = vmatpush1.msra.mxu0 %v3420
        %3422 = vmatprep.subr.mxu0 0.0
        %v3423 = vand.u32 %v1750, 4294901760
        %3424 = vmatpush1.msra.mxu0 %v3423
        %3425 = vmatprep.subr.mxu0 0.0
        %3426 = vmatpush2.msra.mxu0 0.0
        %3427 = vmatprep.subr.mxu0 0.0
        %3428 = vmatpush2.msra.mxu0 0.0
        %3429 = vmatprep.subr.mxu0 0.0
        %3430 = vmatpush2.msra.mxu0 0.0
        %3431 = vmatprep.subr.mxu0 0.0
        %3432 = vmatpush2.msra.mxu0 0.0
        %3433 = vmatprep.subr.mxu0 0.0
        %3434 = vmatpush2.msra.mxu0 0.0
        %3435 = vmatprep.subr.mxu0 0.0
        %3436 = vmatpush2.msra.mxu0 0.0
        %3437 = vmatprep.subr.mxu0 0.0
        %3438 = vmatpush2.msra.mxu0 0.0
        %3439 = vmatprep.subr.mxu0 0.0
        %3440 = vmatpush2.msra.mxu0 0.0
        %3441 = vmatprep.subr.mxu0 0.0
        %3442 = vmatpush2.msra.mxu0 0.0
        %3443 = vmatprep.subr.mxu0 0.0
        %3444 = vmatpush2.msra.mxu0 0.0
        %3445 = vmatprep.subr.mxu0 0.0
        %3446 = vmatpush2.msra.mxu0 0.0
        %3447 = vmatprep.subr.mxu0 0.0
        %3448 = vmatpush2.msra.mxu0 0.0
        %3449 = vmatprep.subr.mxu0 0.0
        %3450 = vmatpush2.msra.mxu0 0.0
        %3451 = vmatprep.subr.mxu0 0.0
        %3452 = vmatpush2.msra.mxu0 0.0
        %3453 = vmatprep.subr.mxu0 0.0
        %3454 = vmatpush2.msra.mxu0 0.0
        %3455 = vmatprep.subr.mxu0 0.0
        %3456 = vmatpush2.msra.mxu0 0.0
        %3457 = vmatprep.mubr.f32.mxu0 0.0
        %v3458 = vand.u32 %v1745, 4294901760
        %3459 = vmatmul.mubr.f32.gmra.mxu0 %v3458
        %v3460 = vpop.f32.mrf.mxu0
        %v3461 = vadd.f32 %v3362, %v3460
        %v3462 = vpop.f32.mrf.mxu0
        %3463 = vmatprep.mubr.f32.mxu0 0.0
        %v3464 = vand.u32 %v1746, 4294901760
        %3465 = vmatmul.mubr.f32.gmra.mxu0 %v3464
        %v3466 = vpop.f32.mrf.mxu0
        %v3467 = vadd.f32 %v3368, %v3466
        %v3468 = vpop.f32.mrf.mxu0
        %3469 = vmatprep.mubr.f32.mxu0 0.0
        %v3470 = vand.u32 %v1747, 4294901760
        %3471 = vmatmul.mubr.f32.gmra.mxu0 %v3470
        %v3472 = vpop.f32.mrf.mxu0
        %v3473 = vadd.f32 %v3374, %v3472
        %v3474 = vpop.f32.mrf.mxu0
        %3475 = vdwg.mxu0
        %v3476 = vmul.f32 %v332, %v2731
        %v3477 = vmul.f32 %v333, %v2733
        %v3478 = vmul.f32 %v334, %v3461
        %v3479 = vmul.f32 %v335, %v2738
        %v3480 = vmul.f32 %v336, %v2740
        %v3481 = vmul.f32 %v337, %v3467
        %v3482 = vmul.f32 %v338, %v2745
        %v3483 = vmul.f32 %v339, %v2747
        %v3484 = vmul.f32 %v340, %v3473
        %v3485 = vadd.f32 %v3476, %v3479
        %v3486 = vadd.f32 %v3485, %v3482
        %v3487 = vrot.slane %v3486, 4
        %v3488 = vadd.f32 %v3486, %v3487
        %v3489 = vrot.slane %v3488, 2
        %v3490 = vadd.f32 %v3488, %v3489
        %v3491 = vrot.slane %v3490, 1
        %v3492 = vadd.f32 %v3490, %v3491
        %v3493 = vadd.f32 %v3477, %v3480
        %v3494 = vadd.f32 %v3493, %v3483
        %v3495 = vrot.slane %v3494, 4
        %v3496 = vadd.f32 %v3494, %v3495
        %v3497 = vrot.slane %v3496, 2
        %v3498 = vadd.f32 %v3496, %v3497
        %v3499 = vrot.slane %v3498, 1
        %v3500 = vadd.f32 %v3498, %v3499
        %v3501 = vadd.f32 %v3478, %v3481
        %v3502 = vadd.f32 %v3501, %v3484
        %v3503 = vrot.slane %v3502, 4
        %v3504 = vadd.f32 %v3502, %v3503
        %v3505 = vrot.slane %v3504, 2
        %v3506 = vadd.f32 %v3504, %v3505
        %v3507 = vrot.slane %v3506, 1
        %v3508 = vadd.f32 %v3506, %v3507
        %v3512 = vcombine.low %v3492, %v3500
        %v3514 = vunpack.c.l.s4 1966171168
        %v3515 = vunpack.c.0.s8 %v3514
        %v3516 = vlaneseq
        %v3517 = vshrl.u32 %v3516, 7
        %v3518 = vsub.s32 %v3515, %v3517
        %v3519 = vrot.slane %v3512, %v3518
        %v3521 = vunpack.c.l.s4 1966171168
        %v3522 = vunpack.c.0.s8 %v3521
        %v3523 = vlaneseq
        %v3524 = vshrl.u32 %v3523, 7
        %v3525 = vsub.s32 %v3522, %v3524
        %v3526 = vrot.slane %v3508, %v3525
        %v3527 = vcombine.low %v3519, %v3526
        %v3529 = vunpack.c.l.s4 1966171168
        %v3530 = vunpack.c.0.s8 %v3529
        %v3531 = vlaneseq
        %v3532 = vshrl.u32 %v3531, 7
        %v3533 = vsub.s32 %v3530, %v3532
        %v3534 = vrot.slane %v3527, %v3533
        %3536 = vst.msk [vmem:[%s221] sm:$0x7] %vm345, %v3534
        %s3537 = sand.u32 %s100, 1
        %s3538 = scalar_lea.sflag [#allocation5], %s3537
        %s3539 = sand.u32 %s100, 1
        %s3540 = smul.addr %s3539, 3
        %s3541 = scalar_lea.vmem [#allocation8], %s3540
        // Predicated region
        $region37: #{tpu_custom_call.1} parent=27 // pred_check
          %p3542 = pneg %p110
        $region38: #{tpu_custom_call.1} parent=27 // pred_check_branch
          %3544 = sbr.rel (%p3542) target = $region40
        $region39: #{tpu_custom_call.1} parent=27 // pred_region
          %s3546 = ssub.s32 48, 48
          %3547 = vsyncadd %s3538, %s3546
          %s3548 = smul.addr %s27, 3
          %s3549 = smul.addr %s26, 3
          %s3550 = sadd.s32 %s3548, %s3549
          %s3551 = smul.addr %s3550, 16
          %s3552 = scalar_lea.hbm %s2, %s3551
          %s3554 = sshll.u32 %s3541, 4
          %s3555 = int_to_ptr.vmem [resolvable:$true] %s3554
          %3557 = dma.vmem_to_hbm [thread:$0]  %s3555, 48, %s3552, %s3538
        $region40: #{tpu_custom_call.1} parent=27 // pred_fallthru
          _
      $region28: #{tpu_custom_call.1} parent=5 // pred_fallthru
        _
      %p3558 = scmp.le.s32.totalorder 2, %s17
      // Predicated region
      $region41: #{tpu_custom_call.1} parent=5 // pred_check
        %p3559 = pneg %p3558
      $region42: #{tpu_custom_call.1} parent=5 // pred_check_branch
        %3561 = sbr.rel (%p3559) target = $region44
      $region43: #{tpu_custom_call.1} parent=5 // pred_region
        %s3562 = ssub.s32 %s17, 2
        // Predicated region
        $region45: #{tpu_custom_call.1} parent=43 // pred_check
          %p3563 = pneg %p116
        $region46: #{tpu_custom_call.1} parent=43 // pred_check_branch
          %3565 = sbr.rel (%p3563) target = $region48
        $region47: #{tpu_custom_call.1} parent=43 // pred_region
          %s3566 = sand.u32 %s101, 1
          %s3567 = scalar_lea.sflag [#allocation5], %s3566
          %s3568 = sand.u32 %s101, 1
          %s3569 = smul.addr %s3568, 3
          %s3570 = scalar_lea.vmem [#allocation8], %s3569
          %3571 = dma.done %s3567, 48
        $region48: #{tpu_custom_call.1} parent=43 // pred_fallthru
          _
      $region44: #{tpu_custom_call.1} parent=5 // pred_fallthru
        _
    $region6: #{tpu_custom_call.1} parent=1 // loop_footer
      %s21 = sadd.s32 1, %s17
    $region7: #{tpu_custom_call.1} parent=1 // loop_footer_branch
      %16 = sbr.rel target = $region3
    $region8: #{tpu_custom_call.1} parent=1 // loop_exit
      _
    %3572 = vsyncpa [#allocation4], 1
    %s3573 = scalar_lea.sflag [#allocation4], 1
    %3574 = vsyncpa %s3573, 1
    %3575 = vsyncpa [#allocation7], 1
    %s3576 = scalar_lea.sflag [#allocation7], 1
    %3577 = vsyncpa %s3576, 1
    %3578 = vsyncpa [#allocation5], 1
    %s3579 = scalar_lea.sflag [#allocation5], 1
    %3580 = vsyncpa %s3579, 1

</llo_original>
